<compile_context>
chip_gen: v7x
topology: tpu7x:2x2x1
jax: 0.10.0
libtpu: 0.0.40
codegen_flags: <defaults>
</compile_context>

<pallas_src>
import functools

import jax
import jax.numpy as jnp
import numpy as np
from jax import lax
from jax.experimental import pallas as pl
from jax.experimental.pallas import tpu as pltpu

_BN_EPS = 1e-5
_LANE = 128


def _cdiv(a, b):
    return -(-a // b)


def _round_up(a, b):
    return _cdiv(a, b) * b


def _vmem_capacity_bytes():
    try:
        info = pltpu.get_tpu_info()
        for name in ("vmem_capacity_bytes", "vmem_size_bytes", "vmem_bytes"):
            cap = getattr(info, name, None)
            if cap:
                return int(cap)
    except Exception:
        pass
    return 64 * 1024 * 1024  # v7x-safe fallback


# ------------------------------ Pallas kernel --------------------------------

def _double_conv_kernel(xm_ref, xh_ref, w1_ref, s1_ref, w2_ref, s2_ref,
                        o_ref, y1_ref, wcat_ref, *, h_real, w_real):
    """Fused DoubleConv row-tile: (conv3x3+BN+ReLU) x 2, all in VMEM.

    xm_ref:   (1, tr, wb1t, 9*cin)  bf16  block1 im2col, main rows
    xh_ref:   (1, 2,  wb1t, 9*cin)  bf16  block1 im2col, 2-row bottom halo
    w1_ref:   (9*cin, coutp)        bf16  BN-folded block1 weights
    s1_ref:   (1, coutp)            f32   block1 bias/BN shift
    w2_ref:   (3, 3*coutp, coutp)   bf16  BN-folded block2 weights (kh-major)
    s2_ref:   (1, coutp)            f32   block2 bias/BN shift
    o_ref:    (1, tr, wt, coutp)          fused output tile
    y1_ref:   (tr+2, wb1t, coutp)   bf16  block1 output tile (scratch)
    wcat_ref: (tr+2, wt, 3*coutp)   bf16  width-im2col of y1 (scratch)
    """
    tr, wt, coutp = o_ref.shape[1], o_ref.shape[2], o_ref.shape[3]
    wb1t = y1_ref.shape[1]
    k1 = w1_ref.shape[0]
    i = pl.program_id(1)

    # ---- block1: one wide-K (9*cin) MXU matmul over the pre-built im2col ----
    a_main = jnp.dot(xm_ref[0].reshape(tr * wb1t, k1), w1_ref[...],
                     preferred_element_type=jnp.float32)
    y1_ref[0:tr] = jnp.maximum(a_main + s1_ref[...], 0.0).astype(
        jnp.bfloat16).reshape(tr, wb1t, coutp)
    a_halo = jnp.dot(xh_ref[0].reshape(2 * wb1t, k1), w1_ref[...],
                     preferred_element_type=jnp.float32)
    y1_ref[tr:tr + 2] = jnp.maximum(a_halo + s1_ref[...], 0.0).astype(
        jnp.bfloat16).reshape(2, wb1t, coutp)

    # ---- block2's zero padding: block1-output positions outside the real ----
    # image (row -1 / >= H, col -1 / >= W) must contribute exact zeros.
    gl_row = lax.broadcasted_iota(jnp.int32, (tr + 2, wb1t, 1), 0) + i * tr - 1
    gl_col = lax.broadcasted_iota(jnp.int32, (tr + 2, wb1t, 1), 1) - 1
    valid = ((gl_row >= 0) & (gl_row < h_real)
             & (gl_col >= 0) & (gl_col < w_real))
    y1v = y1_ref[...]
    y1_ref[...] = jnp.where(valid, y1v, jnp.zeros_like(y1v))

    # ---- width im2col of the block1 tile: fold kw into K.  Lane offsets are
    # multiples of 128 (aligned stores); the width shift is paid once here.
    for dc in range(3):
        wcat_ref[:, :, dc * coutp:(dc + 1) * coutp] = y1_ref[:, dc:dc + wt, :]

    # ---- block2: 3 row-shifted wide-K (3*coutp=384) matmuls; the row shift is
    # on a leading (non-minor) axis so every LHS slice is aligned.
    acc = jnp.dot(wcat_ref[0:tr].reshape(tr * wt, 3 * coutp), w2_ref[0],
                  preferred_element_type=jnp.float32)
    for dr in (1, 2):
        acc = acc + jnp.dot(wcat_ref[dr:dr + tr].reshape(tr * wt, 3 * coutp),
                            w2_ref[dr], preferred_element_type=jnp.float32)
    y2 = jnp.maximum(acc + s2_ref[...], 0.0)  # f32 epilogue (v5e-safe)
    o_ref[0] = y2.reshape(tr, wt, coutp).astype(o_ref.dtype)


# ------------------------------- weight folding ------------------------------

def _fold_bn(b, gamma, beta, rmean, rvar):
    inv_std = 1.0 / jnp.sqrt(rvar.astype(jnp.float32) + _BN_EPS)
    scale = gamma.astype(jnp.float32) * inv_std
    shift = beta.astype(jnp.float32) + (b.astype(jnp.float32)
                                        - rmean.astype(jnp.float32)) * scale
    return scale, shift


def _prep_block1(params, coutp):
    """(cout,cin,3,3) conv + BN -> (9*cin, coutp) bf16 weights, (1,coutp) shift."""
    w, b, gamma, beta, rmean, rvar = params
    cout, cin = w.shape[0], w.shape[1]
    scale, shift = _fold_bn(b, gamma, beta, rmean, rvar)
    wm = jnp.transpose(w.astype(jnp.float32), (2, 3, 1, 0)) * scale  # (3,3,ci,co)
    wm = wm.reshape(9 * cin, cout)                                   # k=(kh*3+kw)*ci
    wm = jnp.pad(wm, ((0, 0), (0, coutp - cout))).astype(jnp.bfloat16)
    shift = jnp.pad(shift, (0, coutp - cout)).reshape(1, coutp)
    return wm, shift


def _prep_block2(params, coutp):
    """(cout,cin,3,3) conv + BN -> (3, 3*coutp, coutp) bf16 (K = kw*coutp + ci)."""
    w, b, gamma, beta, rmean, rvar = params
    cout, cin = w.shape[0], w.shape[1]
    scale, shift = _fold_bn(b, gamma, beta, rmean, rvar)
    wm = jnp.transpose(w.astype(jnp.float32), (2, 3, 1, 0)) * scale  # (3,3,ci,co)
    wm = jnp.pad(wm, ((0, 0), (0, 0), (0, coutp - cin), (0, coutp - cout)))
    wm = wm.reshape(3, 3 * coutp, coutp).astype(jnp.bfloat16)
    shift = jnp.pad(shift, (0, coutp - cout)).reshape(1, coutp)
    return wm, shift


# --------------------------------- tiling ------------------------------------

def _pick_tile_rows(n, h, wt, wb1t, k1, coutp, out_bytes, budget):
    """Output rows per grid step, sized from a VMEM budget (>=8, multiple of 8)."""
    per_row = (2 * wb1t * k1 * 2              # block1 im2col input (double-buffered)
               + wb1t * coutp * 2             # y1 scratch (bf16)
               + wt * 3 * coutp * 2           # width-im2col scratch (bf16)
               + 2 * wt * coutp * out_bytes   # output tile (double-buffered)
               + wt * coutp * 16)             # f32 matmul results / accumulator
    fixed = 2 * (9 * coutp * coutp + k1 * coutp + 2 * coutp) * 2 + (1 << 20)
    tr = (budget - fixed) // max(per_row, 1)
    tr = max(8, min(tr, _round_up(h, 8)))
    tr = max(8, (tr // 8) * 8)
    # Best effort: keep n * n_tiles even so v7x's two TensorCores stay balanced.
    n_tiles = _cdiv(h, tr)
    if (n * n_tiles) % 2 == 1 and h > 8:
        alt = max(8, _round_up(_cdiv(h, n_tiles + 1), 8))
        if (n * _cdiv(h, alt)) % 2 == 0:
            tr = alt
    return int(tr)


# -------------------------------- forward ------------------------------------

def in_conv_forward(x_nchw, params, *, out_dtype=jnp.float32):
    """InConv.forward (DoubleConv, eval-mode BN).  NCHW in -> NCHW out."""
    n, cin, h, w = x_nchw.shape
    cout = params["block1"][0].shape[0]
    coutp = _round_up(cout, _LANE)        # lane-dense output channels
    k1 = 9 * cin
    wt = _round_up(w, 8)                  # kernel output width (sliced back)
    wb1t = _round_up(wt + 2, 8)           # block1 output width inside the kernel
    out_bytes = np.dtype(out_dtype).itemsize

    vmem_cap = _vmem_capacity_bytes()
    vmem_limit = (vmem_cap * 3) // 4      # generation-aware scoped-VMEM limit
    tr = _pick_tile_rows(n, h, wt, wb1t, k1, coutp, out_bytes,
                         (vmem_limit * 3) // 4)
    n_tiles = _cdiv(h, tr)
    hp = n_tiles * tr

    w1m, s1 = _prep_block1(params["block1"], coutp)
    w2m, s2 = _prep_block2(params["block2"], coutp)

    # NCHW->NHWC, pad, and 9-tap gather all fuse into the single XLA op that
    # materializes the block1 im2col (K = 9*cin).  Cheap because InConv's cin
    # is the raw image channel count.  TODO(synk): for large cin build this
    # im2col inside the kernel (VMEM) instead of in HBM.
    x_nhwc = jnp.transpose(x_nchw, (0, 2, 3, 1)).astype(jnp.bfloat16)
    xp = jnp.pad(x_nhwc, ((0, 0), (2, hp + 2 - h), (2, wb1t - w), (0, 0)))
    x_im9 = jnp.concatenate(
        [xp[:, dr:dr + hp + 2, dc:dc + wb1t, :]
         for dr in range(3) for dc in range(3)],
        axis=-1)                                   # (n, hp+2, wb1t, 9*cin)

    flops = 2 * n * ((hp + 2) * wb1t * k1 * coutp
                     + hp * wt * 9 * coutp * coutp)
    bytes_accessed = int(x_im9.size * 2 + w1m.size * 2 + w2m.size * 2
                         + (s1.size + s2.size) * 4
                         + n * hp * wt * coutp * out_bytes)

    kernel = functools.partial(_double_conv_kernel, h_real=h, w_real=w)
    out = pl.pallas_call(
        kernel,
        out_shape=jax.ShapeDtypeStruct((n, hp, wt, coutp), out_dtype),
        grid_spec=pltpu.PrefetchScalarGridSpec(
            num_scalar_prefetch=0,
            grid=(n, n_tiles),
            in_specs=[
                # main rows of the block1 im2col (no HBM duplication)
                pl.BlockSpec((1, tr, wb1t, k1), lambda b, i: (b, i, 0, 0)),
                # 2-row bottom halo: same array, shifted index map
                pl.BlockSpec((1, 2, wb1t, k1),
                             lambda b, i: (b, (i + 1) * (tr // 2), 0, 0)),
                pl.BlockSpec((k1, coutp), lambda b, i: (0, 0)),
                pl.BlockSpec((1, coutp), lambda b, i: (0, 0)),
                pl.BlockSpec((3, 3 * coutp, coutp), lambda b, i: (0, 0, 0)),
                pl.BlockSpec((1, coutp), lambda b, i: (0, 0)),
            ],
            out_specs=pl.BlockSpec((1, tr, wt, coutp),
                                   lambda b, i: (b, i, 0, 0)),
            scratch_shapes=[
                pltpu.VMEM((tr + 2, wb1t, coutp), jnp.bfloat16),    # block1 out
                pltpu.VMEM((tr + 2, wt, 3 * coutp), jnp.bfloat16),  # width im2col
            ]),
        compiler_params=pltpu.CompilerParams(
            dimension_semantics=("parallel", "parallel"),
            vmem_limit_bytes=int(vmem_limit)),
        cost_estimate=pl.CostEstimate(flops=flops, transcendentals=0,
                                      bytes_accessed=bytes_accessed),
    )(x_im9, x_im9, w1m, s1, w2m, s2)

    out = out[:, :h, :w, :cout]
    # TODO(synk): keep activations NHWC end-to-end to drop this transpose pass.
    return jnp.transpose(out, (0, 3, 1, 2))


# ------------------------- reference (pure JAX/XLA) ---------------------------

def _ref_conv_bn_relu(x_nchw, w, b, gamma, beta, rmean, rvar, eps=_BN_EPS):
    y = lax.conv_general_dilated(
        x_nchw, w, window_strides=(1, 1), padding="SAME",
        dimension_numbers=("NCHW", "OIHW", "NCHW"))
    y = y + b[None, :, None, None]
    y = (y - rmean[None, :, None, None]) / jnp.sqrt(rvar + eps)[None, :, None, None]
    y = y * gamma[None, :, None, None] + beta[None, :, None, None]
    return jnp.maximum(y, 0.0)


def _ref_in_conv(x_nchw, params):
    x = _ref_conv_bn_relu(x_nchw, *params["block1"])
    x = _ref_conv_bn_relu(x, *params["block2"])
    return x


# ---------------------------------- main --------------------------------------

def _init_params(key, in_ch, out_ch):
    k = jax.random.split(key, 8)

    def conv_w(kk, ci, co):
        fan_in = ci * 9
        return jax.random.normal(kk, (co, ci, 3, 3), jnp.float32) / np.sqrt(fan_in)

    return {
        "block1": (
            conv_w(k[0], in_ch, out_ch),
            0.01 * jax.random.normal(k[1], (out_ch,), jnp.float32),               # bias
            1.0 + 0.1 * jax.random.normal(k[2], (out_ch,), jnp.float32),          # gamma
            0.1 * jax.random.normal(k[3], (out_ch,), jnp.float32),                # beta
            0.05 * jax.random.normal(k[4], (out_ch,), jnp.float32),               # r_mean
            1.0 + 0.1 * jnp.abs(jax.random.normal(k[5], (out_ch,), jnp.float32)),  # r_var
        ),
        "block2": (
            conv_w(k[6], out_ch, out_ch),
            jnp.zeros((out_ch,), jnp.float32),
            jnp.ones((out_ch,), jnp.float32),
            jnp.zeros((out_ch,), jnp.float32),
            jnp.zeros((out_ch,), jnp.float32),
            jnp.ones((out_ch,), jnp.float32),
        ),
    }


if __name__ == "__main__":
    key = jax.random.PRNGKey(0)
    kx, kp = jax.random.split(key)

    N, in_ch, out_ch, H, W = 2, 4, 8, 16, 16
    x = jax.random.normal(kx, (N, in_ch, H, W), jnp.float32)
    params = _init_params(kp, in_ch, out_ch)

    fwd = jax.jit(functools.partial(in_conv_forward, params=params))
    out = fwd(x)
    jax.block_until_ready(out)

    ref = _ref_in_conv(x, params)
    # bf16 inputs/weights with f32 accumulation -> looser tolerance vs f32 ref.
    np.testing.assert_allclose(np.asarray(out), np.asarray(ref),
                               rtol=5e-2, atol=5e-2)
    assert out.shape == (N, out_ch, H, W)
    print("KERNEL_OK")
</pallas_src>

<mosaic_0001>
module attributes {stable_mosaic.version = 11 : i64} {
  func.func @_double_conv_kernel(%arg0: i32, %arg1: i32, %arg2: memref<1x16x24x36xbf16, #tpu.memory_space<vmem>>, %arg3: memref<1x2x24x36xbf16, #tpu.memory_space<vmem>>, %arg4: memref<36x128xbf16, #tpu.memory_space<vmem>>, %arg5: memref<1x128xf32, #tpu.memory_space<vmem>>, %arg6: memref<3x384x128xbf16, #tpu.memory_space<vmem>>, %arg7: memref<1x128xf32, #tpu.memory_space<vmem>>, %arg8: memref<1x16x16x128xf32, #tpu.memory_space<vmem>>, %arg9: memref<18x24x128xbf16, #tpu.memory_space<vmem>>, %arg10: memref<18x16x384xbf16, #tpu.memory_space<vmem>>) attributes {dimension_semantics = [#tpu.dimension_semantics<parallel>, #tpu.dimension_semantics<parallel>], iteration_bounds = array<i64: 2, 1>, scalar_prefetch = 0 : i64, scratch_operands = 2 : i64, tpu.core_type = #tpu.core_type<tc>, window_params = [{transform_indices = @transform_0, window_bounds = array<i64: 1, 16, 24, 36>}, {transform_indices = @transform_1, window_bounds = array<i64: 1, 2, 24, 36>}, {pipeline_mode = #tpu.pipeline_mode<synchronous>, transform_indices = @transform_2, window_bounds = array<i64: 36, 128>}, {pipeline_mode = #tpu.pipeline_mode<synchronous>, transform_indices = @transform_3, window_bounds = array<i64: 1, 128>}, {pipeline_mode = #tpu.pipeline_mode<synchronous>, transform_indices = @transform_4, window_bounds = array<i64: 3, 384, 128>}, {pipeline_mode = #tpu.pipeline_mode<synchronous>, transform_indices = @transform_5, window_bounds = array<i64: 1, 128>}, {transform_indices = @transform_6, window_bounds = array<i64: 1, 16, 16, 128>}]} {
    %c0 = arith.constant 0 : index
    %c0_0 = arith.constant 0 : index
    %c0_1 = arith.constant 0 : index
    %c0_2 = arith.constant 0 : index
    %0 = vector.load %arg2[%c0, %c0_0, %c0_1, %c0_2] : memref<1x16x24x36xbf16, #tpu.memory_space<vmem>>, vector<1x16x24x36xbf16>
    %1 = vector.shape_cast %0 : vector<1x16x24x36xbf16> to vector<16x24x36xbf16>
    %2 = vector.shape_cast %1 : vector<16x24x36xbf16> to vector<384x36xbf16>
    %c0_3 = arith.constant 0 : index
    %c0_4 = arith.constant 0 : index
    %3 = vector.load %arg4[%c0_3, %c0_4] : memref<36x128xbf16, #tpu.memory_space<vmem>>, vector<36x128xbf16>
    %cst = arith.constant dense<0.000000e+00> : vector<384x128xf32>
    %4 = tpu.matmul %2, %3, %cst {dimension_numbers = #tpu.dot_dimension_numbers<[1], [0], [0], [1], [0, 0, 1, 1], [], []>} : vector<384x36xbf16>, vector<36x128xbf16>, vector<384x128xf32> -> vector<384x128xf32>
    %c0_5 = arith.constant 0 : index
    %c0_6 = arith.constant 0 : index
    %5 = vector.load %arg5[%c0_5, %c0_6] : memref<1x128xf32, #tpu.memory_space<vmem>>, vector<1x128xf32>
    %6 = vector.broadcast %5 : vector<1x128xf32> to vector<384x128xf32>
    %7 = arith.addf %4, %6 : vector<384x128xf32>
    %cst_7 = arith.constant 0.000000e+00 : f32
    %8 = vector.broadcast %cst_7 : f32 to vector<384x128xf32>
    %9 = arith.maximumf %7, %8 : vector<384x128xf32>
    %10 = arith.truncf %9 : vector<384x128xf32> to vector<384x128xbf16>
    %11 = vector.shape_cast %10 : vector<384x128xbf16> to vector<16x24x128xbf16>
    %c0_8 = arith.constant 0 : index
    %c0_9 = arith.constant 0 : index
    %c0_10 = arith.constant 0 : index
    %12 = vector.load %arg9[%c0_8, %c0_9, %c0_10] : memref<18x24x128xbf16, #tpu.memory_space<vmem>>, vector<16x24x128xbf16>
    tpu.vector_store %arg9[%c0_8, %c0_9, %c0_10], %11 {strides = array<i32>} : memref<18x24x128xbf16, #tpu.memory_space<vmem>>, vector<16x24x128xbf16>,
    %c0_11 = arith.constant 0 : index
    %c0_12 = arith.constant 0 : index
    %c0_13 = arith.constant 0 : index
    %c0_14 = arith.constant 0 : index
    %13 = vector.load %arg3[%c0_11, %c0_12, %c0_13, %c0_14] : memref<1x2x24x36xbf16, #tpu.memory_space<vmem>>, vector<1x2x24x36xbf16>
    %14 = vector.shape_cast %13 : vector<1x2x24x36xbf16> to vector<2x24x36xbf16>
    %15 = vector.shape_cast %14 : vector<2x24x36xbf16> to vector<48x36xbf16>
    %c0_15 = arith.constant 0 : index
    %c0_16 = arith.constant 0 : index
    %16 = vector.load %arg4[%c0_15, %c0_16] : memref<36x128xbf16, #tpu.memory_space<vmem>>, vector<36x128xbf16>
    %cst_17 = arith.constant dense<0.000000e+00> : vector<48x128xf32>
    %17 = tpu.matmul %15, %16, %cst_17 {dimension_numbers = #tpu.dot_dimension_numbers<[1], [0], [0], [1], [0, 0, 1, 1], [], []>} : vector<48x36xbf16>, vector<36x128xbf16>, vector<48x128xf32> -> vector<48x128xf32>
    %c0_18 = arith.constant 0 : index
    %c0_19 = arith.constant 0 : index
    %18 = vector.load %arg5[%c0_18, %c0_19] : memref<1x128xf32, #tpu.memory_space<vmem>>, vector<1x128xf32>
    %19 = vector.broadcast %18 : vector<1x128xf32> to vector<48x128xf32>
    %20 = arith.addf %17, %19 : vector<48x128xf32>
    %cst_20 = arith.constant 0.000000e+00 : f32
    %21 = vector.broadcast %cst_20 : f32 to vector<48x128xf32>
    %22 = arith.maximumf %20, %21 : vector<48x128xf32>
    %23 = arith.truncf %22 : vector<48x128xf32> to vector<48x128xbf16>
    %24 = vector.shape_cast %23 : vector<48x128xbf16> to vector<2x24x128xbf16>
    %c16 = arith.constant 16 : index
    %c0_21 = arith.constant 0 : index
    %c0_22 = arith.constant 0 : index
    %25 = vector.load %arg9[%c16, %c0_21, %c0_22] : memref<18x24x128xbf16, #tpu.memory_space<vmem>>, vector<2x24x128xbf16>
    tpu.vector_store %arg9[%c16, %c0_21, %c0_22], %24 {strides = array<i32>} : memref<18x24x128xbf16, #tpu.memory_space<vmem>>, vector<2x24x128xbf16>,
    %26 = tpu.iota {dimensions = array<i32: 0>} : vector<18x24x1xi32>
    %c16_i32 = arith.constant 16 : i32
    %27 = arith.muli %arg1, %c16_i32 : i32
    %28 = vector.broadcast %27 : i32 to vector<18x24x1xi32>
    %29 = arith.addi %26, %28 : vector<18x24x1xi32>
    %c1_i32 = arith.constant 1 : i32
    %30 = vector.broadcast %c1_i32 : i32 to vector<18x24x1xi32>
    %31 = arith.subi %29, %30 : vector<18x24x1xi32>
    %32 = tpu.iota {dimensions = array<i32: 1>} : vector<18x24x1xi32>
    %c1_i32_23 = arith.constant 1 : i32
    %33 = vector.broadcast %c1_i32_23 : i32 to vector<18x24x1xi32>
    %34 = arith.subi %32, %33 : vector<18x24x1xi32>
    %c0_i32 = arith.constant 0 : i32
    %35 = vector.broadcast %c0_i32 : i32 to vector<18x24x1xi32>
    %36 = arith.cmpi sge, %31, %35 : vector<18x24x1xi32>
    %c16_i32_24 = arith.constant 16 : i32
    %37 = vector.broadcast %c16_i32_24 : i32 to vector<18x24x1xi32>
    %38 = arith.cmpi slt, %31, %37 : vector<18x24x1xi32>
    %39 = arith.andi %36, %38 : vector<18x24x1xi1>
    %c0_i32_25 = arith.constant 0 : i32
    %40 = vector.broadcast %c0_i32_25 : i32 to vector<18x24x1xi32>
    %41 = arith.cmpi sge, %34, %40 : vector<18x24x1xi32>
    %42 = arith.andi %39, %41 : vector<18x24x1xi1>
    %c16_i32_26 = arith.constant 16 : i32
    %43 = vector.broadcast %c16_i32_26 : i32 to vector<18x24x1xi32>
    %44 = arith.cmpi slt, %34, %43 : vector<18x24x1xi32>
    %45 = arith.andi %42, %44 : vector<18x24x1xi1>
    %c0_27 = arith.constant 0 : index
    %c0_28 = arith.constant 0 : index
    %c0_29 = arith.constant 0 : index
    %46 = vector.load %arg9[%c0_27, %c0_28, %c0_29] : memref<18x24x128xbf16, #tpu.memory_space<vmem>>, vector<18x24x128xbf16>
    %cst_30 = arith.constant 0.000000e+00 : bf16
    %47 = vector.broadcast %cst_30 : bf16 to vector<18x24x128xbf16>
    %48 = vector.shape_cast %45 : vector<18x24x1xi1> to vector<18x24x1xi1>
    %49 = vector.broadcast %48 : vector<18x24x1xi1> to vector<18x24x128xi1>
    %50 = arith.select %49, %46, %47 : vector<18x24x128xi1>, vector<18x24x128xbf16>
    %c0_31 = arith.constant 0 : index
    %c0_32 = arith.constant 0 : index
    %c0_33 = arith.constant 0 : index
    %51 = vector.load %arg9[%c0_31, %c0_32, %c0_33] : memref<18x24x128xbf16, #tpu.memory_space<vmem>>, vector<18x24x128xbf16>
    tpu.vector_store %arg9[%c0_31, %c0_32, %c0_33], %50 {strides = array<i32>} : memref<18x24x128xbf16, #tpu.memory_space<vmem>>, vector<18x24x128xbf16>,
    %c0_34 = arith.constant 0 : index
    %c0_35 = arith.constant 0 : index
    %c0_36 = arith.constant 0 : index
    %52 = vector.load %arg9[%c0_34, %c0_35, %c0_36] : memref<18x24x128xbf16, #tpu.memory_space<vmem>>, vector<18x16x128xbf16>
    %c0_37 = arith.constant 0 : index
    %c0_38 = arith.constant 0 : index
    %c0_39 = arith.constant 0 : index
    %53 = vector.load %arg10[%c0_37, %c0_38, %c0_39] : memref<18x16x384xbf16, #tpu.memory_space<vmem>>, vector<18x16x128xbf16>
    tpu.vector_store %arg10[%c0_37, %c0_38, %c0_39], %52 {strides = array<i32>} : memref<18x16x384xbf16, #tpu.memory_space<vmem>>, vector<18x16x128xbf16>,
    %c0_40 = arith.constant 0 : index
    %c1 = arith.constant 1 : index
    %c0_41 = arith.constant 0 : index
    %54 = vector.load %arg9[%c0_40, %c1, %c0_41] : memref<18x24x128xbf16, #tpu.memory_space<vmem>>, vector<18x16x128xbf16>
    %c0_42 = arith.constant 0 : index
    %c0_43 = arith.constant 0 : index
    %c128 = arith.constant 128 : index
    %55 = vector.load %arg10[%c0_42, %c0_43, %c128] : memref<18x16x384xbf16, #tpu.memory_space<vmem>>, vector<18x16x128xbf16>
    tpu.vector_store %arg10[%c0_42, %c0_43, %c128], %54 {strides = array<i32>} : memref<18x16x384xbf16, #tpu.memory_space<vmem>>, vector<18x16x128xbf16>,
    %c0_44 = arith.constant 0 : index
    %c2 = arith.constant 2 : index
    %c0_45 = arith.constant 0 : index
    %56 = vector.load %arg9[%c0_44, %c2, %c0_45] : memref<18x24x128xbf16, #tpu.memory_space<vmem>>, vector<18x16x128xbf16>
    %c0_46 = arith.constant 0 : index
    %c0_47 = arith.constant 0 : index
    %c256 = arith.constant 256 : index
    %57 = vector.load %arg10[%c0_46, %c0_47, %c256] : memref<18x16x384xbf16, #tpu.memory_space<vmem>>, vector<18x16x128xbf16>
    tpu.vector_store %arg10[%c0_46, %c0_47, %c256], %56 {strides = array<i32>} : memref<18x16x384xbf16, #tpu.memory_space<vmem>>, vector<18x16x128xbf16>,
    %c0_48 = arith.constant 0 : index
    %c0_49 = arith.constant 0 : index
    %c0_50 = arith.constant 0 : index
    %58 = vector.load %arg10[%c0_48, %c0_49, %c0_50] : memref<18x16x384xbf16, #tpu.memory_space<vmem>>, vector<16x16x384xbf16>
    %59 = vector.shape_cast %58 : vector<16x16x384xbf16> to vector<256x384xbf16>
    %c0_51 = arith.constant 0 : index
    %c0_52 = arith.constant 0 : index
    %c0_53 = arith.constant 0 : index
    %60 = vector.load %arg6[%c0_51, %c0_52, %c0_53] : memref<3x384x128xbf16, #tpu.memory_space<vmem>>, vector<1x384x128xbf16>
    %61 = vector.shape_cast %60 : vector<1x384x128xbf16> to vector<384x128xbf16>
    %cst_54 = arith.constant dense<0.000000e+00> : vector<256x128xf32>
    %62 = tpu.matmul %59, %61, %cst_54 {dimension_numbers = #tpu.dot_dimension_numbers<[1], [0], [0], [1], [0, 0, 1, 1], [], []>} : vector<256x384xbf16>, vector<384x128xbf16>, vector<256x128xf32> -> vector<256x128xf32>
    %c1_55 = arith.constant 1 : index
    %c0_56 = arith.constant 0 : index
    %c0_57 = arith.constant 0 : index
    %63 = vector.load %arg10[%c1_55, %c0_56, %c0_57] : memref<18x16x384xbf16, #tpu.memory_space<vmem>>, vector<16x16x384xbf16>
    %64 = vector.shape_cast %63 : vector<16x16x384xbf16> to vector<256x384xbf16>
    %c1_58 = arith.constant 1 : index
    %c0_59 = arith.constant 0 : index
    %c0_60 = arith.constant 0 : index
    %65 = vector.load %arg6[%c1_58, %c0_59, %c0_60] : memref<3x384x128xbf16, #tpu.memory_space<vmem>>, vector<1x384x128xbf16>
    %66 = vector.shape_cast %65 : vector<1x384x128xbf16> to vector<384x128xbf16>
    %cst_61 = arith.constant dense<0.000000e+00> : vector<256x128xf32>
    %67 = tpu.matmul %64, %66, %cst_61 {dimension_numbers = #tpu.dot_dimension_numbers<[1], [0], [0], [1], [0, 0, 1, 1], [], []>} : vector<256x384xbf16>, vector<384x128xbf16>, vector<256x128xf32> -> vector<256x128xf32>
    %68 = arith.addf %62, %67 : vector<256x128xf32>
    %c2_62 = arith.constant 2 : index
    %c0_63 = arith.constant 0 : index
    %c0_64 = arith.constant 0 : index
    %69 = vector.load %arg10[%c2_62, %c0_63, %c0_64] : memref<18x16x384xbf16, #tpu.memory_space<vmem>>, vector<16x16x384xbf16>
    %70 = vector.shape_cast %69 : vector<16x16x384xbf16> to vector<256x384xbf16>
    %c2_65 = arith.constant 2 : index
    %c0_66 = arith.constant 0 : index
    %c0_67 = arith.constant 0 : index
    %71 = vector.load %arg6[%c2_65, %c0_66, %c0_67] : memref<3x384x128xbf16, #tpu.memory_space<vmem>>, vector<1x384x128xbf16>
    %72 = vector.shape_cast %71 : vector<1x384x128xbf16> to vector<384x128xbf16>
    %cst_68 = arith.constant dense<0.000000e+00> : vector<256x128xf32>
    %73 = tpu.matmul %70, %72, %cst_68 {dimension_numbers = #tpu.dot_dimension_numbers<[1], [0], [0], [1], [0, 0, 1, 1], [], []>} : vector<256x384xbf16>, vector<384x128xbf16>, vector<256x128xf32> -> vector<256x128xf32>
    %74 = arith.addf %68, %73 : vector<256x128xf32>
    %c0_69 = arith.constant 0 : index
    %c0_70 = arith.constant 0 : index
    %75 = vector.load %arg7[%c0_69, %c0_70] : memref<1x128xf32, #tpu.memory_space<vmem>>, vector<1x128xf32>
    %76 = vector.broadcast %75 : vector<1x128xf32> to vector<256x128xf32>
    %77 = arith.addf %74, %76 : vector<256x128xf32>
    %cst_71 = arith.constant 0.000000e+00 : f32
    %78 = vector.broadcast %cst_71 : f32 to vector<256x128xf32>
    %79 = arith.maximumf %77, %78 : vector<256x128xf32>
    %80 = vector.shape_cast %79 : vector<256x128xf32> to vector<16x16x128xf32>
    %c0_72 = arith.constant 0 : index
    %c0_73 = arith.constant 0 : index
    %c0_74 = arith.constant 0 : index
    %c0_75 = arith.constant 0 : index
    %81 = vector.load %arg8[%c0_72, %c0_73, %c0_74, %c0_75] : memref<1x16x16x128xf32, #tpu.memory_space<vmem>>, vector<1x16x16x128xf32>
    %82 = vector.shape_cast %81 : vector<1x16x16x128xf32> to vector<16x16x128xf32>
    %83 = vector.shape_cast %80 : vector<16x16x128xf32> to vector<1x16x16x128xf32>
    tpu.vector_store %arg8[%c0_72, %c0_73, %c0_74, %c0_75], %83 {strides = array<i32>} : memref<1x16x16x128xf32, #tpu.memory_space<vmem>>, vector<1x16x16x128xf32>,
    return
  }
  func.func @transform_0(%arg0: i32, %arg1: i32) -> (i32, i32, i32, i32) {
    %c0_i32 = arith.constant 0 : i32
    %c0_i32_0 = arith.constant 0 : i32
    %c0_i32_1 = arith.constant 0 : i32
    return %arg0, %arg1, %c0_i32, %c0_i32_0 : i32, i32, i32, i32
  }
  func.func @transform_1(%arg0: i32, %arg1: i32) -> (i32, i32, i32, i32) {
    %c1_i32 = arith.constant 1 : i32
    %0 = arith.addi %arg1, %c1_i32 : i32
    %c8_i32 = arith.constant 8 : i32
    %1 = arith.muli %0, %c8_i32 : i32
    %c0_i32 = arith.constant 0 : i32
    %c0_i32_0 = arith.constant 0 : i32
    %c0_i32_1 = arith.constant 0 : i32
    return %arg0, %1, %c0_i32, %c0_i32_0 : i32, i32, i32, i32
  }
  func.func @transform_2(%arg0: i32, %arg1: i32) -> (i32, i32) {
    %c0_i32 = arith.constant 0 : i32
    %c0_i32_0 = arith.constant 0 : i32
    %c0_i32_1 = arith.constant 0 : i32
    return %c0_i32, %c0_i32_0 : i32, i32
  }
  func.func @transform_3(%arg0: i32, %arg1: i32) -> (i32, i32) {
    %c0_i32 = arith.constant 0 : i32
    %c0_i32_0 = arith.constant 0 : i32
    %c0_i32_1 = arith.constant 0 : i32
    return %c0_i32, %c0_i32_0 : i32, i32
  }
  func.func @transform_4(%arg0: i32, %arg1: i32) -> (i32, i32, i32) {
    %c0_i32 = arith.constant 0 : i32
    %c0_i32_0 = arith.constant 0 : i32
    %c0_i32_1 = arith.constant 0 : i32
    %c0_i32_2 = arith.constant 0 : i32
    return %c0_i32, %c0_i32_0, %c0_i32_1 : i32, i32, i32
  }
  func.func @transform_5(%arg0: i32, %arg1: i32) -> (i32, i32) {
    %c0_i32 = arith.constant 0 : i32
    %c0_i32_0 = arith.constant 0 : i32
    %c0_i32_1 = arith.constant 0 : i32
    return %c0_i32, %c0_i32_0 : i32, i32
  }
  func.func @transform_6(%arg0: i32, %arg1: i32) -> (i32, i32, i32, i32) {
    %c0_i32 = arith.constant 0 : i32
    %c0_i32_0 = arith.constant 0 : i32
    %c0_i32_1 = arith.constant 0 : i32
    return %arg0, %arg1, %c0_i32, %c0_i32_0 : i32, i32, i32, i32
  }
}

</mosaic_0001>

<llo_original>
// kernel: in_conv_forward.1
$region0: #{in_conv_forward.1}
  #allocation0 [shape = 'u32[]', space=smem, size = 0x4, offset = 0x4, fixed_abs, tag = 'smem constant byte address 0x4 - core index']
  #allocation1 [shape = 'u32[144,128]{1,0:T(1,128)}', space=vmem, size = 0x12000, scoped, tag = 'internal scratch']
  #allocation2 [shape = 'bf16[18,24,128]{2,1,0:T(8,128)(2,1)}', space=vmem, size = 0x1b000, scoped, tag = 'scratch operand']
  #allocation3 [shape = 'bf16[18,16,384]{2,1,0:T(16,128)(2,1)}', space=vmem, size = 0x36000, scoped, tag = 'scratch operand']
  %s0 = inlined_call_operand.vmem [shape: bf16[2,18,24,36], index: 0, kind: input, shape index: {}, may-alias: {0,1}]
  %s1 = inlined_call_operand.vmem [shape: bf16[2,18,24,36], index: 1, kind: input, shape index: {}, may-alias: {0,1}]
  %s2 = inlined_call_operand.vmem [shape: bf16[36,128], index: 2, kind: input, shape index: {}]
  %s3 = inlined_call_operand.vmem [shape: f32[1,128], index: 3, kind: input, shape index: {}]
  %s4 = inlined_call_operand.vmem [shape: bf16[3,384,128], index: 4, kind: input, shape index: {}]
  %s5 = inlined_call_operand.vmem [shape: f32[1,128], index: 5, kind: input, shape index: {}]
  %s6 = inlined_call_operand.vmem [shape: f32[2,16,16,128], index: 6, kind: output, shape index: {}]
  %s7 = sld [smem:[#allocation0]]
  $region57: #{in_conv_forward.1} parent=0
    _
  %s9 = ssub.s32 1, %s7
  %s10 = scalar_select 0, %s9, %s7
  loop: start=0, step=1, limit=4
  $region2: #{in_conv_forward.1} parent=0 // loop_pre_header
    _
  $region3: #{in_conv_forward.1} parent=0 // loop_header
    %s12 = sphi 0, %s16
    %p13 = scmp.ge.s32.totalorder %s12, 4
    %s19 = sphi 0, %s31
    %s20 = sphi 0, %s27
    %s21 = sphi 0, %s19
    %s22 = sphi 0, %s20
    %s23 = sphi 0, %s21
    %s24 = sphi 0, %s22
    %s36 = sphi 0, %s38
    %s39 = sphi 0, %s36
    %s40 = sphi 0, %s39
    %s56 = sphi 0, %s40
    %s68 = sphi 0, %s70
    %s71 = sphi 0, %s68
    %s72 = sphi 0, %s71
    %s88 = sphi 0, %s72
    %s92 = sphi 0, %s92
    %s94 = sphi 0, %s92
    %s95 = sphi 0, %s94
    %s109 = sphi 0, %s95
    %s113 = sphi 0, %s113
    %s115 = sphi 0, %s113
    %s116 = sphi 0, %s115
    %s130 = sphi 0, %s116
    %s134 = sphi 0, %s134
    %s136 = sphi 0, %s134
    %s137 = sphi 0, %s136
    %s151 = sphi 0, %s137
    %s155 = sphi 0, %s155
    %s157 = sphi 0, %s155
    %s158 = sphi 0, %s157
    %s172 = sphi 0, %s158
    %s180 = sphi 0, %s182
    %s183 = sphi 0, %s180
    %s184 = sphi 0, %s183
    %s200 = sphi 0, %s184
  $region4: #{in_conv_forward.1} parent=0 // loop_header_branch
    %15 = sbr.rel (%p13) target = $region8
  $region5: #{in_conv_forward.1} parent=0 // loop_body
    %s17 = ssub.s32 %s12, 1
    %s18 = ssub.s32 %s12, 2
    %s25 = sadd.s32 1, %s20
    %p26 = scmp.ge.s32.totalorder %s25, 1
    %s27 = scalar_select %p26, 0, %s25
    %s28 = sadd.s32 1, %s19
    %s29 = scalar_select %p26, %s28, %s19
    %p30 = scmp.ge.s32.totalorder %s29, 2
    %s31 = scalar_select %p30, 0, %s29
    %s32 = ssub.s32 %s19, %s31
    %s33 = ssub.s32 %s20, %s27
    %s34 = sor.u32 %s32, %s33
    %p35 = scmp.eq.s32.totalorder %s34, 0
    %s37 = sadd.s32 %s36, 1
    %s38 = scalar_select %p35, %s36, %s37
    %p41 = pneg %p35
    %p42 = scmp.eq.s32.totalorder %s12, 1
    %p43 = por %p41, %p42
    %p44 = scmp.ne.s32.totalorder %s36, %s39
    %p45 = scmp.eq.s32.totalorder %s12, 0
    %p46 = por %p44, %p45
    %p47 = scmp.ne.s32.totalorder %s36, %s39
    %p48 = scmp.eq.s32.totalorder %s17, 1
    %p49 = por %p47, %p48
    %p50 = scmp.ne.s32.totalorder %s39, %s40
    %p51 = scmp.eq.s32.totalorder %s17, 0
    %p52 = por %p50, %p51
    %p53 = scmp.ne.s32.totalorder %s39, %s40
    %p54 = scmp.eq.s32.totalorder %s18, 1
    %p55 = por %p53, %p54
    %p57 = scmp.ne.s32.totalorder %s40, %s56
    %p58 = scmp.eq.s32.totalorder %s18, 0
    %p59 = por %p57, %p58
    %s60 = sadd.s32 %s20, 1
    %s61 = smul.u32 %s60, 8
    %s62 = sadd.s32 %s27, 1
    %s63 = smul.u32 %s62, 8
    %s64 = ssub.s32 %s19, %s31
    %s65 = ssub.s32 %s61, %s63
    %s66 = sor.u32 %s64, %s65
    %p67 = scmp.eq.s32.totalorder %s66, 0
    %s69 = sadd.s32 %s68, 1
    %s70 = scalar_select %p67, %s68, %s69
    %p73 = pneg %p67
    %p74 = scmp.eq.s32.totalorder %s12, 1
    %p75 = por %p73, %p74
    %p76 = scmp.ne.s32.totalorder %s68, %s71
    %p77 = scmp.eq.s32.totalorder %s12, 0
    %p78 = por %p76, %p77
    %p79 = scmp.ne.s32.totalorder %s68, %s71
    %p80 = scmp.eq.s32.totalorder %s17, 1
    %p81 = por %p79, %p80
    %p82 = scmp.ne.s32.totalorder %s71, %s72
    %p83 = scmp.eq.s32.totalorder %s17, 0
    %p84 = por %p82, %p83
    %p85 = scmp.ne.s32.totalorder %s71, %s72
    %p86 = scmp.eq.s32.totalorder %s18, 1
    %p87 = por %p85, %p86
    %p89 = scmp.ne.s32.totalorder %s72, %s88
    %p90 = scmp.eq.s32.totalorder %s18, 0
    %p91 = por %p89, %p90
    %s93 = sadd.s32 %s92, 1
    %p96 = scmp.eq.s32.totalorder %s12, 1
    %p97 = scmp.ne.s32.totalorder %s92, %s94
    %p98 = scmp.eq.s32.totalorder %s12, 0
    %p99 = por %p97, %p98
    %p100 = scmp.ne.s32.totalorder %s92, %s94
    %p101 = scmp.eq.s32.totalorder %s17, 1
    %p102 = por %p100, %p101
    %p103 = scmp.ne.s32.totalorder %s94, %s95
    %p104 = scmp.eq.s32.totalorder %s17, 0
    %p105 = por %p103, %p104
    %p106 = scmp.ne.s32.totalorder %s94, %s95
    %p107 = scmp.eq.s32.totalorder %s18, 1
    %p108 = por %p106, %p107
    %p110 = scmp.ne.s32.totalorder %s95, %s109
    %p111 = scmp.eq.s32.totalorder %s18, 0
    %p112 = por %p110, %p111
    %s114 = sadd.s32 %s113, 1
    %p117 = scmp.eq.s32.totalorder %s12, 1
    %p118 = scmp.ne.s32.totalorder %s113, %s115
    %p119 = scmp.eq.s32.totalorder %s12, 0
    %p120 = por %p118, %p119
    %p121 = scmp.ne.s32.totalorder %s113, %s115
    %p122 = scmp.eq.s32.totalorder %s17, 1
    %p123 = por %p121, %p122
    %p124 = scmp.ne.s32.totalorder %s115, %s116
    %p125 = scmp.eq.s32.totalorder %s17, 0
    %p126 = por %p124, %p125
    %p127 = scmp.ne.s32.totalorder %s115, %s116
    %p128 = scmp.eq.s32.totalorder %s18, 1
    %p129 = por %p127, %p128
    %p131 = scmp.ne.s32.totalorder %s116, %s130
    %p132 = scmp.eq.s32.totalorder %s18, 0
    %p133 = por %p131, %p132
    %s135 = sadd.s32 %s134, 1
    %p138 = scmp.eq.s32.totalorder %s12, 1
    %p139 = scmp.ne.s32.totalorder %s134, %s136
    %p140 = scmp.eq.s32.totalorder %s12, 0
    %p141 = por %p139, %p140
    %p142 = scmp.ne.s32.totalorder %s134, %s136
    %p143 = scmp.eq.s32.totalorder %s17, 1
    %p144 = por %p142, %p143
    %p145 = scmp.ne.s32.totalorder %s136, %s137
    %p146 = scmp.eq.s32.totalorder %s17, 0
    %p147 = por %p145, %p146
    %p148 = scmp.ne.s32.totalorder %s136, %s137
    %p149 = scmp.eq.s32.totalorder %s18, 1
    %p150 = por %p148, %p149
    %p152 = scmp.ne.s32.totalorder %s137, %s151
    %p153 = scmp.eq.s32.totalorder %s18, 0
    %p154 = por %p152, %p153
    %s156 = sadd.s32 %s155, 1
    %p159 = scmp.eq.s32.totalorder %s12, 1
    %p160 = scmp.ne.s32.totalorder %s155, %s157
    %p161 = scmp.eq.s32.totalorder %s12, 0
    %p162 = por %p160, %p161
    %p163 = scmp.ne.s32.totalorder %s155, %s157
    %p164 = scmp.eq.s32.totalorder %s17, 1
    %p165 = por %p163, %p164
    %p166 = scmp.ne.s32.totalorder %s157, %s158
    %p167 = scmp.eq.s32.totalorder %s17, 0
    %p168 = por %p166, %p167
    %p169 = scmp.ne.s32.totalorder %s157, %s158
    %p170 = scmp.eq.s32.totalorder %s18, 1
    %p171 = por %p169, %p170
    %p173 = scmp.ne.s32.totalorder %s158, %s172
    %p174 = scmp.eq.s32.totalorder %s18, 0
    %p175 = por %p173, %p174
    %s176 = ssub.s32 %s19, %s31
    %s177 = ssub.s32 %s20, %s27
    %s178 = sor.u32 %s176, %s177
    %p179 = scmp.eq.s32.totalorder %s178, 0
    %s181 = sadd.s32 %s180, 1
    %s182 = scalar_select %p179, %s180, %s181
    %p185 = pneg %p179
    %p186 = scmp.eq.s32.totalorder %s12, 1
    %p187 = por %p185, %p186
    %p188 = scmp.ne.s32.totalorder %s180, %s183
    %p189 = scmp.eq.s32.totalorder %s12, 0
    %p190 = por %p188, %p189
    %p191 = scmp.ne.s32.totalorder %s180, %s183
    %p192 = scmp.eq.s32.totalorder %s17, 1
    %p193 = por %p191, %p192
    %p194 = scmp.ne.s32.totalorder %s183, %s184
    %p195 = scmp.eq.s32.totalorder %s17, 0
    %p196 = por %p194, %p195
    %p197 = scmp.ne.s32.totalorder %s183, %s184
    %p198 = scmp.eq.s32.totalorder %s18, 1
    %p199 = por %p197, %p198
    %p201 = scmp.ne.s32.totalorder %s184, %s200
    %p202 = scmp.eq.s32.totalorder %s18, 0
    %p203 = por %p201, %p202
    %p204 = scmp.le.s32.totalorder 1, %s12
    %p205 = scmp.lt.s32.totalorder %s12, 3
    %p206 = pnand %p204, %p205
    %p207 = pneg %p206
    // Predicated region
    $region9: #{in_conv_forward.1} parent=5 // pred_check
      _
    $region10: #{in_conv_forward.1} parent=5 // pred_check_branch
      %209 = sbr.rel (%p206) target = $region12
    $region11: #{in_conv_forward.1} parent=5 // pred_region
      %s210 = ssub.s32 %s12, 1
      // Predicated region
      $region13: #{in_conv_forward.1} parent=11 // pred_check
        %p211 = pneg %p105
      $region14: #{in_conv_forward.1} parent=11 // pred_check_branch
        %213 = sbr.rel (%p211) target = $region16
      $region15: #{in_conv_forward.1} parent=11 // pred_region
        _
      $region16: #{in_conv_forward.1} parent=11 // pred_fallthru
        _
      // Predicated region
      $region17: #{in_conv_forward.1} parent=11 // pred_check
        %p214 = pneg %p126
      $region18: #{in_conv_forward.1} parent=11 // pred_check_branch
        %216 = sbr.rel (%p214) target = $region20
      $region19: #{in_conv_forward.1} parent=11 // pred_region
        _
      $region20: #{in_conv_forward.1} parent=11 // pred_fallthru
        _
      // Predicated region
      $region21: #{in_conv_forward.1} parent=11 // pred_check
        %p217 = pneg %p147
      $region22: #{in_conv_forward.1} parent=11 // pred_check_branch
        %219 = sbr.rel (%p217) target = $region24
      $region23: #{in_conv_forward.1} parent=11 // pred_region
        _
      $region24: #{in_conv_forward.1} parent=11 // pred_fallthru
        _
      // Predicated region
      $region25: #{in_conv_forward.1} parent=11 // pred_check
        %p220 = pneg %p168
      $region26: #{in_conv_forward.1} parent=11 // pred_check_branch
        %222 = sbr.rel (%p220) target = $region28
      $region27: #{in_conv_forward.1} parent=11 // pred_region
        _
      $region28: #{in_conv_forward.1} parent=11 // pred_fallthru
        _
    $region12: #{in_conv_forward.1} parent=5 // pred_fallthru
      _
    %p223 = scmp.lt.s32.totalorder %s12, 2
    // Predicated region
    $region29: #{in_conv_forward.1} parent=5 // pred_check
      %p224 = pneg %p223
    $region30: #{in_conv_forward.1} parent=5 // pred_check_branch
      %226 = sbr.rel (%p224) target = $region32
    $region31: #{in_conv_forward.1} parent=5 // pred_region
      // Predicated region
      $region33: #{in_conv_forward.1} parent=31 // pred_check
        %p227 = pneg %p46
      $region34: #{in_conv_forward.1} parent=31 // pred_check_branch
        %229 = sbr.rel (%p227) target = $region36
      $region35: #{in_conv_forward.1} parent=31 // pred_region
        %s230 = smul.u32 16, %s20
        %s231 = ssub.s32 18, %s230
        %p232 = scmp.lt.s32.totalorder %s231, 16
        %s233 = scalar_select %p232, %s231, 16
        %s234 = smul.u32 64, %s233
        %s235 = smul.u32 %s234, 3
        %p236 = scmp.lt.s32.totalorder %s19, 1
        %s237 = scalar_select %p236, %s19, 1
        %p238 = scmp.lt.s32.totalorder %s230, 17
        %s239 = scalar_select %p238, %s230, 17
        %s240 = smul.addr %s239, 3
        %s241 = smul.addr %s237, 54
        %s242 = sadd.s32 %s240, %s241
        %s243 = smul.addr %s242, 4
        %s244 = scalar_lea.vmem %s0, %s243
        %s245 = smul.u32 16, %s20
        %s246 = ssub.s32 18, %s245
        %p247 = scmp.lt.s32.totalorder %s246, 16
        %s248 = scalar_select %p247, %s246, 16
        %s249 = smul.u32 64, %s248
        %s250 = smul.u32 %s249, 3
      $region36: #{in_conv_forward.1} parent=31 // pred_fallthru
        _
      // Predicated region
      $region37: #{in_conv_forward.1} parent=31 // pred_check
        %p251 = pneg %p78
      $region38: #{in_conv_forward.1} parent=31 // pred_check_branch
        %253 = sbr.rel (%p251) target = $region40
      $region39: #{in_conv_forward.1} parent=31 // pred_region
        %s254 = sadd.s32 %s20, 1
        %s255 = smul.u32 %s254, 8
        %s256 = smul.u32 2, %s255
        %p257 = scmp.lt.s32.totalorder %s19, 1
        %s258 = scalar_select %p257, %s19, 1
        %p259 = scmp.lt.s32.totalorder %s256, 17
        %s260 = scalar_select %p259, %s256, 17
        %s261 = smul.addr %s260, 3
        %s262 = smul.addr %s258, 54
        %s263 = sadd.s32 %s261, %s262
        %s264 = smul.addr %s263, 4
        %s265 = scalar_lea.vmem %s1, %s264
        %s266 = sadd.s32 %s20, 1
        %s267 = smul.u32 %s266, 8
        %s268 = smul.u32 2, %s267
      $region40: #{in_conv_forward.1} parent=31 // pred_fallthru
        _
    $region32: #{in_conv_forward.1} parent=5 // pred_fallthru
      _
    %p269 = scmp.le.s32.totalorder 1, %s12
    %p270 = scmp.lt.s32.totalorder %s12, 3
    %p271 = pnand %p269, %p270
    %p272 = pneg %p271
    // Predicated region
    $region41: #{in_conv_forward.1} parent=5 // pred_check
      _
    $region42: #{in_conv_forward.1} parent=5 // pred_check_branch
      %274 = sbr.rel (%p271) target = $region44
    $region43: #{in_conv_forward.1} parent=5 // pred_region
      %s275 = ssub.s32 %s12, 1
      %s276 = smul.u32 16, %s22
      %s277 = ssub.s32 18, %s276
      %p278 = scmp.lt.s32.totalorder %s277, 16
      %s279 = scalar_select %p278, %s277, 16
      %s280 = smul.u32 64, %s279
      %s281 = smul.u32 %s280, 3
      %p282 = scmp.lt.s32.totalorder %s21, 1
      %s283 = scalar_select %p282, %s21, 1
      %p284 = scmp.lt.s32.totalorder %s276, 17
      %s285 = scalar_select %p284, %s276, 17
      %s286 = smul.addr %s285, 3
      %s287 = smul.addr %s283, 54
      %s288 = sadd.s32 %s286, %s287
      %s289 = smul.addr %s288, 4
      %s290 = scalar_lea.vmem %s0, %s289
      %p291 = pneg %p52
      %p292 = pneg %p49
      %s293 = sadd.s32 %s22, 1
      %s294 = smul.u32 %s293, 8
      %s295 = smul.u32 2, %s294
      %p296 = scmp.lt.s32.totalorder %s21, 1
      %s297 = scalar_select %p296, %s21, 1
      %p298 = scmp.lt.s32.totalorder %s295, 17
      %s299 = scalar_select %p298, %s295, 17
      %s300 = smul.addr %s299, 3
      %s301 = smul.addr %s297, 54
      %s302 = sadd.s32 %s300, %s301
      %s303 = smul.addr %s302, 4
      %s304 = scalar_lea.vmem %s1, %s303
      %p305 = pneg %p84
      %p306 = pneg %p81
      %p307 = pneg %p105
      %p308 = pneg %p102
      %p309 = pneg %p126
      %p310 = pneg %p123
      %p311 = pneg %p147
      %p312 = pneg %p144
      %p313 = pneg %p168
      %p314 = pneg %p165
      %p315 = pneg %p196
      %p316 = pneg %p193
      %s317 = smul.u32 16, %s22
      %p318 = scmp.lt.s32.totalorder %s21, 1
      %s319 = scalar_select %p318, %s21, 1
      %p320 = scmp.lt.s32.totalorder %s317, 15
      %s321 = scalar_select %p320, %s317, 15
      %s322 = smul.addr %s321, 2
      %s323 = smul.addr %s319, 32
      %s324 = sadd.s32 %s322, %s323
      %s325 = smul.addr %s324, 8
      %s326 = scalar_lea.vmem %s6, %s325
      %s327 = smul.u32 16, %s22
      %s328 = ssub.s32 18, %s327
      %p329 = scmp.lt.s32.totalorder %s328, 16
      %s330 = scalar_select %p329, %s328, 16
      %s331 = smul.u32 64, %s330
      %s332 = smul.u32 %s331, 3
      %p333 = scmp.lt.s32.totalorder %s21, 1
      %s334 = scalar_select %p333, %s21, 1
      %p335 = scmp.lt.s32.totalorder %s327, 17
      %s336 = scalar_select %p335, %s327, 17
      %s337 = smul.addr %s336, 3
      %s338 = smul.addr %s334, 54
      %s339 = sadd.s32 %s337, %s338
      %s340 = smul.addr %s339, 4
      %s341 = scalar_lea.vmem %s0, %s340
      %s342 = smul.u32 16, %s22
      %s343 = ssub.s32 18, %s342
      %p344 = scmp.lt.s32.totalorder %s343, 16
      %s345 = scalar_select %p344, %s343, 16
      %s346 = smul.u32 64, %s345
      %s347 = smul.u32 %s346, 3
      %s348 = sadd.s32 %s22, 1
      %s349 = smul.u32 %s348, 8
      %s350 = smul.u32 2, %s349
      %p351 = scmp.lt.s32.totalorder %s21, 1
      %s352 = scalar_select %p351, %s21, 1
      %p353 = scmp.lt.s32.totalorder %s350, 17
      %s354 = scalar_select %p353, %s350, 17
      %s355 = smul.addr %s354, 3
      %s356 = smul.addr %s352, 54
      %s357 = sadd.s32 %s355, %s356
      %s358 = smul.addr %s357, 4
      %s359 = scalar_lea.vmem %s1, %s358
      %s360 = sadd.s32 %s22, 1
      %s361 = smul.u32 %s360, 8
      %s362 = smul.u32 2, %s361
      %s363 = smul.u32 16, %s22
      %p364 = scmp.lt.s32.totalorder %s21, 1
      %s365 = scalar_select %p364, %s21, 1
      %p366 = scmp.lt.s32.totalorder %s363, 15
      %s367 = scalar_select %p366, %s363, 15
      %s368 = smul.addr %s367, 2
      %s369 = smul.addr %s365, 32
      %s370 = sadd.s32 %s368, %s369
      %s371 = smul.addr %s370, 8
      %s372 = scalar_lea.vmem %s6, %s371
      %s373 = smul.u32 16, %s22
      %v375 = vld [vmem:[%s341] sm:$0xf]
      %v376 = vld [vmem:[%s341 + $0x4] sm:$0xf]
      %v377 = vld [vmem:[%s341 + $0x8] sm:$0xf]
      %v378 = vld [vmem:[%s341 + $0xc] sm:$0xf]
      %v379 = vld [vmem:[%s341 + $0x10] sm:$0xf]
      %v380 = vld [vmem:[%s341 + $0x14] sm:$0xf]
      %v381 = vld [vmem:[%s341 + $0x18] sm:$0xf]
      %v382 = vld [vmem:[%s341 + $0x1c] sm:$0xf]
      %v383 = vld [vmem:[%s341 + $0x20] sm:$0xf]
      %v384 = vld [vmem:[%s341 + $0x24] sm:$0xf]
      %v385 = vld [vmem:[%s341 + $0x28] sm:$0xf]
      %v386 = vld [vmem:[%s341 + $0x2c] sm:$0xf]
      %v387 = vld [vmem:[%s341 + $0x30] sm:$0xf]
      %v388 = vld [vmem:[%s341 + $0x34] sm:$0xf]
      %v389 = vld [vmem:[%s341 + $0x38] sm:$0xf]
      %v390 = vld [vmem:[%s341 + $0x3c] sm:$0xf]
      %v391 = vld [vmem:[%s341 + $0x40] sm:$0xf]
      %v392 = vld [vmem:[%s341 + $0x44] sm:$0xf]
      %v393 = vld [vmem:[%s341 + $0x48] sm:$0xf]
      %v394 = vld [vmem:[%s341 + $0x4c] sm:$0xf]
      %v395 = vld [vmem:[%s341 + $0x50] sm:$0xf]
      %v396 = vld [vmem:[%s341 + $0x54] sm:$0xf]
      %v397 = vld [vmem:[%s341 + $0x58] sm:$0xf]
      %v398 = vld [vmem:[%s341 + $0x5c] sm:$0xf]
      %v399 = vld [vmem:[%s341 + $0x60] sm:$0xf]
      %v400 = vld [vmem:[%s341 + $0x64] sm:$0xf]
      %v401 = vld [vmem:[%s341 + $0x68] sm:$0xf]
      %v402 = vld [vmem:[%s341 + $0x6c] sm:$0xf]
      %v403 = vld [vmem:[%s341 + $0x70] sm:$0xf]
      %v404 = vld [vmem:[%s341 + $0x74] sm:$0xf]
      %v405 = vld [vmem:[%s341 + $0x78] sm:$0xf]
      %v406 = vld [vmem:[%s341 + $0x7c] sm:$0xf]
      %v407 = vld [vmem:[%s341 + $0x80] sm:$0xf]
      %v408 = vld [vmem:[%s341 + $0x84] sm:$0xf]
      %v409 = vld [vmem:[%s341 + $0x88] sm:$0xf]
      %v410 = vld [vmem:[%s341 + $0x8c] sm:$0xf]
      %v411 = vld [vmem:[%s341 + $0x90] sm:$0xf]
      %v412 = vld [vmem:[%s341 + $0x94] sm:$0xf]
      %v413 = vld [vmem:[%s341 + $0x98] sm:$0xf]
      %v414 = vld [vmem:[%s341 + $0x9c] sm:$0xf]
      %v415 = vld [vmem:[%s341 + $0xa0] sm:$0xf]
      %v416 = vld [vmem:[%s341 + $0xa4] sm:$0xf]
      %v417 = vld [vmem:[%s341 + $0xa8] sm:$0xf]
      %v418 = vld [vmem:[%s341 + $0xac] sm:$0xf]
      %v419 = vld [vmem:[%s341 + $0xb0] sm:$0xf]
      %v420 = vld [vmem:[%s341 + $0xb4] sm:$0xf]
      %v421 = vld [vmem:[%s341 + $0xb8] sm:$0xf]
      %v422 = vld [vmem:[%s341 + $0xbc] sm:$0xf]
      %v423 = vld [vmem:[%s2] sm:$0xf]
      %v424 = vld [vmem:[%s2 + $0x4] sm:$0xf]
      %v425 = vld [vmem:[%s2 + $0x8] sm:$0xf]
      %v426 = vld [vmem:[%s2 + $0xc] sm:$0xf]
      %v427 = vld [vmem:[%s2 + $0x10] sm:$0x3]
      %v428 = vld [vmem:[%s3] sm:$0x1]
      %v430 = vlaneseq
      %v431 = vshrl.u32 %v430, 7
      %v432 = vsub.s32 0, %v431
      %v433 = vrot.slane %v428, %v432
      %v483 = vunpack.c.l.b16 %v375
      %v484 = vunpack.c.l.b16 %v376
      %v485 = vunpack.c.l.b16 %v377
      %v486 = vunpack.c.l.b16 %v378
      %v487 = vunpack.c.l.b16 %v379
      %v488 = vunpack.c.l.b16 %v380
      %v489 = vunpack.c.l.b16 %v381
      %v490 = vunpack.c.l.b16 %v382
      %v491 = vunpack.c.l.b16 %v383
      %v492 = vunpack.c.l.b16 %v384
      %v493 = vunpack.c.l.b16 %v385
      %v494 = vunpack.c.l.b16 %v386
      %v495 = vunpack.c.l.b16 %v387
      %v496 = vunpack.c.l.b16 %v388
      %v497 = vunpack.c.l.b16 %v389
      %v498 = vunpack.c.l.b16 %v390
      %v499 = vunpack.c.l.b16 %v391
      %v500 = vunpack.c.l.b16 %v392
      %v501 = vunpack.c.l.b16 %v393
      %v502 = vunpack.c.l.b16 %v394
      %v503 = vunpack.c.l.b16 %v395
      %v504 = vunpack.c.l.b16 %v396
      %v505 = vunpack.c.l.b16 %v397
      %v506 = vunpack.c.l.b16 %v398
      %v507 = vunpack.c.l.b16 %v399
      %v508 = vunpack.c.l.b16 %v400
      %v509 = vunpack.c.l.b16 %v401
      %v510 = vunpack.c.l.b16 %v402
      %v511 = vunpack.c.l.b16 %v403
      %v512 = vunpack.c.l.b16 %v404
      %v513 = vunpack.c.l.b16 %v405
      %v514 = vunpack.c.l.b16 %v406
      %v515 = vunpack.c.l.b16 %v407
      %v516 = vunpack.c.l.b16 %v408
      %v517 = vunpack.c.l.b16 %v409
      %v518 = vunpack.c.l.b16 %v410
      %v519 = vunpack.c.l.b16 %v411
      %v520 = vunpack.c.l.b16 %v412
      %v521 = vunpack.c.l.b16 %v413
      %v522 = vunpack.c.l.b16 %v414
      %v523 = vunpack.c.l.b16 %v415
      %v524 = vunpack.c.l.b16 %v416
      %v525 = vunpack.c.l.b16 %v417
      %v526 = vunpack.c.l.b16 %v418
      %v527 = vunpack.c.l.b16 %v419
      %v528 = vunpack.c.l.b16 %v420
      %v529 = vunpack.c.l.b16 %v421
      %v530 = vunpack.c.l.b16 %v422
      %v531 = vpack.c.b16 %v484, %v483
      %v532 = vpack.c.b16 %v486, %v485
      %v533 = vpack.c.b16 %v488, %v487
      %v534 = vpack.c.b16 %v490, %v489
      %v535 = vpack.c.b16 %v492, %v491
      %v536 = vpack.c.b16 %v494, %v493
      %v537 = vpack.c.b16 %v496, %v495
      %v538 = vpack.c.b16 %v498, %v497
      %v539 = vpack.c.b16 %v500, %v499
      %v540 = vpack.c.b16 %v502, %v501
      %v541 = vpack.c.b16 %v504, %v503
      %v542 = vpack.c.b16 %v506, %v505
      %v543 = vpack.c.b16 %v508, %v507
      %v544 = vpack.c.b16 %v510, %v509
      %v545 = vpack.c.b16 %v512, %v511
      %v546 = vpack.c.b16 %v514, %v513
      %v547 = vpack.c.b16 %v516, %v515
      %v548 = vpack.c.b16 %v518, %v517
      %v549 = vpack.c.b16 %v520, %v519
      %v550 = vpack.c.b16 %v522, %v521
      %v551 = vpack.c.b16 %v524, %v523
      %v552 = vpack.c.b16 %v526, %v525
      %v553 = vpack.c.b16 %v528, %v527
      %v554 = vpack.c.b16 %v530, %v529
      %v560 = vunpack.c.l.b16 %v423
      %v561 = vunpack.c.l.b16 %v424
      %v562 = vunpack.c.l.b16 %v425
      %v563 = vunpack.c.l.b16 %v426
      %v564 = vunpack.c.l.b16 %v427
      %v565 = vpack.c.b16 %v561, %v560
      %v566 = vpack.c.b16 %v563, %v562
      %v567 = vpack.c.b16 %v564, %v564
      %vm570 = vcmask 293888
      %v572 = vsel %vm570, %v531, 0
      %v575 = vsel %vm570, %v532, 0
      %v578 = vsel %vm570, %v533, 0
      %v581 = vsel %vm570, %v534, 0
      %v584 = vsel %vm570, %v535, 0
      %v587 = vsel %vm570, %v536, 0
      %v590 = vsel %vm570, %v537, 0
      %v593 = vsel %vm570, %v538, 0
      %v596 = vsel %vm570, %v539, 0
      %v599 = vsel %vm570, %v540, 0
      %v602 = vsel %vm570, %v541, 0
      %v605 = vsel %vm570, %v542, 0
      %v608 = vsel %vm570, %v543, 0
      %v611 = vsel %vm570, %v544, 0
      %v614 = vsel %vm570, %v545, 0
      %v617 = vsel %vm570, %v546, 0
      %v620 = vsel %vm570, %v547, 0
      %v623 = vsel %vm570, %v548, 0
      %v626 = vsel %vm570, %v549, 0
      %v629 = vsel %vm570, %v550, 0
      %v632 = vsel %vm570, %v551, 0
      %v635 = vsel %vm570, %v552, 0
      %v638 = vsel %vm570, %v553, 0
      %v641 = vsel %vm570, %v554, 0
      %vm643 = vcmask 1041408
      %v645 = vsel %vm643, %v567, 0
      %647 = vmatprep.subr.bf16.mxu0 0
      %648 = vmatpush1.bf16.msra.mxu0 %v565
      %649 = vmatprep.subr.bf16.mxu0 0
      %650 = vmatpush1.bf16.msra.mxu0 %v566
      %651 = vmatprep.subr.bf16.mxu0 0
      %652 = vmatpush1.bf16.msra.mxu0 %v645
      %653 = vmatprep.subr.bf16.mxu0 0
      %654 = vmatpush1.bf16.msra.mxu0 0
      %655 = vmatprep.subr.bf16.mxu0 0
      %656 = vmatpush1.bf16.msra.mxu0 0
      %657 = vmatprep.subr.bf16.mxu0 0
      %658 = vmatpush1.bf16.msra.mxu0 0
      %659 = vmatprep.subr.bf16.mxu0 0
      %660 = vmatpush1.bf16.msra.mxu0 0
      %661 = vmatprep.subr.bf16.mxu0 0
      %662 = vmatpush1.bf16.msra.mxu0 0
      %663 = vmatprep.subr.bf16.mxu0 0
      %664 = vmatpush1.bf16.msra.mxu0 0
      %665 = vmatprep.subr.bf16.mxu0 0
      %666 = vmatpush1.bf16.msra.mxu0 0
      %667 = vmatprep.subr.bf16.mxu0 0
      %668 = vmatpush1.bf16.msra.mxu0 0
      %669 = vmatprep.subr.bf16.mxu0 0
      %670 = vmatpush1.bf16.msra.mxu0 0
      %671 = vmatprep.subr.bf16.mxu0 0
      %672 = vmatpush1.bf16.msra.mxu0 0
      %673 = vmatprep.subr.bf16.mxu0 0
      %674 = vmatpush1.bf16.msra.mxu0 0
      %675 = vmatprep.subr.bf16.mxu0 0
      %676 = vmatpush1.bf16.msra.mxu0 0
      %677 = vmatprep.subr.bf16.mxu0 0
      %678 = vmatpush1.bf16.msra.mxu0 0
      %679 = vmatprep.mubr.bf16.mxu0 0
      %680 = vmatmul.mubr.bf16.gmra.mrb[0].mxu0 %v572
      %v681 = vpop.f32.mrb[0].mxu0
      %v682 = vadd.f32 %v433, %v681
      %v683 = vpop.f32.mrb[0].mxu0
      %v684 = vpop.f32.mrb[0].mxu0
      %v685 = vadd.f32 %v433, %v684
      %v686 = vpop.f32.mrb[0].mxu0
      %687 = vmatprep.mubr.bf16.mxu0 0
      %688 = vmatmul.mubr.bf16.gmra.mrb[0].mxu0 %v575
      %v689 = vpop.f32.mrb[0].mxu0
      %v690 = vadd.f32 %v433, %v689
      %v691 = vpop.f32.mrb[0].mxu0
      %v692 = vpop.f32.mrb[0].mxu0
      %v693 = vadd.f32 %v433, %v692
      %v694 = vpop.f32.mrb[0].mxu0
      %695 = vmatprep.mubr.bf16.mxu0 0
      %696 = vmatmul.mubr.bf16.gmra.mrb[0].mxu0 %v578
      %v697 = vpop.f32.mrb[0].mxu0
      %v698 = vadd.f32 %v433, %v697
      %v699 = vpop.f32.mrb[0].mxu0
      %v700 = vpop.f32.mrb[0].mxu0
      %v701 = vadd.f32 %v433, %v700
      %v702 = vpop.f32.mrb[0].mxu0
      %703 = vmatprep.mubr.bf16.mxu0 0
      %704 = vmatmul.mubr.bf16.gmra.mrb[0].mxu0 %v581
      %v705 = vpop.f32.mrb[0].mxu0
      %v706 = vadd.f32 %v433, %v705
      %v707 = vpop.f32.mrb[0].mxu0
      %v708 = vpop.f32.mrb[0].mxu0
      %v709 = vadd.f32 %v433, %v708
      %v710 = vpop.f32.mrb[0].mxu0
      %711 = vmatprep.mubr.bf16.mxu0 0
      %712 = vmatmul.mubr.bf16.gmra.mrb[0].mxu0 %v584
      %v713 = vpop.f32.mrb[0].mxu0
      %v714 = vadd.f32 %v433, %v713
      %v715 = vpop.f32.mrb[0].mxu0
      %v716 = vpop.f32.mrb[0].mxu0
      %v717 = vadd.f32 %v433, %v716
      %v718 = vpop.f32.mrb[0].mxu0
      %719 = vmatprep.mubr.bf16.mxu0 0
      %720 = vmatmul.mubr.bf16.gmra.mrb[0].mxu0 %v587
      %v721 = vpop.f32.mrb[0].mxu0
      %v722 = vadd.f32 %v433, %v721
      %v723 = vpop.f32.mrb[0].mxu0
      %v724 = vpop.f32.mrb[0].mxu0
      %v725 = vadd.f32 %v433, %v724
      %v726 = vpop.f32.mrb[0].mxu0
      %727 = vmatprep.mubr.bf16.mxu0 0
      %728 = vmatmul.mubr.bf16.gmra.mrb[0].mxu0 %v590
      %v729 = vpop.f32.mrb[0].mxu0
      %v730 = vadd.f32 %v433, %v729
      %v731 = vpop.f32.mrb[0].mxu0
      %v732 = vpop.f32.mrb[0].mxu0
      %v733 = vadd.f32 %v433, %v732
      %v734 = vpop.f32.mrb[0].mxu0
      %735 = vmatprep.mubr.bf16.mxu0 0
      %736 = vmatmul.mubr.bf16.gmra.mrb[0].mxu0 %v593
      %v737 = vpop.f32.mrb[0].mxu0
      %v738 = vadd.f32 %v433, %v737
      %v739 = vpop.f32.mrb[0].mxu0
      %v740 = vpop.f32.mrb[0].mxu0
      %v741 = vadd.f32 %v433, %v740
      %v742 = vpop.f32.mrb[0].mxu0
      %743 = vmatprep.mubr.bf16.mxu0 0
      %744 = vmatmul.mubr.bf16.gmra.mrb[0].mxu0 %v596
      %v745 = vpop.f32.mrb[0].mxu0
      %v746 = vadd.f32 %v433, %v745
      %v747 = vpop.f32.mrb[0].mxu0
      %v748 = vpop.f32.mrb[0].mxu0
      %v749 = vadd.f32 %v433, %v748
      %v750 = vpop.f32.mrb[0].mxu0
      %751 = vmatprep.mubr.bf16.mxu0 0
      %752 = vmatmul.mubr.bf16.gmra.mrb[0].mxu0 %v599
      %v753 = vpop.f32.mrb[0].mxu0
      %v754 = vadd.f32 %v433, %v753
      %v755 = vpop.f32.mrb[0].mxu0
      %v756 = vpop.f32.mrb[0].mxu0
      %v757 = vadd.f32 %v433, %v756
      %v758 = vpop.f32.mrb[0].mxu0
      %759 = vmatprep.mubr.bf16.mxu0 0
      %760 = vmatmul.mubr.bf16.gmra.mrb[0].mxu0 %v602
      %v761 = vpop.f32.mrb[0].mxu0
      %v762 = vadd.f32 %v433, %v761
      %v763 = vpop.f32.mrb[0].mxu0
      %v764 = vpop.f32.mrb[0].mxu0
      %v765 = vadd.f32 %v433, %v764
      %v766 = vpop.f32.mrb[0].mxu0
      %767 = vmatprep.mubr.bf16.mxu0 0
      %768 = vmatmul.mubr.bf16.gmra.mrb[0].mxu0 %v605
      %v769 = vpop.f32.mrb[0].mxu0
      %v770 = vadd.f32 %v433, %v769
      %v771 = vpop.f32.mrb[0].mxu0
      %v772 = vpop.f32.mrb[0].mxu0
      %v773 = vadd.f32 %v433, %v772
      %v774 = vpop.f32.mrb[0].mxu0
      %775 = vmatprep.mubr.bf16.mxu0 0
      %776 = vmatmul.mubr.bf16.gmra.mrb[0].mxu0 %v608
      %v777 = vpop.f32.mrb[0].mxu0
      %v778 = vadd.f32 %v433, %v777
      %v779 = vpop.f32.mrb[0].mxu0
      %v780 = vpop.f32.mrb[0].mxu0
      %v781 = vadd.f32 %v433, %v780
      %v782 = vpop.f32.mrb[0].mxu0
      %783 = vmatprep.mubr.bf16.mxu0 0
      %784 = vmatmul.mubr.bf16.gmra.mrb[0].mxu0 %v611
      %v785 = vpop.f32.mrb[0].mxu0
      %v786 = vadd.f32 %v433, %v785
      %v787 = vpop.f32.mrb[0].mxu0
      %v788 = vpop.f32.mrb[0].mxu0
      %v789 = vadd.f32 %v433, %v788
      %v790 = vpop.f32.mrb[0].mxu0
      %791 = vmatprep.mubr.bf16.mxu0 0
      %792 = vmatmul.mubr.bf16.gmra.mrb[0].mxu0 %v614
      %v793 = vpop.f32.mrb[0].mxu0
      %v794 = vadd.f32 %v433, %v793
      %v795 = vpop.f32.mrb[0].mxu0
      %v796 = vpop.f32.mrb[0].mxu0
      %v797 = vadd.f32 %v433, %v796
      %v798 = vpop.f32.mrb[0].mxu0
      %799 = vmatprep.mubr.bf16.mxu0 0
      %800 = vmatmul.mubr.bf16.gmra.mrb[0].mxu0 %v617
      %v801 = vpop.f32.mrb[0].mxu0
      %v802 = vadd.f32 %v433, %v801
      %v803 = vpop.f32.mrb[0].mxu0
      %v804 = vpop.f32.mrb[0].mxu0
      %v805 = vadd.f32 %v433, %v804
      %v806 = vpop.f32.mrb[0].mxu0
      %807 = vmatprep.mubr.bf16.mxu0 0
      %808 = vmatmul.mubr.bf16.gmra.mrb[0].mxu0 %v620
      %v809 = vpop.f32.mrb[0].mxu0
      %v810 = vadd.f32 %v433, %v809
      %v811 = vpop.f32.mrb[0].mxu0
      %v812 = vpop.f32.mrb[0].mxu0
      %v813 = vadd.f32 %v433, %v812
      %v814 = vpop.f32.mrb[0].mxu0
      %815 = vmatprep.mubr.bf16.mxu0 0
      %816 = vmatmul.mubr.bf16.gmra.mrb[0].mxu0 %v623
      %v817 = vpop.f32.mrb[0].mxu0
      %v818 = vadd.f32 %v433, %v817
      %v819 = vpop.f32.mrb[0].mxu0
      %v820 = vpop.f32.mrb[0].mxu0
      %v821 = vadd.f32 %v433, %v820
      %v822 = vpop.f32.mrb[0].mxu0
      %823 = vmatprep.mubr.bf16.mxu0 0
      %824 = vmatmul.mubr.bf16.gmra.mrb[0].mxu0 %v626
      %v825 = vpop.f32.mrb[0].mxu0
      %v826 = vadd.f32 %v433, %v825
      %v827 = vpop.f32.mrb[0].mxu0
      %v828 = vpop.f32.mrb[0].mxu0
      %v829 = vadd.f32 %v433, %v828
      %v830 = vpop.f32.mrb[0].mxu0
      %831 = vmatprep.mubr.bf16.mxu0 0
      %832 = vmatmul.mubr.bf16.gmra.mrb[0].mxu0 %v629
      %v833 = vpop.f32.mrb[0].mxu0
      %v834 = vadd.f32 %v433, %v833
      %v835 = vpop.f32.mrb[0].mxu0
      %v836 = vpop.f32.mrb[0].mxu0
      %v837 = vadd.f32 %v433, %v836
      %v838 = vpop.f32.mrb[0].mxu0
      %839 = vmatprep.mubr.bf16.mxu0 0
      %840 = vmatmul.mubr.bf16.gmra.mrb[0].mxu0 %v632
      %v841 = vpop.f32.mrb[0].mxu0
      %v842 = vadd.f32 %v433, %v841
      %v843 = vpop.f32.mrb[0].mxu0
      %v844 = vpop.f32.mrb[0].mxu0
      %v845 = vadd.f32 %v433, %v844
      %v846 = vpop.f32.mrb[0].mxu0
      %847 = vmatprep.mubr.bf16.mxu0 0
      %848 = vmatmul.mubr.bf16.gmra.mrb[0].mxu0 %v635
      %v849 = vpop.f32.mrb[0].mxu0
      %v850 = vadd.f32 %v433, %v849
      %v851 = vpop.f32.mrb[0].mxu0
      %v852 = vpop.f32.mrb[0].mxu0
      %v853 = vadd.f32 %v433, %v852
      %v854 = vpop.f32.mrb[0].mxu0
      %855 = vmatprep.mubr.bf16.mxu0 0
      %856 = vmatmul.mubr.bf16.gmra.mrb[0].mxu0 %v638
      %v857 = vpop.f32.mrb[0].mxu0
      %v858 = vadd.f32 %v433, %v857
      %v859 = vpop.f32.mrb[0].mxu0
      %v860 = vpop.f32.mrb[0].mxu0
      %v861 = vadd.f32 %v433, %v860
      %v862 = vpop.f32.mrb[0].mxu0
      %863 = vmatprep.mubr.bf16.mxu0 0
      %864 = vmatmul.mubr.bf16.gmra.mrb[0].mxu0 %v641
      %v865 = vpop.f32.mrb[0].mxu0
      %v866 = vadd.f32 %v433, %v865
      %v867 = vpop.f32.mrb[0].mxu0
      %v868 = vpop.f32.mrb[0].mxu0
      %v869 = vadd.f32 %v433, %v868
      %v870 = vpop.f32.mrb[0].mxu0
      %871 = vdwg.mxu0
      %v872 = vmax.f32 %v682, 0.0
      %v873 = vmax.f32 %v685, 0.0
      %v874 = vmax.f32 %v690, 0.0
      %v875 = vmax.f32 %v693, 0.0
      %v876 = vmax.f32 %v698, 0.0
      %v877 = vmax.f32 %v701, 0.0
      %v878 = vmax.f32 %v706, 0.0
      %v879 = vmax.f32 %v709, 0.0
      %v880 = vmax.f32 %v714, 0.0
      %v881 = vmax.f32 %v717, 0.0
      %v882 = vmax.f32 %v722, 0.0
      %v883 = vmax.f32 %v725, 0.0
      %v884 = vmax.f32 %v730, 0.0
      %v885 = vmax.f32 %v733, 0.0
      %v886 = vmax.f32 %v738, 0.0
      %v887 = vmax.f32 %v741, 0.0
      %v888 = vmax.f32 %v746, 0.0
      %v889 = vmax.f32 %v749, 0.0
      %v890 = vmax.f32 %v754, 0.0
      %v891 = vmax.f32 %v757, 0.0
      %v892 = vmax.f32 %v762, 0.0
      %v893 = vmax.f32 %v765, 0.0
      %v894 = vmax.f32 %v770, 0.0
      %v895 = vmax.f32 %v773, 0.0
      %v896 = vmax.f32 %v778, 0.0
      %v897 = vmax.f32 %v781, 0.0
      %v898 = vmax.f32 %v786, 0.0
      %v899 = vmax.f32 %v789, 0.0
      %v900 = vmax.f32 %v794, 0.0
      %v901 = vmax.f32 %v797, 0.0
      %v902 = vmax.f32 %v802, 0.0
      %v903 = vmax.f32 %v805, 0.0
      %v904 = vmax.f32 %v810, 0.0
      %v905 = vmax.f32 %v813, 0.0
      %v906 = vmax.f32 %v818, 0.0
      %v907 = vmax.f32 %v821, 0.0
      %v908 = vmax.f32 %v826, 0.0
      %v909 = vmax.f32 %v829, 0.0
      %v910 = vmax.f32 %v834, 0.0
      %v911 = vmax.f32 %v837, 0.0
      %v912 = vmax.f32 %v842, 0.0
      %v913 = vmax.f32 %v845, 0.0
      %v914 = vmax.f32 %v850, 0.0
      %v915 = vmax.f32 %v853, 0.0
      %v916 = vmax.f32 %v858, 0.0
      %v917 = vmax.f32 %v861, 0.0
      %v918 = vmax.f32 %v866, 0.0
      %v919 = vmax.f32 %v869, 0.0
      %v920 = vpack.c.bf16 %v873, %v872
      %v921 = vpack.c.bf16 %v875, %v874
      %v922 = vpack.c.bf16 %v877, %v876
      %v923 = vpack.c.bf16 %v879, %v878
      %v924 = vpack.c.bf16 %v881, %v880
      %v925 = vpack.c.bf16 %v883, %v882
      %v926 = vpack.c.bf16 %v885, %v884
      %v927 = vpack.c.bf16 %v887, %v886
      %v928 = vpack.c.bf16 %v889, %v888
      %v929 = vpack.c.bf16 %v891, %v890
      %v930 = vpack.c.bf16 %v893, %v892
      %v931 = vpack.c.bf16 %v895, %v894
      %v932 = vpack.c.bf16 %v897, %v896
      %v933 = vpack.c.bf16 %v899, %v898
      %v934 = vpack.c.bf16 %v901, %v900
      %v935 = vpack.c.bf16 %v903, %v902
      %v936 = vpack.c.bf16 %v905, %v904
      %v937 = vpack.c.bf16 %v907, %v906
      %v938 = vpack.c.bf16 %v909, %v908
      %v939 = vpack.c.bf16 %v911, %v910
      %v940 = vpack.c.bf16 %v913, %v912
      %v941 = vpack.c.bf16 %v915, %v914
      %v942 = vpack.c.bf16 %v917, %v916
      %v943 = vpack.c.bf16 %v919, %v918
      %v968 = vunpack.c.l.b16 %v920
      %v969 = vunpack.c.h.b16 %v920
      %v970 = vunpack.c.l.b16 %v921
      %v971 = vunpack.c.h.b16 %v921
      %v972 = vunpack.c.l.b16 %v922
      %v973 = vunpack.c.h.b16 %v922
      %v974 = vunpack.c.l.b16 %v923
      %v975 = vunpack.c.h.b16 %v923
      %v976 = vunpack.c.l.b16 %v924
      %v977 = vunpack.c.h.b16 %v924
      %v978 = vunpack.c.l.b16 %v925
      %v979 = vunpack.c.h.b16 %v925
      %v980 = vunpack.c.l.b16 %v926
      %v981 = vunpack.c.h.b16 %v926
      %v982 = vunpack.c.l.b16 %v927
      %v983 = vunpack.c.h.b16 %v927
      %v984 = vunpack.c.l.b16 %v928
      %v985 = vunpack.c.h.b16 %v928
      %v986 = vunpack.c.l.b16 %v929
      %v987 = vunpack.c.h.b16 %v929
      %v988 = vunpack.c.l.b16 %v930
      %v989 = vunpack.c.h.b16 %v930
      %v990 = vunpack.c.l.b16 %v931
      %v991 = vunpack.c.h.b16 %v931
      %v992 = vunpack.c.l.b16 %v932
      %v993 = vunpack.c.h.b16 %v932
      %v994 = vunpack.c.l.b16 %v933
      %v995 = vunpack.c.h.b16 %v933
      %v996 = vunpack.c.l.b16 %v934
      %v997 = vunpack.c.h.b16 %v934
      %v998 = vunpack.c.l.b16 %v935
      %v999 = vunpack.c.h.b16 %v935
      %v1000 = vunpack.c.l.b16 %v936
      %v1001 = vunpack.c.h.b16 %v936
      %v1002 = vunpack.c.l.b16 %v937
      %v1003 = vunpack.c.h.b16 %v937
      %v1004 = vunpack.c.l.b16 %v938
      %v1005 = vunpack.c.h.b16 %v938
      %v1006 = vunpack.c.l.b16 %v939
      %v1007 = vunpack.c.h.b16 %v939
      %v1008 = vunpack.c.l.b16 %v940
      %v1009 = vunpack.c.h.b16 %v940
      %v1010 = vunpack.c.l.b16 %v941
      %v1011 = vunpack.c.h.b16 %v941
      %v1012 = vunpack.c.l.b16 %v942
      %v1013 = vunpack.c.h.b16 %v942
      %v1014 = vunpack.c.l.b16 %v943
      %v1015 = vunpack.c.h.b16 %v943
      %v1016 = vpack.c.b16 %v968, %v968
      %v1017 = vpack.c.b16 %v969, %v969
      %v1018 = vpack.c.b16 %v970, %v970
      %v1019 = vpack.c.b16 %v971, %v971
      %v1020 = vpack.c.b16 %v972, %v972
      %v1021 = vpack.c.b16 %v973, %v973
      %v1022 = vpack.c.b16 %v974, %v974
      %v1023 = vpack.c.b16 %v975, %v975
      %v1024 = vpack.c.b16 %v976, %v976
      %v1025 = vpack.c.b16 %v977, %v977
      %v1026 = vpack.c.b16 %v978, %v978
      %v1027 = vpack.c.b16 %v979, %v979
      %v1028 = vpack.c.b16 %v980, %v980
      %v1029 = vpack.c.b16 %v981, %v981
      %v1030 = vpack.c.b16 %v982, %v982
      %v1031 = vpack.c.b16 %v983, %v983
      %v1032 = vpack.c.b16 %v984, %v984
      %v1033 = vpack.c.b16 %v985, %v985
      %v1034 = vpack.c.b16 %v986, %v986
      %v1035 = vpack.c.b16 %v987, %v987
      %v1036 = vpack.c.b16 %v988, %v988
      %v1037 = vpack.c.b16 %v989, %v989
      %v1038 = vpack.c.b16 %v990, %v990
      %v1039 = vpack.c.b16 %v991, %v991
      %v1040 = vpack.c.b16 %v992, %v992
      %v1041 = vpack.c.b16 %v993, %v993
      %v1042 = vpack.c.b16 %v994, %v994
      %v1043 = vpack.c.b16 %v995, %v995
      %v1044 = vpack.c.b16 %v996, %v996
      %v1045 = vpack.c.b16 %v997, %v997
      %v1046 = vpack.c.b16 %v998, %v998
      %v1047 = vpack.c.b16 %v999, %v999
      %v1048 = vpack.c.b16 %v1000, %v1000
      %v1049 = vpack.c.b16 %v1001, %v1001
      %v1050 = vpack.c.b16 %v1002, %v1002
      %v1051 = vpack.c.b16 %v1003, %v1003
      %v1052 = vpack.c.b16 %v1004, %v1004
      %v1053 = vpack.c.b16 %v1005, %v1005
      %v1054 = vpack.c.b16 %v1006, %v1006
      %v1055 = vpack.c.b16 %v1007, %v1007
      %v1056 = vpack.c.b16 %v1008, %v1008
      %v1057 = vpack.c.b16 %v1009, %v1009
      %v1058 = vpack.c.b16 %v1010, %v1010
      %v1059 = vpack.c.b16 %v1011, %v1011
      %v1060 = vpack.c.b16 %v1012, %v1012
      %v1061 = vpack.c.b16 %v1013, %v1013
      %v1062 = vpack.c.b16 %v1014, %v1014
      %v1063 = vpack.c.b16 %v1015, %v1015
      %1112 = vst [vmem:[#allocation2] sm:$0xf] %v1016
      %1113 = vst [vmem:[#allocation2 + $0x4] sm:$0xf] %v1017
      %1114 = vst [vmem:[#allocation2 + $0x8] sm:$0xf] %v1018
      %1115 = vst [vmem:[#allocation2 + $0xc] sm:$0xf] %v1019
      %1116 = vst [vmem:[#allocation2 + $0x10] sm:$0xf] %v1020
      %1117 = vst [vmem:[#allocation2 + $0x14] sm:$0xf] %v1021
      %1118 = vst [vmem:[#allocation2 + $0x18] sm:$0xf] %v1022
      %1119 = vst [vmem:[#allocation2 + $0x1c] sm:$0xf] %v1023
      %1120 = vst [vmem:[#allocation2 + $0x20] sm:$0xf] %v1024
      %1121 = vst [vmem:[#allocation2 + $0x24] sm:$0xf] %v1025
      %1122 = vst [vmem:[#allocation2 + $0x28] sm:$0xf] %v1026
      %1123 = vst [vmem:[#allocation2 + $0x2c] sm:$0xf] %v1027
      %1124 = vst [vmem:[#allocation2 + $0x30] sm:$0xf] %v1028
      %1125 = vst [vmem:[#allocation2 + $0x34] sm:$0xf] %v1029
      %1126 = vst [vmem:[#allocation2 + $0x38] sm:$0xf] %v1030
      %1127 = vst [vmem:[#allocation2 + $0x3c] sm:$0xf] %v1031
      %1128 = vst [vmem:[#allocation2 + $0x40] sm:$0xf] %v1032
      %1129 = vst [vmem:[#allocation2 + $0x44] sm:$0xf] %v1033
      %1130 = vst [vmem:[#allocation2 + $0x48] sm:$0xf] %v1034
      %1131 = vst [vmem:[#allocation2 + $0x4c] sm:$0xf] %v1035
      %1132 = vst [vmem:[#allocation2 + $0x50] sm:$0xf] %v1036
      %1133 = vst [vmem:[#allocation2 + $0x54] sm:$0xf] %v1037
      %1134 = vst [vmem:[#allocation2 + $0x58] sm:$0xf] %v1038
      %1135 = vst [vmem:[#allocation2 + $0x5c] sm:$0xf] %v1039
      %1136 = vst [vmem:[#allocation2 + $0x60] sm:$0xf] %v1040
      %1137 = vst [vmem:[#allocation2 + $0x64] sm:$0xf] %v1041
      %1138 = vst [vmem:[#allocation2 + $0x68] sm:$0xf] %v1042
      %1139 = vst [vmem:[#allocation2 + $0x6c] sm:$0xf] %v1043
      %1140 = vst [vmem:[#allocation2 + $0x70] sm:$0xf] %v1044
      %1141 = vst [vmem:[#allocation2 + $0x74] sm:$0xf] %v1045
      %1142 = vst [vmem:[#allocation2 + $0x78] sm:$0xf] %v1046
      %1143 = vst [vmem:[#allocation2 + $0x7c] sm:$0xf] %v1047
      %1144 = vst [vmem:[#allocation2 + $0x80] sm:$0xf] %v1048
      %1145 = vst [vmem:[#allocation2 + $0x84] sm:$0xf] %v1049
      %1146 = vst [vmem:[#allocation2 + $0x88] sm:$0xf] %v1050
      %1147 = vst [vmem:[#allocation2 + $0x8c] sm:$0xf] %v1051
      %1148 = vst [vmem:[#allocation2 + $0x90] sm:$0xf] %v1052
      %1149 = vst [vmem:[#allocation2 + $0x94] sm:$0xf] %v1053
      %1150 = vst [vmem:[#allocation2 + $0x98] sm:$0xf] %v1054
      %1151 = vst [vmem:[#allocation2 + $0x9c] sm:$0xf] %v1055
      %1152 = vst [vmem:[#allocation2 + $0xa0] sm:$0xf] %v1056
      %1153 = vst [vmem:[#allocation2 + $0xa4] sm:$0xf] %v1057
      %1154 = vst [vmem:[#allocation2 + $0xa8] sm:$0xf] %v1058
      %1155 = vst [vmem:[#allocation2 + $0xac] sm:$0xf] %v1059
      %1156 = vst [vmem:[#allocation2 + $0xb0] sm:$0xf] %v1060
      %1157 = vst [vmem:[#allocation2 + $0xb4] sm:$0xf] %v1061
      %1158 = vst [vmem:[#allocation2 + $0xb8] sm:$0xf] %v1062
      %1159 = vst [vmem:[#allocation2 + $0xbc] sm:$0xf] %v1063
      %v1160 = vld [vmem:[%s359] sm:$0xf]
      %v1161 = vld [vmem:[%s359 + $0x4] sm:$0xf]
      %v1162 = vld [vmem:[%s359 + $0x8] sm:$0xf]
      %v1163 = vld [vmem:[%s359 + $0xc] sm:$0xf]
      %v1164 = vld [vmem:[%s359 + $0x10] sm:$0xf]
      %v1165 = vld [vmem:[%s359 + $0x14] sm:$0xf]
      %v1166 = vld [vmem:[%s2] sm:$0xf]
      %v1167 = vld [vmem:[%s2 + $0x4] sm:$0xf]
      %v1168 = vld [vmem:[%s2 + $0x8] sm:$0xf]
      %v1169 = vld [vmem:[%s2 + $0xc] sm:$0xf]
      %v1170 = vld [vmem:[%s2 + $0x10] sm:$0x3]
      %v1171 = vld [vmem:[%s3] sm:$0x1]
      %v1173 = vlaneseq
      %v1174 = vshrl.u32 %v1173, 7
      %v1175 = vsub.s32 0, %v1174
      %v1176 = vrot.slane %v1171, %v1175
      %v1184 = vunpack.c.l.b16 %v1160
      %v1185 = vunpack.c.l.b16 %v1161
      %v1186 = vunpack.c.l.b16 %v1162
      %v1187 = vunpack.c.l.b16 %v1163
      %v1188 = vunpack.c.l.b16 %v1164
      %v1189 = vunpack.c.l.b16 %v1165
      %v1190 = vpack.c.b16 %v1185, %v1184
      %v1191 = vpack.c.b16 %v1187, %v1186
      %v1192 = vpack.c.b16 %v1189, %v1188
      %v1198 = vunpack.c.l.b16 %v1166
      %v1199 = vunpack.c.l.b16 %v1167
      %v1200 = vunpack.c.l.b16 %v1168
      %v1201 = vunpack.c.l.b16 %v1169
      %v1202 = vunpack.c.l.b16 %v1170
      %v1203 = vpack.c.b16 %v1199, %v1198
      %v1204 = vpack.c.b16 %v1201, %v1200
      %v1205 = vpack.c.b16 %v1202, %v1202
      %v1209 = vsel %vm570, %v1190, 0
      %v1212 = vsel %vm570, %v1191, 0
      %v1215 = vsel %vm570, %v1192, 0
      %v1218 = vsel %vm643, %v1205, 0
      %1220 = vmatprep.subr.bf16.mxu0 0
      %1221 = vmatpush1.bf16.msra.mxu0 %v1203
      %1222 = vmatprep.subr.bf16.mxu0 0
      %1223 = vmatpush1.bf16.msra.mxu0 %v1204
      %1224 = vmatprep.subr.bf16.mxu0 0
      %1225 = vmatpush1.bf16.msra.mxu0 %v1218
      %1226 = vmatprep.subr.bf16.mxu0 0
      %1227 = vmatpush1.bf16.msra.mxu0 0
      %1228 = vmatprep.subr.bf16.mxu0 0
      %1229 = vmatpush1.bf16.msra.mxu0 0
      %1230 = vmatprep.subr.bf16.mxu0 0
      %1231 = vmatpush1.bf16.msra.mxu0 0
      %1232 = vmatprep.subr.bf16.mxu0 0
      %1233 = vmatpush1.bf16.msra.mxu0 0
      %1234 = vmatprep.subr.bf16.mxu0 0
      %1235 = vmatpush1.bf16.msra.mxu0 0
      %1236 = vmatprep.subr.bf16.mxu0 0
      %1237 = vmatpush1.bf16.msra.mxu0 0
      %1238 = vmatprep.subr.bf16.mxu0 0
      %1239 = vmatpush1.bf16.msra.mxu0 0
      %1240 = vmatprep.subr.bf16.mxu0 0
      %1241 = vmatpush1.bf16.msra.mxu0 0
      %1242 = vmatprep.subr.bf16.mxu0 0
      %1243 = vmatpush1.bf16.msra.mxu0 0
      %1244 = vmatprep.subr.bf16.mxu0 0
      %1245 = vmatpush1.bf16.msra.mxu0 0
      %1246 = vmatprep.subr.bf16.mxu0 0
      %1247 = vmatpush1.bf16.msra.mxu0 0
      %1248 = vmatprep.subr.bf16.mxu0 0
      %1249 = vmatpush1.bf16.msra.mxu0 0
      %1250 = vmatprep.subr.bf16.mxu0 0
      %1251 = vmatpush1.bf16.msra.mxu0 0
      %1252 = vmatprep.mubr.bf16.mxu0 0
      %1253 = vmatmul.mubr.bf16.gmra.mrb[0].mxu0 %v1209
      %v1254 = vpop.f32.mrb[0].mxu0
      %v1255 = vadd.f32 %v1176, %v1254
      %v1256 = vpop.f32.mrb[0].mxu0
      %v1257 = vpop.f32.mrb[0].mxu0
      %v1258 = vadd.f32 %v1176, %v1257
      %v1259 = vpop.f32.mrb[0].mxu0
      %1260 = vmatprep.mubr.bf16.mxu0 0
      %1261 = vmatmul.mubr.bf16.gmra.mrb[0].mxu0 %v1212
      %v1262 = vpop.f32.mrb[0].mxu0
      %v1263 = vadd.f32 %v1176, %v1262
      %v1264 = vpop.f32.mrb[0].mxu0
      %v1265 = vpop.f32.mrb[0].mxu0
      %v1266 = vadd.f32 %v1176, %v1265
      %v1267 = vpop.f32.mrb[0].mxu0
      %1268 = vmatprep.mubr.bf16.mxu0 0
      %1269 = vmatmul.mubr.bf16.gmra.mrb[0].mxu0 %v1215
      %v1270 = vpop.f32.mrb[0].mxu0
      %v1271 = vadd.f32 %v1176, %v1270
      %v1272 = vpop.f32.mrb[0].mxu0
      %v1273 = vpop.f32.mrb[0].mxu0
      %v1274 = vadd.f32 %v1176, %v1273
      %v1275 = vpop.f32.mrb[0].mxu0
      %1276 = vdwg.mxu0
      %v1277 = vmax.f32 %v1255, 0.0
      %v1278 = vmax.f32 %v1258, 0.0
      %v1279 = vmax.f32 %v1263, 0.0
      %v1280 = vmax.f32 %v1266, 0.0
      %v1281 = vmax.f32 %v1271, 0.0
      %v1282 = vmax.f32 %v1274, 0.0
      %v1283 = vpack.c.bf16 %v1278, %v1277
      %v1284 = vpack.c.bf16 %v1280, %v1279
      %v1285 = vpack.c.bf16 %v1282, %v1281
      %v1289 = vunpack.c.l.b16 %v1283
      %v1290 = vunpack.c.h.b16 %v1283
      %v1291 = vunpack.c.l.b16 %v1284
      %v1292 = vunpack.c.h.b16 %v1284
      %v1293 = vunpack.c.l.b16 %v1285
      %v1294 = vunpack.c.h.b16 %v1285
      %v1295 = vpack.c.b16 %v1289, %v1289
      %v1296 = vpack.c.b16 %v1290, %v1290
      %v1297 = vpack.c.b16 %v1291, %v1291
      %v1298 = vpack.c.b16 %v1292, %v1292
      %v1299 = vpack.c.b16 %v1293, %v1293
      %v1300 = vpack.c.b16 %v1294, %v1294
      %s1307 = scalar_lea.vmem [#allocation2], 192
      %1308 = vst [vmem:[%s1307] sm:$0xf] %v1295
      %1309 = vst [vmem:[%s1307 + $0x4] sm:$0xf] %v1296
      %1310 = vst [vmem:[%s1307 + $0x8] sm:$0xf] %v1297
      %1311 = vst [vmem:[%s1307 + $0xc] sm:$0xf] %v1298
      %1312 = vst [vmem:[%s1307 + $0x10] sm:$0xf] %v1299
      %1313 = vst [vmem:[%s1307 + $0x14] sm:$0xf] %v1300
      %s1314 = smul.u32 %s22, 16
      %v1315 = vstv %s1314
      %v1316 = vadd.s32 %v1315, 2
      %v1317 = vadd.s32 %v1315, 3
      %v1318 = vadd.s32 %v1315, 4
      %v1319 = vadd.s32 %v1315, 5
      %v1320 = vadd.s32 %v1315, 6
      %v1321 = vadd.s32 %v1315, 7
      %v1322 = vadd.s32 %v1315, 8
      %v1323 = vadd.s32 %v1315, 9
      %v1324 = vadd.s32 %v1315, 10
      %v1325 = vadd.s32 %v1315, 11
      %v1326 = vadd.s32 %v1315, 12
      %v1327 = vadd.s32 %v1315, 13
      %v1328 = vadd.s32 %v1315, 14
      %v1329 = vadd.s32 %v1315, 15
      %v1330 = vadd.s32 %v1315, 16
      %v1331 = vadd.s32 %v1315, 17
      %v1332 = vsub.s32 %v1315, 1
      %v1333 = vsub.s32 %v1316, 1
      %v1334 = vsub.s32 %v1317, 1
      %v1335 = vsub.s32 %v1318, 1
      %v1336 = vsub.s32 %v1319, 1
      %v1337 = vsub.s32 %v1320, 1
      %v1338 = vsub.s32 %v1321, 1
      %v1339 = vsub.s32 %v1322, 1
      %v1340 = vsub.s32 %v1323, 1
      %v1341 = vsub.s32 %v1324, 1
      %v1342 = vsub.s32 %v1325, 1
      %v1343 = vsub.s32 %v1326, 1
      %v1344 = vsub.s32 %v1327, 1
      %v1345 = vsub.s32 %v1328, 1
      %v1346 = vsub.s32 %v1329, 1
      %v1347 = vsub.s32 %v1330, 1
      %v1348 = vsub.s32 %v1331, 1
      %v1349 = vlaneseq
      %v1350 = vshrl.u32 %v1349, 7
      %v1351 = vadd.s32 %v1350, 8
      %v1352 = vadd.s32 %v1350, 16
      %v1353 = vsub.s32 %v1350, 1
      %v1354 = vsub.s32 %v1351, 1
      %v1355 = vsub.s32 %v1352, 1
      %vm1356 = vcmp.ge.s32.totalorder %v1332, 0
      %vm1357 = vcmp.ge.s32.totalorder %v1315, 0
      %vm1358 = vcmp.ge.s32.totalorder %v1333, 0
      %vm1359 = vcmp.ge.s32.totalorder %v1334, 0
      %vm1360 = vcmp.ge.s32.totalorder %v1335, 0
      %vm1361 = vcmp.ge.s32.totalorder %v1336, 0
      %vm1362 = vcmp.ge.s32.totalorder %v1337, 0
      %vm1363 = vcmp.ge.s32.totalorder %v1338, 0
      %vm1364 = vcmp.ge.s32.totalorder %v1339, 0
      %vm1365 = vcmp.ge.s32.totalorder %v1340, 0
      %vm1366 = vcmp.ge.s32.totalorder %v1341, 0
      %vm1367 = vcmp.ge.s32.totalorder %v1342, 0
      %vm1368 = vcmp.ge.s32.totalorder %v1343, 0
      %vm1369 = vcmp.ge.s32.totalorder %v1344, 0
      %vm1370 = vcmp.ge.s32.totalorder %v1345, 0
      %vm1371 = vcmp.ge.s32.totalorder %v1346, 0
      %vm1372 = vcmp.ge.s32.totalorder %v1347, 0
      %vm1373 = vcmp.ge.s32.totalorder %v1348, 0
      %vm1374 = vcmp.lt.s32.totalorder %v1332, 16
      %vm1375 = vcmp.lt.s32.totalorder %v1315, 16
      %vm1376 = vcmp.lt.s32.totalorder %v1333, 16
      %vm1377 = vcmp.lt.s32.totalorder %v1334, 16
      %vm1378 = vcmp.lt.s32.totalorder %v1335, 16
      %vm1379 = vcmp.lt.s32.totalorder %v1336, 16
      %vm1380 = vcmp.lt.s32.totalorder %v1337, 16
      %vm1381 = vcmp.lt.s32.totalorder %v1338, 16
      %vm1382 = vcmp.lt.s32.totalorder %v1339, 16
      %vm1383 = vcmp.lt.s32.totalorder %v1340, 16
      %vm1384 = vcmp.lt.s32.totalorder %v1341, 16
      %vm1385 = vcmp.lt.s32.totalorder %v1342, 16
      %vm1386 = vcmp.lt.s32.totalorder %v1343, 16
      %vm1387 = vcmp.lt.s32.totalorder %v1344, 16
      %vm1388 = vcmp.lt.s32.totalorder %v1345, 16
      %vm1389 = vcmp.lt.s32.totalorder %v1346, 16
      %vm1390 = vcmp.lt.s32.totalorder %v1347, 16
      %vm1391 = vcmp.lt.s32.totalorder %v1348, 16
      %vm1392 = vmand %vm1356, %vm1374
      %vm1393 = vmand %vm1357, %vm1375
      %vm1394 = vmand %vm1358, %vm1376
      %vm1395 = vmand %vm1359, %vm1377
      %vm1396 = vmand %vm1360, %vm1378
      %vm1397 = vmand %vm1361, %vm1379
      %vm1398 = vmand %vm1362, %vm1380
      %vm1399 = vmand %vm1363, %vm1381
      %vm1400 = vmand %vm1364, %vm1382
      %vm1401 = vmand %vm1365, %vm1383
      %vm1402 = vmand %vm1366, %vm1384
      %vm1403 = vmand %vm1367, %vm1385
      %vm1404 = vmand %vm1368, %vm1386
      %vm1405 = vmand %vm1369, %vm1387
      %vm1406 = vmand %vm1370, %vm1388
      %vm1407 = vmand %vm1371, %vm1389
      %vm1408 = vmand %vm1372, %vm1390
      %vm1409 = vmand %vm1373, %vm1391
      %vm1410 = vcmp.ge.s32.totalorder %v1353, 0
      %vm1411 = vcmp.ge.s32.totalorder %v1354, 0
      %vm1412 = vcmp.ge.s32.totalorder %v1355, 0
      %vm1413 = vmand %vm1392, %vm1410
      %vm1414 = vmand %vm1392, %vm1411
      %vm1415 = vmand %vm1392, %vm1412
      %vm1416 = vmand %vm1393, %vm1410
      %vm1417 = vmand %vm1393, %vm1411
      %vm1418 = vmand %vm1393, %vm1412
      %vm1419 = vmand %vm1394, %vm1410
      %vm1420 = vmand %vm1394, %vm1411
      %vm1421 = vmand %vm1394, %vm1412
      %vm1422 = vmand %vm1395, %vm1410
      %vm1423 = vmand %vm1395, %vm1411
      %vm1424 = vmand %vm1395, %vm1412
      %vm1425 = vmand %vm1396, %vm1410
      %vm1426 = vmand %vm1396, %vm1411
      %vm1427 = vmand %vm1396, %vm1412
      %vm1428 = vmand %vm1397, %vm1410
      %vm1429 = vmand %vm1397, %vm1411
      %vm1430 = vmand %vm1397, %vm1412
      %vm1431 = vmand %vm1398, %vm1410
      %vm1432 = vmand %vm1398, %vm1411
      %vm1433 = vmand %vm1398, %vm1412
      %vm1434 = vmand %vm1399, %vm1410
      %vm1435 = vmand %vm1399, %vm1411
      %vm1436 = vmand %vm1399, %vm1412
      %vm1437 = vmand %vm1400, %vm1410
      %vm1438 = vmand %vm1400, %vm1411
      %vm1439 = vmand %vm1400, %vm1412
      %vm1440 = vmand %vm1401, %vm1410
      %vm1441 = vmand %vm1401, %vm1411
      %vm1442 = vmand %vm1401, %vm1412
      %vm1443 = vmand %vm1402, %vm1410
      %vm1444 = vmand %vm1402, %vm1411
      %vm1445 = vmand %vm1402, %vm1412
      %vm1446 = vmand %vm1403, %vm1410
      %vm1447 = vmand %vm1403, %vm1411
      %vm1448 = vmand %vm1403, %vm1412
      %vm1449 = vmand %vm1404, %vm1410
      %vm1450 = vmand %vm1404, %vm1411
      %vm1451 = vmand %vm1404, %vm1412
      %vm1452 = vmand %vm1405, %vm1410
      %vm1453 = vmand %vm1405, %vm1411
      %vm1454 = vmand %vm1405, %vm1412
      %vm1455 = vmand %vm1406, %vm1410
      %vm1456 = vmand %vm1406, %vm1411
      %vm1457 = vmand %vm1406, %vm1412
      %vm1458 = vmand %vm1407, %vm1410
      %vm1459 = vmand %vm1407, %vm1411
      %vm1460 = vmand %vm1407, %vm1412
      %vm1461 = vmand %vm1408, %vm1410
      %vm1462 = vmand %vm1408, %vm1411
      %vm1463 = vmand %vm1408, %vm1412
      %vm1464 = vmand %vm1409, %vm1410
      %vm1465 = vmand %vm1409, %vm1411
      %vm1466 = vmand %vm1409, %vm1412
      %vm1467 = vcmp.lt.s32.totalorder %v1353, 16
      %vm1468 = vcmp.lt.s32.totalorder %v1354, 16
      %vm1469 = vcmp.lt.s32.totalorder %v1355, 16
      %vm1470 = vmand %vm1413, %vm1467
      %vm1471 = vmand %vm1414, %vm1468
      %vm1472 = vmand %vm1415, %vm1469
      %vm1473 = vmand %vm1416, %vm1467
      %vm1474 = vmand %vm1417, %vm1468
      %vm1475 = vmand %vm1418, %vm1469
      %vm1476 = vmand %vm1419, %vm1467
      %vm1477 = vmand %vm1420, %vm1468
      %vm1478 = vmand %vm1421, %vm1469
      %vm1479 = vmand %vm1422, %vm1467
      %vm1480 = vmand %vm1423, %vm1468
      %vm1481 = vmand %vm1424, %vm1469
      %vm1482 = vmand %vm1425, %vm1467
      %vm1483 = vmand %vm1426, %vm1468
      %vm1484 = vmand %vm1427, %vm1469
      %vm1485 = vmand %vm1428, %vm1467
      %vm1486 = vmand %vm1429, %vm1468
      %vm1487 = vmand %vm1430, %vm1469
      %vm1488 = vmand %vm1431, %vm1467
      %vm1489 = vmand %vm1432, %vm1468
      %vm1490 = vmand %vm1433, %vm1469
      %vm1491 = vmand %vm1434, %vm1467
      %vm1492 = vmand %vm1435, %vm1468
      %vm1493 = vmand %vm1436, %vm1469
      %vm1494 = vmand %vm1437, %vm1467
      %vm1495 = vmand %vm1438, %vm1468
      %vm1496 = vmand %vm1439, %vm1469
      %vm1497 = vmand %vm1440, %vm1467
      %vm1498 = vmand %vm1441, %vm1468
      %vm1499 = vmand %vm1442, %vm1469
      %vm1500 = vmand %vm1443, %vm1467
      %vm1501 = vmand %vm1444, %vm1468
      %vm1502 = vmand %vm1445, %vm1469
      %vm1503 = vmand %vm1446, %vm1467
      %vm1504 = vmand %vm1447, %vm1468
      %vm1505 = vmand %vm1448, %vm1469
      %vm1506 = vmand %vm1449, %vm1467
      %vm1507 = vmand %vm1450, %vm1468
      %vm1508 = vmand %vm1451, %vm1469
      %vm1509 = vmand %vm1452, %vm1467
      %vm1510 = vmand %vm1453, %vm1468
      %vm1511 = vmand %vm1454, %vm1469
      %vm1512 = vmand %vm1455, %vm1467
      %vm1513 = vmand %vm1456, %vm1468
      %vm1514 = vmand %vm1457, %vm1469
      %vm1515 = vmand %vm1458, %vm1467
      %vm1516 = vmand %vm1459, %vm1468
      %vm1517 = vmand %vm1460, %vm1469
      %vm1518 = vmand %vm1461, %vm1467
      %vm1519 = vmand %vm1462, %vm1468
      %vm1520 = vmand %vm1463, %vm1469
      %vm1521 = vmand %vm1464, %vm1467
      %vm1522 = vmand %vm1465, %vm1468
      %vm1523 = vmand %vm1466, %vm1469
      %v1524 = vld [vmem:[#allocation2] sm:$0xf]
      %v1525 = vld [vmem:[#allocation2 + $0x4] sm:$0xf]
      %v1526 = vld [vmem:[#allocation2 + $0x8] sm:$0xf]
      %v1527 = vld [vmem:[#allocation2 + $0xc] sm:$0xf]
      %v1528 = vld [vmem:[#allocation2 + $0x10] sm:$0xf]
      %v1529 = vld [vmem:[#allocation2 + $0x14] sm:$0xf]
      %v1530 = vld [vmem:[#allocation2 + $0x18] sm:$0xf]
      %v1531 = vld [vmem:[#allocation2 + $0x1c] sm:$0xf]
      %v1532 = vld [vmem:[#allocation2 + $0x20] sm:$0xf]
      %v1533 = vld [vmem:[#allocation2 + $0x24] sm:$0xf]
      %v1534 = vld [vmem:[#allocation2 + $0x28] sm:$0xf]
      %v1535 = vld [vmem:[#allocation2 + $0x2c] sm:$0xf]
      %v1536 = vld [vmem:[#allocation2 + $0x30] sm:$0xf]
      %v1537 = vld [vmem:[#allocation2 + $0x34] sm:$0xf]
      %v1538 = vld [vmem:[#allocation2 + $0x38] sm:$0xf]
      %v1539 = vld [vmem:[#allocation2 + $0x3c] sm:$0xf]
      %v1540 = vld [vmem:[#allocation2 + $0x40] sm:$0xf]
      %v1541 = vld [vmem:[#allocation2 + $0x44] sm:$0xf]
      %v1542 = vld [vmem:[#allocation2 + $0x48] sm:$0xf]
      %v1543 = vld [vmem:[#allocation2 + $0x4c] sm:$0xf]
      %v1544 = vld [vmem:[#allocation2 + $0x50] sm:$0xf]
      %v1545 = vld [vmem:[#allocation2 + $0x54] sm:$0xf]
      %v1546 = vld [vmem:[#allocation2 + $0x58] sm:$0xf]
      %v1547 = vld [vmem:[#allocation2 + $0x5c] sm:$0xf]
      %v1548 = vld [vmem:[#allocation2 + $0x60] sm:$0xf]
      %v1549 = vld [vmem:[#allocation2 + $0x64] sm:$0xf]
      %v1550 = vld [vmem:[#allocation2 + $0x68] sm:$0xf]
      %v1551 = vld [vmem:[#allocation2 + $0x6c] sm:$0xf]
      %v1552 = vld [vmem:[#allocation2 + $0x70] sm:$0xf]
      %v1553 = vld [vmem:[#allocation2 + $0x74] sm:$0xf]
      %v1554 = vld [vmem:[#allocation2 + $0x78] sm:$0xf]
      %v1555 = vld [vmem:[#allocation2 + $0x7c] sm:$0xf]
      %v1556 = vld [vmem:[#allocation2 + $0x80] sm:$0xf]
      %v1557 = vld [vmem:[#allocation2 + $0x84] sm:$0xf]
      %v1558 = vld [vmem:[#allocation2 + $0x88] sm:$0xf]
      %v1559 = vld [vmem:[#allocation2 + $0x8c] sm:$0xf]
      %v1560 = vld [vmem:[#allocation2 + $0x90] sm:$0xf]
      %v1561 = vld [vmem:[#allocation2 + $0x94] sm:$0xf]
      %v1562 = vld [vmem:[#allocation2 + $0x98] sm:$0xf]
      %v1563 = vld [vmem:[#allocation2 + $0x9c] sm:$0xf]
      %v1564 = vld [vmem:[#allocation2 + $0xa0] sm:$0xf]
      %v1565 = vld [vmem:[#allocation2 + $0xa4] sm:$0xf]
      %v1566 = vld [vmem:[#allocation2 + $0xa8] sm:$0xf]
      %v1567 = vld [vmem:[#allocation2 + $0xac] sm:$0xf]
      %v1568 = vld [vmem:[#allocation2 + $0xb0] sm:$0xf]
      %v1569 = vld [vmem:[#allocation2 + $0xb4] sm:$0xf]
      %v1570 = vld [vmem:[#allocation2 + $0xb8] sm:$0xf]
      %v1571 = vld [vmem:[#allocation2 + $0xbc] sm:$0xf]
      %v1572 = vld [vmem:[#allocation2 + $0xc0] sm:$0xf]
      %v1573 = vld [vmem:[#allocation2 + $0xc4] sm:$0xf]
      %v1574 = vld [vmem:[#allocation2 + $0xc8] sm:$0xf]
      %v1575 = vld [vmem:[#allocation2 + $0xcc] sm:$0xf]
      %v1576 = vld [vmem:[#allocation2 + $0xd0] sm:$0xf]
      %v1577 = vld [vmem:[#allocation2 + $0xd4] sm:$0xf]
      %v1578 = vsel %vm1470, 1, 0
      %v1579 = vsel %vm1471, 1, 0
      %v1580 = vsel %vm1472, 1, 0
      %v1581 = vsel %vm1473, 1, 0
      %v1582 = vsel %vm1474, 1, 0
      %v1583 = vsel %vm1475, 1, 0
      %v1584 = vsel %vm1476, 1, 0
      %v1585 = vsel %vm1477, 1, 0
      %v1586 = vsel %vm1478, 1, 0
      %v1587 = vsel %vm1479, 1, 0
      %v1588 = vsel %vm1480, 1, 0
      %v1589 = vsel %vm1481, 1, 0
      %v1590 = vsel %vm1482, 1, 0
      %v1591 = vsel %vm1483, 1, 0
      %v1592 = vsel %vm1484, 1, 0
      %v1593 = vsel %vm1485, 1, 0
      %v1594 = vsel %vm1486, 1, 0
      %v1595 = vsel %vm1487, 1, 0
      %v1596 = vsel %vm1488, 1, 0
      %v1597 = vsel %vm1489, 1, 0
      %v1598 = vsel %vm1490, 1, 0
      %v1599 = vsel %vm1491, 1, 0
      %v1600 = vsel %vm1492, 1, 0
      %v1601 = vsel %vm1493, 1, 0
      %v1602 = vsel %vm1494, 1, 0
      %v1603 = vsel %vm1495, 1, 0
      %v1604 = vsel %vm1496, 1, 0
      %v1605 = vsel %vm1497, 1, 0
      %v1606 = vsel %vm1498, 1, 0
      %v1607 = vsel %vm1499, 1, 0
      %v1608 = vsel %vm1500, 1, 0
      %v1609 = vsel %vm1501, 1, 0
      %v1610 = vsel %vm1502, 1, 0
      %v1611 = vsel %vm1503, 1, 0
      %v1612 = vsel %vm1504, 1, 0
      %v1613 = vsel %vm1505, 1, 0
      %v1614 = vsel %vm1506, 1, 0
      %v1615 = vsel %vm1507, 1, 0
      %v1616 = vsel %vm1508, 1, 0
      %v1617 = vsel %vm1509, 1, 0
      %v1618 = vsel %vm1510, 1, 0
      %v1619 = vsel %vm1511, 1, 0
      %v1620 = vsel %vm1512, 1, 0
      %v1621 = vsel %vm1513, 1, 0
      %v1622 = vsel %vm1514, 1, 0
      %v1623 = vsel %vm1515, 1, 0
      %v1624 = vsel %vm1516, 1, 0
      %v1625 = vsel %vm1517, 1, 0
      %v1626 = vsel %vm1518, 1, 0
      %v1627 = vsel %vm1519, 1, 0
      %v1628 = vsel %vm1520, 1, 0
      %v1629 = vsel %vm1521, 1, 0
      %v1630 = vsel %vm1522, 1, 0
      %v1631 = vsel %vm1523, 1, 0
      %vm1632 = vcmp.eq.s32.totalorder %v1578, 1
      %vm1633 = vcmp.eq.s32.totalorder %v1579, 1
      %vm1634 = vcmp.eq.s32.totalorder %v1580, 1
      %vm1635 = vcmp.eq.s32.totalorder %v1581, 1
      %vm1636 = vcmp.eq.s32.totalorder %v1582, 1
      %vm1637 = vcmp.eq.s32.totalorder %v1583, 1
      %vm1638 = vcmp.eq.s32.totalorder %v1584, 1
      %vm1639 = vcmp.eq.s32.totalorder %v1585, 1
      %vm1640 = vcmp.eq.s32.totalorder %v1586, 1
      %vm1641 = vcmp.eq.s32.totalorder %v1587, 1
      %vm1642 = vcmp.eq.s32.totalorder %v1588, 1
      %vm1643 = vcmp.eq.s32.totalorder %v1589, 1
      %vm1644 = vcmp.eq.s32.totalorder %v1590, 1
      %vm1645 = vcmp.eq.s32.totalorder %v1591, 1
      %vm1646 = vcmp.eq.s32.totalorder %v1592, 1
      %vm1647 = vcmp.eq.s32.totalorder %v1593, 1
      %vm1648 = vcmp.eq.s32.totalorder %v1594, 1
      %vm1649 = vcmp.eq.s32.totalorder %v1595, 1
      %vm1650 = vcmp.eq.s32.totalorder %v1596, 1
      %vm1651 = vcmp.eq.s32.totalorder %v1597, 1
      %vm1652 = vcmp.eq.s32.totalorder %v1598, 1
      %vm1653 = vcmp.eq.s32.totalorder %v1599, 1
      %vm1654 = vcmp.eq.s32.totalorder %v1600, 1
      %vm1655 = vcmp.eq.s32.totalorder %v1601, 1
      %vm1656 = vcmp.eq.s32.totalorder %v1602, 1
      %vm1657 = vcmp.eq.s32.totalorder %v1603, 1
      %vm1658 = vcmp.eq.s32.totalorder %v1604, 1
      %vm1659 = vcmp.eq.s32.totalorder %v1605, 1
      %vm1660 = vcmp.eq.s32.totalorder %v1606, 1
      %vm1661 = vcmp.eq.s32.totalorder %v1607, 1
      %vm1662 = vcmp.eq.s32.totalorder %v1608, 1
      %vm1663 = vcmp.eq.s32.totalorder %v1609, 1
      %vm1664 = vcmp.eq.s32.totalorder %v1610, 1
      %vm1665 = vcmp.eq.s32.totalorder %v1611, 1
      %vm1666 = vcmp.eq.s32.totalorder %v1612, 1
      %vm1667 = vcmp.eq.s32.totalorder %v1613, 1
      %vm1668 = vcmp.eq.s32.totalorder %v1614, 1
      %vm1669 = vcmp.eq.s32.totalorder %v1615, 1
      %vm1670 = vcmp.eq.s32.totalorder %v1616, 1
      %vm1671 = vcmp.eq.s32.totalorder %v1617, 1
      %vm1672 = vcmp.eq.s32.totalorder %v1618, 1
      %vm1673 = vcmp.eq.s32.totalorder %v1619, 1
      %vm1674 = vcmp.eq.s32.totalorder %v1620, 1
      %vm1675 = vcmp.eq.s32.totalorder %v1621, 1
      %vm1676 = vcmp.eq.s32.totalorder %v1622, 1
      %vm1677 = vcmp.eq.s32.totalorder %v1623, 1
      %vm1678 = vcmp.eq.s32.totalorder %v1624, 1
      %vm1679 = vcmp.eq.s32.totalorder %v1625, 1
      %vm1680 = vcmp.eq.s32.totalorder %v1626, 1
      %vm1681 = vcmp.eq.s32.totalorder %v1627, 1
      %vm1682 = vcmp.eq.s32.totalorder %v1628, 1
      %vm1683 = vcmp.eq.s32.totalorder %v1629, 1
      %vm1684 = vcmp.eq.s32.totalorder %v1630, 1
      %vm1685 = vcmp.eq.s32.totalorder %v1631, 1
      %vm1686 = vmpackc.low %vm1632, %vm1632
      %vm1687 = vmpackc.low %vm1633, %vm1633
      %vm1688 = vmpackc.low %vm1634, %vm1634
      %vm1689 = vmpackc.low %vm1635, %vm1635
      %vm1690 = vmpackc.low %vm1636, %vm1636
      %vm1691 = vmpackc.low %vm1637, %vm1637
      %vm1692 = vmpackc.low %vm1638, %vm1638
      %vm1693 = vmpackc.low %vm1639, %vm1639
      %vm1694 = vmpackc.low %vm1640, %vm1640
      %vm1695 = vmpackc.low %vm1641, %vm1641
      %vm1696 = vmpackc.low %vm1642, %vm1642
      %vm1697 = vmpackc.low %vm1643, %vm1643
      %vm1698 = vmpackc.low %vm1644, %vm1644
      %vm1699 = vmpackc.low %vm1645, %vm1645
      %vm1700 = vmpackc.low %vm1646, %vm1646
      %vm1701 = vmpackc.low %vm1647, %vm1647
      %vm1702 = vmpackc.low %vm1648, %vm1648
      %vm1703 = vmpackc.low %vm1649, %vm1649
      %vm1704 = vmpackc.low %vm1650, %vm1650
      %vm1705 = vmpackc.low %vm1651, %vm1651
      %vm1706 = vmpackc.low %vm1652, %vm1652
      %vm1707 = vmpackc.low %vm1653, %vm1653
      %vm1708 = vmpackc.low %vm1654, %vm1654
      %vm1709 = vmpackc.low %vm1655, %vm1655
      %vm1710 = vmpackc.low %vm1656, %vm1656
      %vm1711 = vmpackc.low %vm1657, %vm1657
      %vm1712 = vmpackc.low %vm1658, %vm1658
      %vm1713 = vmpackc.low %vm1659, %vm1659
      %vm1714 = vmpackc.low %vm1660, %vm1660
      %vm1715 = vmpackc.low %vm1661, %vm1661
      %vm1716 = vmpackc.low %vm1662, %vm1662
      %vm1717 = vmpackc.low %vm1663, %vm1663
      %vm1718 = vmpackc.low %vm1664, %vm1664
      %vm1719 = vmpackc.low %vm1665, %vm1665
      %vm1720 = vmpackc.low %vm1666, %vm1666
      %vm1721 = vmpackc.low %vm1667, %vm1667
      %vm1722 = vmpackc.low %vm1668, %vm1668
      %vm1723 = vmpackc.low %vm1669, %vm1669
      %vm1724 = vmpackc.low %vm1670, %vm1670
      %vm1725 = vmpackc.low %vm1671, %vm1671
      %vm1726 = vmpackc.low %vm1672, %vm1672
      %vm1727 = vmpackc.low %vm1673, %vm1673
      %vm1728 = vmpackc.low %vm1674, %vm1674
      %vm1729 = vmpackc.low %vm1675, %vm1675
      %vm1730 = vmpackc.low %vm1676, %vm1676
      %vm1731 = vmpackc.low %vm1677, %vm1677
      %vm1732 = vmpackc.low %vm1678, %vm1678
      %vm1733 = vmpackc.low %vm1679, %vm1679
      %vm1734 = vmpackc.low %vm1680, %vm1680
      %vm1735 = vmpackc.low %vm1681, %vm1681
      %vm1736 = vmpackc.low %vm1682, %vm1682
      %vm1737 = vmpackc.low %vm1683, %vm1683
      %vm1738 = vmpackc.low %vm1684, %vm1684
      %vm1739 = vmpackc.low %vm1685, %vm1685
      %v1740 = vsel %vm1686, %v1524, 0
      %v1741 = vsel %vm1687, %v1525, 0
      %v1742 = vsel %vm1688, %v1526, 0
      %v1743 = vsel %vm1689, %v1527, 0
      %v1744 = vsel %vm1690, %v1528, 0
      %v1745 = vsel %vm1691, %v1529, 0
      %v1746 = vsel %vm1692, %v1530, 0
      %v1747 = vsel %vm1693, %v1531, 0
      %v1748 = vsel %vm1694, %v1532, 0
      %v1749 = vsel %vm1695, %v1533, 0
      %v1750 = vsel %vm1696, %v1534, 0
      %v1751 = vsel %vm1697, %v1535, 0
      %v1752 = vsel %vm1698, %v1536, 0
      %v1753 = vsel %vm1699, %v1537, 0
      %v1754 = vsel %vm1700, %v1538, 0
      %v1755 = vsel %vm1701, %v1539, 0
      %v1756 = vsel %vm1702, %v1540, 0
      %v1757 = vsel %vm1703, %v1541, 0
      %v1758 = vsel %vm1704, %v1542, 0
      %v1759 = vsel %vm1705, %v1543, 0
      %v1760 = vsel %vm1706, %v1544, 0
      %v1761 = vsel %vm1707, %v1545, 0
      %v1762 = vsel %vm1708, %v1546, 0
      %v1763 = vsel %vm1709, %v1547, 0
      %v1764 = vsel %vm1710, %v1548, 0
      %v1765 = vsel %vm1711, %v1549, 0
      %v1766 = vsel %vm1712, %v1550, 0
      %v1767 = vsel %vm1713, %v1551, 0
      %v1768 = vsel %vm1714, %v1552, 0
      %v1769 = vsel %vm1715, %v1553, 0
      %v1770 = vsel %vm1716, %v1554, 0
      %v1771 = vsel %vm1717, %v1555, 0
      %v1772 = vsel %vm1718, %v1556, 0
      %v1773 = vsel %vm1719, %v1557, 0
      %v1774 = vsel %vm1720, %v1558, 0
      %v1775 = vsel %vm1721, %v1559, 0
      %v1776 = vsel %vm1722, %v1560, 0
      %v1777 = vsel %vm1723, %v1561, 0
      %v1778 = vsel %vm1724, %v1562, 0
      %v1779 = vsel %vm1725, %v1563, 0
      %v1780 = vsel %vm1726, %v1564, 0
      %v1781 = vsel %vm1727, %v1565, 0
      %v1782 = vsel %vm1728, %v1566, 0
      %v1783 = vsel %vm1729, %v1567, 0
      %v1784 = vsel %vm1730, %v1568, 0
      %v1785 = vsel %vm1731, %v1569, 0
      %v1786 = vsel %vm1732, %v1570, 0
      %v1787 = vsel %vm1733, %v1571, 0
      %v1788 = vsel %vm1734, %v1572, 0
      %v1789 = vsel %vm1735, %v1573, 0
      %v1790 = vsel %vm1736, %v1574, 0
      %v1791 = vsel %vm1737, %v1575, 0
      %v1792 = vsel %vm1738, %v1576, 0
      %v1793 = vsel %vm1739, %v1577, 0
      %1794 = vst [vmem:[#allocation2] sm:$0xf] %v1740
      %1795 = vst [vmem:[#allocation2 + $0x4] sm:$0xf] %v1741
      %1796 = vst [vmem:[#allocation2 + $0x8] sm:$0xf] %v1742
      %1797 = vst [vmem:[#allocation2 + $0xc] sm:$0xf] %v1743
      %1798 = vst [vmem:[#allocation2 + $0x10] sm:$0xf] %v1744
      %1799 = vst [vmem:[#allocation2 + $0x14] sm:$0xf] %v1745
      %1800 = vst [vmem:[#allocation2 + $0x18] sm:$0xf] %v1746
      %1801 = vst [vmem:[#allocation2 + $0x1c] sm:$0xf] %v1747
      %1802 = vst [vmem:[#allocation2 + $0x20] sm:$0xf] %v1748
      %1803 = vst [vmem:[#allocation2 + $0x24] sm:$0xf] %v1749
      %1804 = vst [vmem:[#allocation2 + $0x28] sm:$0xf] %v1750
      %1805 = vst [vmem:[#allocation2 + $0x2c] sm:$0xf] %v1751
      %1806 = vst [vmem:[#allocation2 + $0x30] sm:$0xf] %v1752
      %1807 = vst [vmem:[#allocation2 + $0x34] sm:$0xf] %v1753
      %1808 = vst [vmem:[#allocation2 + $0x38] sm:$0xf] %v1754
      %1809 = vst [vmem:[#allocation2 + $0x3c] sm:$0xf] %v1755
      %1810 = vst [vmem:[#allocation2 + $0x40] sm:$0xf] %v1756
      %1811 = vst [vmem:[#allocation2 + $0x44] sm:$0xf] %v1757
      %1812 = vst [vmem:[#allocation2 + $0x48] sm:$0xf] %v1758
      %1813 = vst [vmem:[#allocation2 + $0x4c] sm:$0xf] %v1759
      %1814 = vst [vmem:[#allocation2 + $0x50] sm:$0xf] %v1760
      %1815 = vst [vmem:[#allocation2 + $0x54] sm:$0xf] %v1761
      %1816 = vst [vmem:[#allocation2 + $0x58] sm:$0xf] %v1762
      %1817 = vst [vmem:[#allocation2 + $0x5c] sm:$0xf] %v1763
      %1818 = vst [vmem:[#allocation2 + $0x60] sm:$0xf] %v1764
      %1819 = vst [vmem:[#allocation2 + $0x64] sm:$0xf] %v1765
      %1820 = vst [vmem:[#allocation2 + $0x68] sm:$0xf] %v1766
      %1821 = vst [vmem:[#allocation2 + $0x6c] sm:$0xf] %v1767
      %1822 = vst [vmem:[#allocation2 + $0x70] sm:$0xf] %v1768
      %1823 = vst [vmem:[#allocation2 + $0x74] sm:$0xf] %v1769
      %1824 = vst [vmem:[#allocation2 + $0x78] sm:$0xf] %v1770
      %1825 = vst [vmem:[#allocation2 + $0x7c] sm:$0xf] %v1771
      %1826 = vst [vmem:[#allocation2 + $0x80] sm:$0xf] %v1772
      %1827 = vst [vmem:[#allocation2 + $0x84] sm:$0xf] %v1773
      %1828 = vst [vmem:[#allocation2 + $0x88] sm:$0xf] %v1774
      %1829 = vst [vmem:[#allocation2 + $0x8c] sm:$0xf] %v1775
      %1830 = vst [vmem:[#allocation2 + $0x90] sm:$0xf] %v1776
      %1831 = vst [vmem:[#allocation2 + $0x94] sm:$0xf] %v1777
      %1832 = vst [vmem:[#allocation2 + $0x98] sm:$0xf] %v1778
      %1833 = vst [vmem:[#allocation2 + $0x9c] sm:$0xf] %v1779
      %1834 = vst [vmem:[#allocation2 + $0xa0] sm:$0xf] %v1780
      %1835 = vst [vmem:[#allocation2 + $0xa4] sm:$0xf] %v1781
      %1836 = vst [vmem:[#allocation2 + $0xa8] sm:$0xf] %v1782
      %1837 = vst [vmem:[#allocation2 + $0xac] sm:$0xf] %v1783
      %1838 = vst [vmem:[#allocation2 + $0xb0] sm:$0xf] %v1784
      %1839 = vst [vmem:[#allocation2 + $0xb4] sm:$0xf] %v1785
      %1840 = vst [vmem:[#allocation2 + $0xb8] sm:$0xf] %v1786
      %1841 = vst [vmem:[#allocation2 + $0xbc] sm:$0xf] %v1787
      %1842 = vst [vmem:[#allocation2 + $0xc0] sm:$0xf] %v1788
      %1843 = vst [vmem:[#allocation2 + $0xc4] sm:$0xf] %v1789
      %1844 = vst [vmem:[#allocation2 + $0xc8] sm:$0xf] %v1790
      %1845 = vst [vmem:[#allocation2 + $0xcc] sm:$0xf] %v1791
      %1846 = vst [vmem:[#allocation2 + $0xd0] sm:$0xf] %v1792
      %1847 = vst [vmem:[#allocation2 + $0xd4] sm:$0xf] %v1793
      %v1848 = vld [vmem:[#allocation2] sm:$0xf]
      %v1849 = vld [vmem:[#allocation2 + $0x4] sm:$0xf]
      %v1850 = vld [vmem:[#allocation2 + $0xc] sm:$0xf]
      %v1851 = vld [vmem:[#allocation2 + $0x10] sm:$0xf]
      %v1852 = vld [vmem:[#allocation2 + $0x18] sm:$0xf]
      %v1853 = vld [vmem:[#allocation2 + $0x1c] sm:$0xf]
      %v1854 = vld [vmem:[#allocation2 + $0x24] sm:$0xf]
      %v1855 = vld [vmem:[#allocation2 + $0x28] sm:$0xf]
      %v1856 = vld [vmem:[#allocation2 + $0x30] sm:$0xf]
      %v1857 = vld [vmem:[#allocation2 + $0x34] sm:$0xf]
      %v1858 = vld [vmem:[#allocation2 + $0x3c] sm:$0xf]
      %v1859 = vld [vmem:[#allocation2 + $0x40] sm:$0xf]
      %v1860 = vld [vmem:[#allocation2 + $0x48] sm:$0xf]
      %v1861 = vld [vmem:[#allocation2 + $0x4c] sm:$0xf]
      %v1862 = vld [vmem:[#allocation2 + $0x54] sm:$0xf]
      %v1863 = vld [vmem:[#allocation2 + $0x58] sm:$0xf]
      %v1864 = vld [vmem:[#allocation2 + $0x60] sm:$0xf]
      %v1865 = vld [vmem:[#allocation2 + $0x64] sm:$0xf]
      %v1866 = vld [vmem:[#allocation2 + $0x6c] sm:$0xf]
      %v1867 = vld [vmem:[#allocation2 + $0x70] sm:$0xf]
      %v1868 = vld [vmem:[#allocation2 + $0x78] sm:$0xf]
      %v1869 = vld [vmem:[#allocation2 + $0x7c] sm:$0xf]
      %v1870 = vld [vmem:[#allocation2 + $0x84] sm:$0xf]
      %v1871 = vld [vmem:[#allocation2 + $0x88] sm:$0xf]
      %v1872 = vld [vmem:[#allocation2 + $0x90] sm:$0xf]
      %v1873 = vld [vmem:[#allocation2 + $0x94] sm:$0xf]
      %v1874 = vld [vmem:[#allocation2 + $0x9c] sm:$0xf]
      %v1875 = vld [vmem:[#allocation2 + $0xa0] sm:$0xf]
      %v1876 = vld [vmem:[#allocation2 + $0xa8] sm:$0xf]
      %v1877 = vld [vmem:[#allocation2 + $0xac] sm:$0xf]
      %v1878 = vld [vmem:[#allocation2 + $0xb4] sm:$0xf]
      %v1879 = vld [vmem:[#allocation2 + $0xb8] sm:$0xf]
      %v1880 = vld [vmem:[#allocation2 + $0xc0] sm:$0xf]
      %v1881 = vld [vmem:[#allocation2 + $0xc4] sm:$0xf]
      %v1882 = vld [vmem:[#allocation2 + $0xcc] sm:$0xf]
      %v1883 = vld [vmem:[#allocation2 + $0xd0] sm:$0xf]
      %v1920 = vunpack.c.l.b16 %v1848
      %v1921 = vunpack.c.l.b16 %v1849
      %v1922 = vunpack.c.l.b16 %v1850
      %v1923 = vunpack.c.l.b16 %v1851
      %v1924 = vunpack.c.l.b16 %v1852
      %v1925 = vunpack.c.l.b16 %v1853
      %v1926 = vunpack.c.l.b16 %v1854
      %v1927 = vunpack.c.l.b16 %v1855
      %v1928 = vunpack.c.l.b16 %v1856
      %v1929 = vunpack.c.l.b16 %v1857
      %v1930 = vunpack.c.l.b16 %v1858
      %v1931 = vunpack.c.l.b16 %v1859
      %v1932 = vunpack.c.l.b16 %v1860
      %v1933 = vunpack.c.l.b16 %v1861
      %v1934 = vunpack.c.l.b16 %v1862
      %v1935 = vunpack.c.l.b16 %v1863
      %v1936 = vunpack.c.l.b16 %v1864
      %v1937 = vunpack.c.l.b16 %v1865
      %v1938 = vunpack.c.l.b16 %v1866
      %v1939 = vunpack.c.l.b16 %v1867
      %v1940 = vunpack.c.l.b16 %v1868
      %v1941 = vunpack.c.l.b16 %v1869
      %v1942 = vunpack.c.l.b16 %v1870
      %v1943 = vunpack.c.l.b16 %v1871
      %v1944 = vunpack.c.l.b16 %v1872
      %v1945 = vunpack.c.l.b16 %v1873
      %v1946 = vunpack.c.l.b16 %v1874
      %v1947 = vunpack.c.l.b16 %v1875
      %v1948 = vunpack.c.l.b16 %v1876
      %v1949 = vunpack.c.l.b16 %v1877
      %v1950 = vunpack.c.l.b16 %v1878
      %v1951 = vunpack.c.l.b16 %v1879
      %v1952 = vunpack.c.l.b16 %v1880
      %v1953 = vunpack.c.l.b16 %v1881
      %v1954 = vunpack.c.l.b16 %v1882
      %v1955 = vunpack.c.l.b16 %v1883
      %v1956 = vpack.c.b16 %v1921, %v1920
      %v1957 = vpack.c.b16 %v1923, %v1922
      %v1958 = vpack.c.b16 %v1925, %v1924
      %v1959 = vpack.c.b16 %v1927, %v1926
      %v1960 = vpack.c.b16 %v1929, %v1928
      %v1961 = vpack.c.b16 %v1931, %v1930
      %v1962 = vpack.c.b16 %v1933, %v1932
      %v1963 = vpack.c.b16 %v1935, %v1934
      %v1964 = vpack.c.b16 %v1937, %v1936
      %v1965 = vpack.c.b16 %v1939, %v1938
      %v1966 = vpack.c.b16 %v1941, %v1940
      %v1967 = vpack.c.b16 %v1943, %v1942
      %v1968 = vpack.c.b16 %v1945, %v1944
      %v1969 = vpack.c.b16 %v1947, %v1946
      %v1970 = vpack.c.b16 %v1949, %v1948
      %v1971 = vpack.c.b16 %v1951, %v1950
      %v1972 = vpack.c.b16 %v1953, %v1952
      %v1973 = vpack.c.b16 %v1955, %v1954
      %1992 = vst [vmem:[#allocation3] sm:$0xff] %v1956
      %1993 = vst [vmem:[#allocation3 + $0x18] sm:$0xff] %v1957
      %1994 = vst [vmem:[#allocation3 + $0x30] sm:$0xff] %v1958
      %1995 = vst [vmem:[#allocation3 + $0x48] sm:$0xff] %v1959
      %1996 = vst [vmem:[#allocation3 + $0x60] sm:$0xff] %v1960
      %1997 = vst [vmem:[#allocation3 + $0x78] sm:$0xff] %v1961
      %1998 = vst [vmem:[#allocation3 + $0x90] sm:$0xff] %v1962
      %1999 = vst [vmem:[#allocation3 + $0xa8] sm:$0xff] %v1963
      %2000 = vst [vmem:[#allocation3 + $0xc0] sm:$0xff] %v1964
      %2001 = vst [vmem:[#allocation3 + $0xd8] sm:$0xff] %v1965
      %2002 = vst [vmem:[#allocation3 + $0xf0] sm:$0xff] %v1966
      %2003 = vst [vmem:[#allocation3 + $0x108] sm:$0xff] %v1967
      %2004 = vst [vmem:[#allocation3 + $0x120] sm:$0xff] %v1968
      %2005 = vst [vmem:[#allocation3 + $0x138] sm:$0xff] %v1969
      %2006 = vst [vmem:[#allocation3 + $0x150] sm:$0xff] %v1970
      %2007 = vst [vmem:[#allocation3 + $0x168] sm:$0xff] %v1971
      %2008 = vst [vmem:[#allocation3 + $0x180] sm:$0xff] %v1972
      %2009 = vst [vmem:[#allocation3 + $0x198] sm:$0xff] %v1973
      %v2010 = vld [vmem:[#allocation2] sm:$0xf]
      %v2011 = vld [vmem:[#allocation2 + $0x4] sm:$0xf]
      %v2012 = vld [vmem:[#allocation2 + $0x8] sm:$0x1]
      %v2013 = vld [vmem:[#allocation2 + $0xc] sm:$0xf]
      %v2014 = vld [vmem:[#allocation2 + $0x10] sm:$0xf]
      %v2015 = vld [vmem:[#allocation2 + $0x14] sm:$0x1]
      %v2016 = vld [vmem:[#allocation2 + $0x18] sm:$0xf]
      %v2017 = vld [vmem:[#allocation2 + $0x1c] sm:$0xf]
      %v2018 = vld [vmem:[#allocation2 + $0x20] sm:$0x1]
      %v2019 = vld [vmem:[#allocation2 + $0x24] sm:$0xf]
      %v2020 = vld [vmem:[#allocation2 + $0x28] sm:$0xf]
      %v2021 = vld [vmem:[#allocation2 + $0x2c] sm:$0x1]
      %v2022 = vld [vmem:[#allocation2 + $0x30] sm:$0xf]
      %v2023 = vld [vmem:[#allocation2 + $0x34] sm:$0xf]
      %v2024 = vld [vmem:[#allocation2 + $0x38] sm:$0x1]
      %v2025 = vld [vmem:[#allocation2 + $0x3c] sm:$0xf]
      %v2026 = vld [vmem:[#allocation2 + $0x40] sm:$0xf]
      %v2027 = vld [vmem:[#allocation2 + $0x44] sm:$0x1]
      %v2028 = vld [vmem:[#allocation2 + $0x48] sm:$0xf]
      %v2029 = vld [vmem:[#allocation2 + $0x4c] sm:$0xf]
      %v2030 = vld [vmem:[#allocation2 + $0x50] sm:$0x1]
      %v2031 = vld [vmem:[#allocation2 + $0x54] sm:$0xf]
      %v2032 = vld [vmem:[#allocation2 + $0x58] sm:$0xf]
      %v2033 = vld [vmem:[#allocation2 + $0x5c] sm:$0x1]
      %v2034 = vld [vmem:[#allocation2 + $0x60] sm:$0xf]
      %v2035 = vld [vmem:[#allocation2 + $0x64] sm:$0xf]
      %v2036 = vld [vmem:[#allocation2 + $0x68] sm:$0x1]
      %v2037 = vld [vmem:[#allocation2 + $0x6c] sm:$0xf]
      %v2038 = vld [vmem:[#allocation2 + $0x70] sm:$0xf]
      %v2039 = vld [vmem:[#allocation2 + $0x74] sm:$0x1]
      %v2040 = vld [vmem:[#allocation2 + $0x78] sm:$0xf]
      %v2041 = vld [vmem:[#allocation2 + $0x7c] sm:$0xf]
      %v2042 = vld [vmem:[#allocation2 + $0x80] sm:$0x1]
      %v2043 = vld [vmem:[#allocation2 + $0x84] sm:$0xf]
      %v2044 = vld [vmem:[#allocation2 + $0x88] sm:$0xf]
      %v2045 = vld [vmem:[#allocation2 + $0x8c] sm:$0x1]
      %v2046 = vld [vmem:[#allocation2 + $0x90] sm:$0xf]
      %v2047 = vld [vmem:[#allocation2 + $0x94] sm:$0xf]
      %v2048 = vld [vmem:[#allocation2 + $0x98] sm:$0x1]
      %v2049 = vld [vmem:[#allocation2 + $0x9c] sm:$0xf]
      %v2050 = vld [vmem:[#allocation2 + $0xa0] sm:$0xf]
      %v2051 = vld [vmem:[#allocation2 + $0xa4] sm:$0x1]
      %v2052 = vld [vmem:[#allocation2 + $0xa8] sm:$0xf]
      %v2053 = vld [vmem:[#allocation2 + $0xac] sm:$0xf]
      %v2054 = vld [vmem:[#allocation2 + $0xb0] sm:$0x1]
      %v2055 = vld [vmem:[#allocation2 + $0xb4] sm:$0xf]
      %v2056 = vld [vmem:[#allocation2 + $0xb8] sm:$0xf]
      %v2057 = vld [vmem:[#allocation2 + $0xbc] sm:$0x1]
      %v2058 = vld [vmem:[#allocation2 + $0xc0] sm:$0xf]
      %v2059 = vld [vmem:[#allocation2 + $0xc4] sm:$0xf]
      %v2060 = vld [vmem:[#allocation2 + $0xc8] sm:$0x1]
      %v2061 = vld [vmem:[#allocation2 + $0xcc] sm:$0xf]
      %v2062 = vld [vmem:[#allocation2 + $0xd0] sm:$0xf]
      %v2063 = vld [vmem:[#allocation2 + $0xd4] sm:$0x1]
      %v2118 = vunpack.c.l.b16 %v2010
      %v2119 = vunpack.c.l.b16 %v2011
      %v2120 = vunpack.c.l.b16 %v2012
      %v2121 = vunpack.c.l.b16 %v2013
      %v2122 = vunpack.c.l.b16 %v2014
      %v2123 = vunpack.c.l.b16 %v2015
      %v2124 = vunpack.c.l.b16 %v2016
      %v2125 = vunpack.c.l.b16 %v2017
      %v2126 = vunpack.c.l.b16 %v2018
      %v2127 = vunpack.c.l.b16 %v2019
      %v2128 = vunpack.c.l.b16 %v2020
      %v2129 = vunpack.c.l.b16 %v2021
      %v2130 = vunpack.c.l.b16 %v2022
      %v2131 = vunpack.c.l.b16 %v2023
      %v2132 = vunpack.c.l.b16 %v2024
      %v2133 = vunpack.c.l.b16 %v2025
      %v2134 = vunpack.c.l.b16 %v2026
      %v2135 = vunpack.c.l.b16 %v2027
      %v2136 = vunpack.c.l.b16 %v2028
      %v2137 = vunpack.c.l.b16 %v2029
      %v2138 = vunpack.c.l.b16 %v2030
      %v2139 = vunpack.c.l.b16 %v2031
      %v2140 = vunpack.c.l.b16 %v2032
      %v2141 = vunpack.c.l.b16 %v2033
      %v2142 = vunpack.c.l.b16 %v2034
      %v2143 = vunpack.c.l.b16 %v2035
      %v2144 = vunpack.c.l.b16 %v2036
      %v2145 = vunpack.c.l.b16 %v2037
      %v2146 = vunpack.c.l.b16 %v2038
      %v2147 = vunpack.c.l.b16 %v2039
      %v2148 = vunpack.c.l.b16 %v2040
      %v2149 = vunpack.c.l.b16 %v2041
      %v2150 = vunpack.c.l.b16 %v2042
      %v2151 = vunpack.c.l.b16 %v2043
      %v2152 = vunpack.c.l.b16 %v2044
      %v2153 = vunpack.c.l.b16 %v2045
      %v2154 = vunpack.c.l.b16 %v2046
      %v2155 = vunpack.c.l.b16 %v2047
      %v2156 = vunpack.c.l.b16 %v2048
      %v2157 = vunpack.c.l.b16 %v2049
      %v2158 = vunpack.c.l.b16 %v2050
      %v2159 = vunpack.c.l.b16 %v2051
      %v2160 = vunpack.c.l.b16 %v2052
      %v2161 = vunpack.c.l.b16 %v2053
      %v2162 = vunpack.c.l.b16 %v2054
      %v2163 = vunpack.c.l.b16 %v2055
      %v2164 = vunpack.c.l.b16 %v2056
      %v2165 = vunpack.c.l.b16 %v2057
      %v2166 = vunpack.c.l.b16 %v2058
      %v2167 = vunpack.c.l.b16 %v2059
      %v2168 = vunpack.c.l.b16 %v2060
      %v2169 = vunpack.c.l.b16 %v2061
      %v2170 = vunpack.c.l.b16 %v2062
      %v2171 = vunpack.c.l.b16 %v2063
      %v2172 = vpack.c.b16 %v2119, %v2118
      %v2173 = vpack.c.b16 %v2120, %v2120
      %v2174 = vpack.c.b16 %v2122, %v2121
      %v2175 = vpack.c.b16 %v2123, %v2123
      %v2176 = vpack.c.b16 %v2125, %v2124
      %v2177 = vpack.c.b16 %v2126, %v2126
      %v2178 = vpack.c.b16 %v2128, %v2127
      %v2179 = vpack.c.b16 %v2129, %v2129
      %v2180 = vpack.c.b16 %v2131, %v2130
      %v2181 = vpack.c.b16 %v2132, %v2132
      %v2182 = vpack.c.b16 %v2134, %v2133
      %v2183 = vpack.c.b16 %v2135, %v2135
      %v2184 = vpack.c.b16 %v2137, %v2136
      %v2185 = vpack.c.b16 %v2138, %v2138
      %v2186 = vpack.c.b16 %v2140, %v2139
      %v2187 = vpack.c.b16 %v2141, %v2141
      %v2188 = vpack.c.b16 %v2143, %v2142
      %v2189 = vpack.c.b16 %v2144, %v2144
      %v2190 = vpack.c.b16 %v2146, %v2145
      %v2191 = vpack.c.b16 %v2147, %v2147
      %v2192 = vpack.c.b16 %v2149, %v2148
      %v2193 = vpack.c.b16 %v2150, %v2150
      %v2194 = vpack.c.b16 %v2152, %v2151
      %v2195 = vpack.c.b16 %v2153, %v2153
      %v2196 = vpack.c.b16 %v2155, %v2154
      %v2197 = vpack.c.b16 %v2156, %v2156
      %v2198 = vpack.c.b16 %v2158, %v2157
      %v2199 = vpack.c.b16 %v2159, %v2159
      %v2200 = vpack.c.b16 %v2161, %v2160
      %v2201 = vpack.c.b16 %v2162, %v2162
      %v2202 = vpack.c.b16 %v2164, %v2163
      %v2203 = vpack.c.b16 %v2165, %v2165
      %v2204 = vpack.c.b16 %v2167, %v2166
      %v2205 = vpack.c.b16 %v2168, %v2168
      %v2206 = vpack.c.b16 %v2170, %v2169
      %v2207 = vpack.c.b16 %v2171, %v2171
      %vm2208 = vsmask.f32 7424
      %v2210 = vshrl.u32 %v2172, 16
      %v2212 = vshll.u32 %v2172, 16
      %v2214 = vrot.slane %v2212, 1
      %v2215 = vor.u32 %v2210, %v2214
      %v2217 = vshll.u32 %v2173, 16
      %v2219 = vrot.slane %v2217, 1
      %v2220 = vsel %vm2208, %v2215, %v2219
      %v2222 = vshrl.u32 %v2174, 16
      %v2224 = vshll.u32 %v2174, 16
      %v2226 = vrot.slane %v2224, 1
      %v2227 = vor.u32 %v2222, %v2226
      %v2229 = vshll.u32 %v2175, 16
      %v2231 = vrot.slane %v2229, 1
      %v2232 = vsel %vm2208, %v2227, %v2231
      %v2234 = vshrl.u32 %v2176, 16
      %v2236 = vshll.u32 %v2176, 16
      %v2238 = vrot.slane %v2236, 1
      %v2239 = vor.u32 %v2234, %v2238
      %v2241 = vshll.u32 %v2177, 16
      %v2243 = vrot.slane %v2241, 1
      %v2244 = vsel %vm2208, %v2239, %v2243
      %v2246 = vshrl.u32 %v2178, 16
      %v2248 = vshll.u32 %v2178, 16
      %v2250 = vrot.slane %v2248, 1
      %v2251 = vor.u32 %v2246, %v2250
      %v2253 = vshll.u32 %v2179, 16
      %v2255 = vrot.slane %v2253, 1
      %v2256 = vsel %vm2208, %v2251, %v2255
      %v2258 = vshrl.u32 %v2180, 16
      %v2260 = vshll.u32 %v2180, 16
      %v2262 = vrot.slane %v2260, 1
      %v2263 = vor.u32 %v2258, %v2262
      %v2265 = vshll.u32 %v2181, 16
      %v2267 = vrot.slane %v2265, 1
      %v2268 = vsel %vm2208, %v2263, %v2267
      %v2270 = vshrl.u32 %v2182, 16
      %v2272 = vshll.u32 %v2182, 16
      %v2274 = vrot.slane %v2272, 1
      %v2275 = vor.u32 %v2270, %v2274
      %v2277 = vshll.u32 %v2183, 16
      %v2279 = vrot.slane %v2277, 1
      %v2280 = vsel %vm2208, %v2275, %v2279
      %v2282 = vshrl.u32 %v2184, 16
      %v2284 = vshll.u32 %v2184, 16
      %v2286 = vrot.slane %v2284, 1
      %v2287 = vor.u32 %v2282, %v2286
      %v2289 = vshll.u32 %v2185, 16
      %v2291 = vrot.slane %v2289, 1
      %v2292 = vsel %vm2208, %v2287, %v2291
      %v2294 = vshrl.u32 %v2186, 16
      %v2296 = vshll.u32 %v2186, 16
      %v2298 = vrot.slane %v2296, 1
      %v2299 = vor.u32 %v2294, %v2298
      %v2301 = vshll.u32 %v2187, 16
      %v2303 = vrot.slane %v2301, 1
      %v2304 = vsel %vm2208, %v2299, %v2303
      %v2306 = vshrl.u32 %v2188, 16
      %v2308 = vshll.u32 %v2188, 16
      %v2310 = vrot.slane %v2308, 1
      %v2311 = vor.u32 %v2306, %v2310
      %v2313 = vshll.u32 %v2189, 16
      %v2315 = vrot.slane %v2313, 1
      %v2316 = vsel %vm2208, %v2311, %v2315
      %v2318 = vshrl.u32 %v2190, 16
      %v2320 = vshll.u32 %v2190, 16
      %v2322 = vrot.slane %v2320, 1
      %v2323 = vor.u32 %v2318, %v2322
      %v2325 = vshll.u32 %v2191, 16
      %v2327 = vrot.slane %v2325, 1
      %v2328 = vsel %vm2208, %v2323, %v2327
      %v2330 = vshrl.u32 %v2192, 16
      %v2332 = vshll.u32 %v2192, 16
      %v2334 = vrot.slane %v2332, 1
      %v2335 = vor.u32 %v2330, %v2334
      %v2337 = vshll.u32 %v2193, 16
      %v2339 = vrot.slane %v2337, 1
      %v2340 = vsel %vm2208, %v2335, %v2339
      %v2342 = vshrl.u32 %v2194, 16
      %v2344 = vshll.u32 %v2194, 16
      %v2346 = vrot.slane %v2344, 1
      %v2347 = vor.u32 %v2342, %v2346
      %v2349 = vshll.u32 %v2195, 16
      %v2351 = vrot.slane %v2349, 1
      %v2352 = vsel %vm2208, %v2347, %v2351
      %v2354 = vshrl.u32 %v2196, 16
      %v2356 = vshll.u32 %v2196, 16
      %v2358 = vrot.slane %v2356, 1
      %v2359 = vor.u32 %v2354, %v2358
      %v2361 = vshll.u32 %v2197, 16
      %v2363 = vrot.slane %v2361, 1
      %v2364 = vsel %vm2208, %v2359, %v2363
      %v2366 = vshrl.u32 %v2198, 16
      %v2368 = vshll.u32 %v2198, 16
      %v2370 = vrot.slane %v2368, 1
      %v2371 = vor.u32 %v2366, %v2370
      %v2373 = vshll.u32 %v2199, 16
      %v2375 = vrot.slane %v2373, 1
      %v2376 = vsel %vm2208, %v2371, %v2375
      %v2378 = vshrl.u32 %v2200, 16
      %v2380 = vshll.u32 %v2200, 16
      %v2382 = vrot.slane %v2380, 1
      %v2383 = vor.u32 %v2378, %v2382
      %v2385 = vshll.u32 %v2201, 16
      %v2387 = vrot.slane %v2385, 1
      %v2388 = vsel %vm2208, %v2383, %v2387
      %v2390 = vshrl.u32 %v2202, 16
      %v2392 = vshll.u32 %v2202, 16
      %v2394 = vrot.slane %v2392, 1
      %v2395 = vor.u32 %v2390, %v2394
      %v2397 = vshll.u32 %v2203, 16
      %v2399 = vrot.slane %v2397, 1
      %v2400 = vsel %vm2208, %v2395, %v2399
      %v2402 = vshrl.u32 %v2204, 16
      %v2404 = vshll.u32 %v2204, 16
      %v2406 = vrot.slane %v2404, 1
      %v2407 = vor.u32 %v2402, %v2406
      %v2409 = vshll.u32 %v2205, 16
      %v2411 = vrot.slane %v2409, 1
      %v2412 = vsel %vm2208, %v2407, %v2411
      %v2414 = vshrl.u32 %v2206, 16
      %v2416 = vshll.u32 %v2206, 16
      %v2418 = vrot.slane %v2416, 1
      %v2419 = vor.u32 %v2414, %v2418
      %v2421 = vshll.u32 %v2207, 16
      %v2423 = vrot.slane %v2421, 1
      %v2424 = vsel %vm2208, %v2419, %v2423
      %2443 = vst [vmem:[#allocation3 + $0x8] sm:$0xff] %v2220
      %2444 = vst [vmem:[#allocation3 + $0x20] sm:$0xff] %v2232
      %2445 = vst [vmem:[#allocation3 + $0x38] sm:$0xff] %v2244
      %2446 = vst [vmem:[#allocation3 + $0x50] sm:$0xff] %v2256
      %2447 = vst [vmem:[#allocation3 + $0x68] sm:$0xff] %v2268
      %2448 = vst [vmem:[#allocation3 + $0x80] sm:$0xff] %v2280
      %2449 = vst [vmem:[#allocation3 + $0x98] sm:$0xff] %v2292
      %2450 = vst [vmem:[#allocation3 + $0xb0] sm:$0xff] %v2304
      %2451 = vst [vmem:[#allocation3 + $0xc8] sm:$0xff] %v2316
      %2452 = vst [vmem:[#allocation3 + $0xe0] sm:$0xff] %v2328
      %2453 = vst [vmem:[#allocation3 + $0xf8] sm:$0xff] %v2340
      %2454 = vst [vmem:[#allocation3 + $0x110] sm:$0xff] %v2352
      %2455 = vst [vmem:[#allocation3 + $0x128] sm:$0xff] %v2364
      %2456 = vst [vmem:[#allocation3 + $0x140] sm:$0xff] %v2376
      %2457 = vst [vmem:[#allocation3 + $0x158] sm:$0xff] %v2388
      %2458 = vst [vmem:[#allocation3 + $0x170] sm:$0xff] %v2400
      %2459 = vst [vmem:[#allocation3 + $0x188] sm:$0xff] %v2412
      %2460 = vst [vmem:[#allocation3 + $0x1a0] sm:$0xff] %v2424
      %v2461 = vld [vmem:[#allocation2] sm:$0xe]
      %v2462 = vld [vmem:[#allocation2 + $0x4] sm:$0xf]
      %v2463 = vld [vmem:[#allocation2 + $0x8] sm:$0x1]
      %v2464 = vld [vmem:[#allocation2 + $0xc] sm:$0xe]
      %v2465 = vld [vmem:[#allocation2 + $0x10] sm:$0xf]
      %v2466 = vld [vmem:[#allocation2 + $0x14] sm:$0x1]
      %v2467 = vld [vmem:[#allocation2 + $0x18] sm:$0xe]
      %v2468 = vld [vmem:[#allocation2 + $0x1c] sm:$0xf]
      %v2469 = vld [vmem:[#allocation2 + $0x20] sm:$0x1]
      %v2470 = vld [vmem:[#allocation2 + $0x24] sm:$0xe]
      %v2471 = vld [vmem:[#allocation2 + $0x28] sm:$0xf]
      %v2472 = vld [vmem:[#allocation2 + $0x2c] sm:$0x1]
      %v2473 = vld [vmem:[#allocation2 + $0x30] sm:$0xe]
      %v2474 = vld [vmem:[#allocation2 + $0x34] sm:$0xf]
      %v2475 = vld [vmem:[#allocation2 + $0x38] sm:$0x1]
      %v2476 = vld [vmem:[#allocation2 + $0x3c] sm:$0xe]
      %v2477 = vld [vmem:[#allocation2 + $0x40] sm:$0xf]
      %v2478 = vld [vmem:[#allocation2 + $0x44] sm:$0x1]
      %v2479 = vld [vmem:[#allocation2 + $0x48] sm:$0xe]
      %v2480 = vld [vmem:[#allocation2 + $0x4c] sm:$0xf]
      %v2481 = vld [vmem:[#allocation2 + $0x50] sm:$0x1]
      %v2482 = vld [vmem:[#allocation2 + $0x54] sm:$0xe]
      %v2483 = vld [vmem:[#allocation2 + $0x58] sm:$0xf]
      %v2484 = vld [vmem:[#allocation2 + $0x5c] sm:$0x1]
      %v2485 = vld [vmem:[#allocation2 + $0x60] sm:$0xe]
      %v2486 = vld [vmem:[#allocation2 + $0x64] sm:$0xf]
      %v2487 = vld [vmem:[#allocation2 + $0x68] sm:$0x1]
      %v2488 = vld [vmem:[#allocation2 + $0x6c] sm:$0xe]
      %v2489 = vld [vmem:[#allocation2 + $0x70] sm:$0xf]
      %v2490 = vld [vmem:[#allocation2 + $0x74] sm:$0x1]
      %v2491 = vld [vmem:[#allocation2 + $0x78] sm:$0xe]
      %v2492 = vld [vmem:[#allocation2 + $0x7c] sm:$0xf]
      %v2493 = vld [vmem:[#allocation2 + $0x80] sm:$0x1]
      %v2494 = vld [vmem:[#allocation2 + $0x84] sm:$0xe]
      %v2495 = vld [vmem:[#allocation2 + $0x88] sm:$0xf]
      %v2496 = vld [vmem:[#allocation2 + $0x8c] sm:$0x1]
      %v2497 = vld [vmem:[#allocation2 + $0x90] sm:$0xe]
      %v2498 = vld [vmem:[#allocation2 + $0x94] sm:$0xf]
      %v2499 = vld [vmem:[#allocation2 + $0x98] sm:$0x1]
      %v2500 = vld [vmem:[#allocation2 + $0x9c] sm:$0xe]
      %v2501 = vld [vmem:[#allocation2 + $0xa0] sm:$0xf]
      %v2502 = vld [vmem:[#allocation2 + $0xa4] sm:$0x1]
      %v2503 = vld [vmem:[#allocation2 + $0xa8] sm:$0xe]
      %v2504 = vld [vmem:[#allocation2 + $0xac] sm:$0xf]
      %v2505 = vld [vmem:[#allocation2 + $0xb0] sm:$0x1]
      %v2506 = vld [vmem:[#allocation2 + $0xb4] sm:$0xe]
      %v2507 = vld [vmem:[#allocation2 + $0xb8] sm:$0xf]
      %v2508 = vld [vmem:[#allocation2 + $0xbc] sm:$0x1]
      %v2509 = vld [vmem:[#allocation2 + $0xc0] sm:$0xe]
      %v2510 = vld [vmem:[#allocation2 + $0xc4] sm:$0xf]
      %v2511 = vld [vmem:[#allocation2 + $0xc8] sm:$0x1]
      %v2512 = vld [vmem:[#allocation2 + $0xcc] sm:$0xe]
      %v2513 = vld [vmem:[#allocation2 + $0xd0] sm:$0xf]
      %v2514 = vld [vmem:[#allocation2 + $0xd4] sm:$0x1]
      %v2569 = vunpack.c.l.b16 %v2461
      %v2570 = vunpack.c.l.b16 %v2462
      %v2571 = vunpack.c.l.b16 %v2463
      %v2572 = vunpack.c.l.b16 %v2464
      %v2573 = vunpack.c.l.b16 %v2465
      %v2574 = vunpack.c.l.b16 %v2466
      %v2575 = vunpack.c.l.b16 %v2467
      %v2576 = vunpack.c.l.b16 %v2468
      %v2577 = vunpack.c.l.b16 %v2469
      %v2578 = vunpack.c.l.b16 %v2470
      %v2579 = vunpack.c.l.b16 %v2471
      %v2580 = vunpack.c.l.b16 %v2472
      %v2581 = vunpack.c.l.b16 %v2473
      %v2582 = vunpack.c.l.b16 %v2474
      %v2583 = vunpack.c.l.b16 %v2475
      %v2584 = vunpack.c.l.b16 %v2476
      %v2585 = vunpack.c.l.b16 %v2477
      %v2586 = vunpack.c.l.b16 %v2478
      %v2587 = vunpack.c.l.b16 %v2479
      %v2588 = vunpack.c.l.b16 %v2480
      %v2589 = vunpack.c.l.b16 %v2481
      %v2590 = vunpack.c.l.b16 %v2482
      %v2591 = vunpack.c.l.b16 %v2483
      %v2592 = vunpack.c.l.b16 %v2484
      %v2593 = vunpack.c.l.b16 %v2485
      %v2594 = vunpack.c.l.b16 %v2486
      %v2595 = vunpack.c.l.b16 %v2487
      %v2596 = vunpack.c.l.b16 %v2488
      %v2597 = vunpack.c.l.b16 %v2489
      %v2598 = vunpack.c.l.b16 %v2490
      %v2599 = vunpack.c.l.b16 %v2491
      %v2600 = vunpack.c.l.b16 %v2492
      %v2601 = vunpack.c.l.b16 %v2493
      %v2602 = vunpack.c.l.b16 %v2494
      %v2603 = vunpack.c.l.b16 %v2495
      %v2604 = vunpack.c.l.b16 %v2496
      %v2605 = vunpack.c.l.b16 %v2497
      %v2606 = vunpack.c.l.b16 %v2498
      %v2607 = vunpack.c.l.b16 %v2499
      %v2608 = vunpack.c.l.b16 %v2500
      %v2609 = vunpack.c.l.b16 %v2501
      %v2610 = vunpack.c.l.b16 %v2502
      %v2611 = vunpack.c.l.b16 %v2503
      %v2612 = vunpack.c.l.b16 %v2504
      %v2613 = vunpack.c.l.b16 %v2505
      %v2614 = vunpack.c.l.b16 %v2506
      %v2615 = vunpack.c.l.b16 %v2507
      %v2616 = vunpack.c.l.b16 %v2508
      %v2617 = vunpack.c.l.b16 %v2509
      %v2618 = vunpack.c.l.b16 %v2510
      %v2619 = vunpack.c.l.b16 %v2511
      %v2620 = vunpack.c.l.b16 %v2512
      %v2621 = vunpack.c.l.b16 %v2513
      %v2622 = vunpack.c.l.b16 %v2514
      %v2623 = vpack.c.b16 %v2570, %v2569
      %v2624 = vpack.c.b16 %v2571, %v2571
      %v2625 = vpack.c.b16 %v2573, %v2572
      %v2626 = vpack.c.b16 %v2574, %v2574
      %v2627 = vpack.c.b16 %v2576, %v2575
      %v2628 = vpack.c.b16 %v2577, %v2577
      %v2629 = vpack.c.b16 %v2579, %v2578
      %v2630 = vpack.c.b16 %v2580, %v2580
      %v2631 = vpack.c.b16 %v2582, %v2581
      %v2632 = vpack.c.b16 %v2583, %v2583
      %v2633 = vpack.c.b16 %v2585, %v2584
      %v2634 = vpack.c.b16 %v2586, %v2586
      %v2635 = vpack.c.b16 %v2588, %v2587
      %v2636 = vpack.c.b16 %v2589, %v2589
      %v2637 = vpack.c.b16 %v2591, %v2590
      %v2638 = vpack.c.b16 %v2592, %v2592
      %v2639 = vpack.c.b16 %v2594, %v2593
      %v2640 = vpack.c.b16 %v2595, %v2595
      %v2641 = vpack.c.b16 %v2597, %v2596
      %v2642 = vpack.c.b16 %v2598, %v2598
      %v2643 = vpack.c.b16 %v2600, %v2599
      %v2644 = vpack.c.b16 %v2601, %v2601
      %v2645 = vpack.c.b16 %v2603, %v2602
      %v2646 = vpack.c.b16 %v2604, %v2604
      %v2647 = vpack.c.b16 %v2606, %v2605
      %v2648 = vpack.c.b16 %v2607, %v2607
      %v2649 = vpack.c.b16 %v2609, %v2608
      %v2650 = vpack.c.b16 %v2610, %v2610
      %v2651 = vpack.c.b16 %v2612, %v2611
      %v2652 = vpack.c.b16 %v2613, %v2613
      %v2653 = vpack.c.b16 %v2615, %v2614
      %v2654 = vpack.c.b16 %v2616, %v2616
      %v2655 = vpack.c.b16 %v2618, %v2617
      %v2656 = vpack.c.b16 %v2619, %v2619
      %v2657 = vpack.c.b16 %v2621, %v2620
      %v2658 = vpack.c.b16 %v2622, %v2622
      %vm2659 = vcmask 1046528
      %v2660 = vrot.slane %v2623, 1
      %v2661 = vrot.slane %v2624, 1
      %v2662 = vsel %vm2659, %v2660, %v2661
      %v2663 = vrot.slane %v2625, 1
      %v2664 = vrot.slane %v2626, 1
      %v2665 = vsel %vm2659, %v2663, %v2664
      %v2666 = vrot.slane %v2627, 1
      %v2667 = vrot.slane %v2628, 1
      %v2668 = vsel %vm2659, %v2666, %v2667
      %v2669 = vrot.slane %v2629, 1
      %v2670 = vrot.slane %v2630, 1
      %v2671 = vsel %vm2659, %v2669, %v2670
      %v2672 = vrot.slane %v2631, 1
      %v2673 = vrot.slane %v2632, 1
      %v2674 = vsel %vm2659, %v2672, %v2673
      %v2675 = vrot.slane %v2633, 1
      %v2676 = vrot.slane %v2634, 1
      %v2677 = vsel %vm2659, %v2675, %v2676
      %v2678 = vrot.slane %v2635, 1
      %v2679 = vrot.slane %v2636, 1
      %v2680 = vsel %vm2659, %v2678, %v2679
      %v2681 = vrot.slane %v2637, 1
      %v2682 = vrot.slane %v2638, 1
      %v2683 = vsel %vm2659, %v2681, %v2682
      %v2684 = vrot.slane %v2639, 1
      %v2685 = vrot.slane %v2640, 1
      %v2686 = vsel %vm2659, %v2684, %v2685
      %v2687 = vrot.slane %v2641, 1
      %v2688 = vrot.slane %v2642, 1
      %v2689 = vsel %vm2659, %v2687, %v2688
      %v2690 = vrot.slane %v2643, 1
      %v2691 = vrot.slane %v2644, 1
      %v2692 = vsel %vm2659, %v2690, %v2691
      %v2693 = vrot.slane %v2645, 1
      %v2694 = vrot.slane %v2646, 1
      %v2695 = vsel %vm2659, %v2693, %v2694
      %v2696 = vrot.slane %v2647, 1
      %v2697 = vrot.slane %v2648, 1
      %v2698 = vsel %vm2659, %v2696, %v2697
      %v2699 = vrot.slane %v2649, 1
      %v2700 = vrot.slane %v2650, 1
      %v2701 = vsel %vm2659, %v2699, %v2700
      %v2702 = vrot.slane %v2651, 1
      %v2703 = vrot.slane %v2652, 1
      %v2704 = vsel %vm2659, %v2702, %v2703
      %v2705 = vrot.slane %v2653, 1
      %v2706 = vrot.slane %v2654, 1
      %v2707 = vsel %vm2659, %v2705, %v2706
      %v2708 = vrot.slane %v2655, 1
      %v2709 = vrot.slane %v2656, 1
      %v2710 = vsel %vm2659, %v2708, %v2709
      %v2711 = vrot.slane %v2657, 1
      %v2712 = vrot.slane %v2658, 1
      %v2713 = vsel %vm2659, %v2711, %v2712
      %2732 = vst [vmem:[#allocation3 + $0x10] sm:$0xff] %v2662
      %2733 = vst [vmem:[#allocation3 + $0x28] sm:$0xff] %v2665
      %2734 = vst [vmem:[#allocation3 + $0x40] sm:$0xff] %v2668
      %2735 = vst [vmem:[#allocation3 + $0x58] sm:$0xff] %v2671
      %2736 = vst [vmem:[#allocation3 + $0x70] sm:$0xff] %v2674
      %2737 = vst [vmem:[#allocation3 + $0x88] sm:$0xff] %v2677
      %2738 = vst [vmem:[#allocation3 + $0xa0] sm:$0xff] %v2680
      %2739 = vst [vmem:[#allocation3 + $0xb8] sm:$0xff] %v2683
      %2740 = vst [vmem:[#allocation3 + $0xd0] sm:$0xff] %v2686
      %2741 = vst [vmem:[#allocation3 + $0xe8] sm:$0xff] %v2689
      %2742 = vst [vmem:[#allocation3 + $0x100] sm:$0xff] %v2692
      %2743 = vst [vmem:[#allocation3 + $0x118] sm:$0xff] %v2695
      %2744 = vst [vmem:[#allocation3 + $0x130] sm:$0xff] %v2698
      %2745 = vst [vmem:[#allocation3 + $0x148] sm:$0xff] %v2701
      %2746 = vst [vmem:[#allocation3 + $0x160] sm:$0xff] %v2704
      %2747 = vst [vmem:[#allocation3 + $0x178] sm:$0xff] %v2707
      %2748 = vst [vmem:[#allocation3 + $0x190] sm:$0xff] %v2710
      %2749 = vst [vmem:[#allocation3 + $0x1a8] sm:$0xff] %v2713
      %v2750 = vld [vmem:[#allocation3] sm:$0xff]
      %v2751 = vld [vmem:[#allocation3 + $0x8] sm:$0xff]
      %v2752 = vld [vmem:[#allocation3 + $0x10] sm:$0xff]
      %v2753 = vld [vmem:[#allocation3 + $0x18] sm:$0xff]
      %v2754 = vld [vmem:[#allocation3 + $0x20] sm:$0xff]
      %v2755 = vld [vmem:[#allocation3 + $0x28] sm:$0xff]
      %v2756 = vld [vmem:[#allocation3 + $0x30] sm:$0xff]
      %v2757 = vld [vmem:[#allocation3 + $0x38] sm:$0xff]
      %v2758 = vld [vmem:[#allocation3 + $0x40] sm:$0xff]
      %v2759 = vld [vmem:[#allocation3 + $0x48] sm:$0xff]
      %v2760 = vld [vmem:[#allocation3 + $0x50] sm:$0xff]
      %v2761 = vld [vmem:[#allocation3 + $0x58] sm:$0xff]
      %v2762 = vld [vmem:[#allocation3 + $0x60] sm:$0xff]
      %v2763 = vld [vmem:[#allocation3 + $0x68] sm:$0xff]
      %v2764 = vld [vmem:[#allocation3 + $0x70] sm:$0xff]
      %v2765 = vld [vmem:[#allocation3 + $0x78] sm:$0xff]
      %v2766 = vld [vmem:[#allocation3 + $0x80] sm:$0xff]
      %v2767 = vld [vmem:[#allocation3 + $0x88] sm:$0xff]
      %v2768 = vld [vmem:[#allocation3 + $0x90] sm:$0xff]
      %v2769 = vld [vmem:[#allocation3 + $0x98] sm:$0xff]
      %v2770 = vld [vmem:[#allocation3 + $0xa0] sm:$0xff]
      %v2771 = vld [vmem:[#allocation3 + $0xa8] sm:$0xff]
      %v2772 = vld [vmem:[#allocation3 + $0xb0] sm:$0xff]
      %v2773 = vld [vmem:[#allocation3 + $0xb8] sm:$0xff]
      %v2774 = vld [vmem:[#allocation3 + $0xc0] sm:$0xff]
      %v2775 = vld [vmem:[#allocation3 + $0xc8] sm:$0xff]
      %v2776 = vld [vmem:[#allocation3 + $0xd0] sm:$0xff]
      %v2777 = vld [vmem:[#allocation3 + $0xd8] sm:$0xff]
      %v2778 = vld [vmem:[#allocation3 + $0xe0] sm:$0xff]
      %v2779 = vld [vmem:[#allocation3 + $0xe8] sm:$0xff]
      %v2780 = vld [vmem:[#allocation3 + $0xf0] sm:$0xff]
      %v2781 = vld [vmem:[#allocation3 + $0xf8] sm:$0xff]
      %v2782 = vld [vmem:[#allocation3 + $0x100] sm:$0xff]
      %v2783 = vld [vmem:[#allocation3 + $0x108] sm:$0xff]
      %v2784 = vld [vmem:[#allocation3 + $0x110] sm:$0xff]
      %v2785 = vld [vmem:[#allocation3 + $0x118] sm:$0xff]
      %v2786 = vld [vmem:[#allocation3 + $0x120] sm:$0xff]
      %v2787 = vld [vmem:[#allocation3 + $0x128] sm:$0xff]
      %v2788 = vld [vmem:[#allocation3 + $0x130] sm:$0xff]
      %v2789 = vld [vmem:[#allocation3 + $0x138] sm:$0xff]
      %v2790 = vld [vmem:[#allocation3 + $0x140] sm:$0xff]
      %v2791 = vld [vmem:[#allocation3 + $0x148] sm:$0xff]
      %v2792 = vld [vmem:[#allocation3 + $0x150] sm:$0xff]
      %v2793 = vld [vmem:[#allocation3 + $0x158] sm:$0xff]
      %v2794 = vld [vmem:[#allocation3 + $0x160] sm:$0xff]
      %v2795 = vld [vmem:[#allocation3 + $0x168] sm:$0xff]
      %v2796 = vld [vmem:[#allocation3 + $0x170] sm:$0xff]
      %v2797 = vld [vmem:[#allocation3 + $0x178] sm:$0xff]
      %v2798 = vld [vmem:[%s4] sm:$0xf]
      %v2799 = vld [vmem:[%s4 + $0x4] sm:$0xf]
      %v2800 = vld [vmem:[%s4 + $0x8] sm:$0xf]
      %v2801 = vld [vmem:[%s4 + $0xc] sm:$0xf]
      %v2802 = vld [vmem:[%s4 + $0x10] sm:$0xf]
      %v2803 = vld [vmem:[%s4 + $0x14] sm:$0xf]
      %v2804 = vld [vmem:[%s4 + $0x18] sm:$0xf]
      %v2805 = vld [vmem:[%s4 + $0x1c] sm:$0xf]
      %v2806 = vld [vmem:[%s4 + $0x20] sm:$0xf]
      %v2807 = vld [vmem:[%s4 + $0x24] sm:$0xf]
      %v2808 = vld [vmem:[%s4 + $0x28] sm:$0xf]
      %v2809 = vld [vmem:[%s4 + $0x2c] sm:$0xf]
      %v2810 = vld [vmem:[%s4 + $0x30] sm:$0xf]
      %v2811 = vld [vmem:[%s4 + $0x34] sm:$0xf]
      %v2812 = vld [vmem:[%s4 + $0x38] sm:$0xf]
      %v2813 = vld [vmem:[%s4 + $0x3c] sm:$0xf]
      %v2814 = vld [vmem:[%s4 + $0x40] sm:$0xf]
      %v2815 = vld [vmem:[%s4 + $0x44] sm:$0xf]
      %v2816 = vld [vmem:[%s4 + $0x48] sm:$0xf]
      %v2817 = vld [vmem:[%s4 + $0x4c] sm:$0xf]
      %v2818 = vld [vmem:[%s4 + $0x50] sm:$0xf]
      %v2819 = vld [vmem:[%s4 + $0x54] sm:$0xf]
      %v2820 = vld [vmem:[%s4 + $0x58] sm:$0xf]
      %v2821 = vld [vmem:[%s4 + $0x5c] sm:$0xf]
      %v2822 = vld [vmem:[%s4 + $0x60] sm:$0xf]
      %v2823 = vld [vmem:[%s4 + $0x64] sm:$0xf]
      %v2824 = vld [vmem:[%s4 + $0x68] sm:$0xf]
      %v2825 = vld [vmem:[%s4 + $0x6c] sm:$0xf]
      %v2826 = vld [vmem:[%s4 + $0x70] sm:$0xf]
      %v2827 = vld [vmem:[%s4 + $0x74] sm:$0xf]
      %v2828 = vld [vmem:[%s4 + $0x78] sm:$0xf]
      %v2829 = vld [vmem:[%s4 + $0x7c] sm:$0xf]
      %v2830 = vld [vmem:[%s4 + $0x80] sm:$0xf]
      %v2831 = vld [vmem:[%s4 + $0x84] sm:$0xf]
      %v2832 = vld [vmem:[%s4 + $0x88] sm:$0xf]
      %v2833 = vld [vmem:[%s4 + $0x8c] sm:$0xf]
      %v2834 = vld [vmem:[%s4 + $0x90] sm:$0xf]
      %v2835 = vld [vmem:[%s4 + $0x94] sm:$0xf]
      %v2836 = vld [vmem:[%s4 + $0x98] sm:$0xf]
      %v2837 = vld [vmem:[%s4 + $0x9c] sm:$0xf]
      %v2838 = vld [vmem:[%s4 + $0xa0] sm:$0xf]
      %v2839 = vld [vmem:[%s4 + $0xa4] sm:$0xf]
      %v2840 = vld [vmem:[%s4 + $0xa8] sm:$0xf]
      %v2841 = vld [vmem:[%s4 + $0xac] sm:$0xf]
      %v2842 = vld [vmem:[%s4 + $0xb0] sm:$0xf]
      %v2843 = vld [vmem:[%s4 + $0xb4] sm:$0xf]
      %v2844 = vld [vmem:[%s4 + $0xb8] sm:$0xf]
      %v2845 = vld [vmem:[%s4 + $0xbc] sm:$0xf]
      %s2846 = scalar_lea.vmem [#allocation3], 24
      %v2847 = vld [vmem:[%s2846] sm:$0xff]
      %v2848 = vld [vmem:[%s2846 + $0x8] sm:$0xff]
      %v2849 = vld [vmem:[%s2846 + $0x10] sm:$0xff]
      %v2850 = vld [vmem:[%s2846 + $0x18] sm:$0xff]
      %v2851 = vld [vmem:[%s2846 + $0x20] sm:$0xff]
      %v2852 = vld [vmem:[%s2846 + $0x28] sm:$0xff]
      %v2853 = vld [vmem:[%s2846 + $0x30] sm:$0xff]
      %v2854 = vld [vmem:[%s2846 + $0x38] sm:$0xff]
      %v2855 = vld [vmem:[%s2846 + $0x40] sm:$0xff]
      %v2856 = vld [vmem:[%s2846 + $0x48] sm:$0xff]
      %v2857 = vld [vmem:[%s2846 + $0x50] sm:$0xff]
      %v2858 = vld [vmem:[%s2846 + $0x58] sm:$0xff]
      %v2859 = vld [vmem:[%s2846 + $0x60] sm:$0xff]
      %v2860 = vld [vmem:[%s2846 + $0x68] sm:$0xff]
      %v2861 = vld [vmem:[%s2846 + $0x70] sm:$0xff]
      %v2862 = vld [vmem:[%s2846 + $0x78] sm:$0xff]
      %v2863 = vld [vmem:[%s2846 + $0x80] sm:$0xff]
      %v2864 = vld [vmem:[%s2846 + $0x88] sm:$0xff]
      %v2865 = vld [vmem:[%s2846 + $0x90] sm:$0xff]
      %v2866 = vld [vmem:[%s2846 + $0x98] sm:$0xff]
      %v2867 = vld [vmem:[%s2846 + $0xa0] sm:$0xff]
      %v2868 = vld [vmem:[%s2846 + $0xa8] sm:$0xff]
      %v2869 = vld [vmem:[%s2846 + $0xb0] sm:$0xff]
      %v2870 = vld [vmem:[%s2846 + $0xb8] sm:$0xff]
      %v2871 = vld [vmem:[%s2846 + $0xc0] sm:$0xff]
      %v2872 = vld [vmem:[%s2846 + $0xc8] sm:$0xff]
      %v2873 = vld [vmem:[%s2846 + $0xd0] sm:$0xff]
      %v2874 = vld [vmem:[%s2846 + $0xd8] sm:$0xff]
      %v2875 = vld [vmem:[%s2846 + $0xe0] sm:$0xff]
      %v2876 = vld [vmem:[%s2846 + $0xe8] sm:$0xff]
      %v2877 = vld [vmem:[%s2846 + $0xf0] sm:$0xff]
      %v2878 = vld [vmem:[%s2846 + $0xf8] sm:$0xff]
      %v2879 = vld [vmem:[%s2846 + $0x100] sm:$0xff]
      %v2880 = vld [vmem:[%s2846 + $0x108] sm:$0xff]
      %v2881 = vld [vmem:[%s2846 + $0x110] sm:$0xff]
      %v2882 = vld [vmem:[%s2846 + $0x118] sm:$0xff]
      %v2883 = vld [vmem:[%s2846 + $0x120] sm:$0xff]
      %v2884 = vld [vmem:[%s2846 + $0x128] sm:$0xff]
      %v2885 = vld [vmem:[%s2846 + $0x130] sm:$0xff]
      %v2886 = vld [vmem:[%s2846 + $0x138] sm:$0xff]
      %v2887 = vld [vmem:[%s2846 + $0x140] sm:$0xff]
      %v2888 = vld [vmem:[%s2846 + $0x148] sm:$0xff]
      %v2889 = vld [vmem:[%s2846 + $0x150] sm:$0xff]
      %v2890 = vld [vmem:[%s2846 + $0x158] sm:$0xff]
      %v2891 = vld [vmem:[%s2846 + $0x160] sm:$0xff]
      %v2892 = vld [vmem:[%s2846 + $0x168] sm:$0xff]
      %v2893 = vld [vmem:[%s2846 + $0x170] sm:$0xff]
      %v2894 = vld [vmem:[%s2846 + $0x178] sm:$0xff]
      %s2895 = scalar_lea.vmem %s4, 192
      %v2896 = vld [vmem:[%s2895] sm:$0xf]
      %v2897 = vld [vmem:[%s2895 + $0x4] sm:$0xf]
      %v2898 = vld [vmem:[%s2895 + $0x8] sm:$0xf]
      %v2899 = vld [vmem:[%s2895 + $0xc] sm:$0xf]
      %v2900 = vld [vmem:[%s2895 + $0x10] sm:$0xf]
      %v2901 = vld [vmem:[%s2895 + $0x14] sm:$0xf]
      %v2902 = vld [vmem:[%s2895 + $0x18] sm:$0xf]
      %v2903 = vld [vmem:[%s2895 + $0x1c] sm:$0xf]
      %v2904 = vld [vmem:[%s2895 + $0x20] sm:$0xf]
      %v2905 = vld [vmem:[%s2895 + $0x24] sm:$0xf]
      %v2906 = vld [vmem:[%s2895 + $0x28] sm:$0xf]
      %v2907 = vld [vmem:[%s2895 + $0x2c] sm:$0xf]
      %v2908 = vld [vmem:[%s2895 + $0x30] sm:$0xf]
      %v2909 = vld [vmem:[%s2895 + $0x34] sm:$0xf]
      %v2910 = vld [vmem:[%s2895 + $0x38] sm:$0xf]
      %v2911 = vld [vmem:[%s2895 + $0x3c] sm:$0xf]
      %v2912 = vld [vmem:[%s2895 + $0x40] sm:$0xf]
      %v2913 = vld [vmem:[%s2895 + $0x44] sm:$0xf]
      %v2914 = vld [vmem:[%s2895 + $0x48] sm:$0xf]
      %v2915 = vld [vmem:[%s2895 + $0x4c] sm:$0xf]
      %v2916 = vld [vmem:[%s2895 + $0x50] sm:$0xf]
      %v2917 = vld [vmem:[%s2895 + $0x54] sm:$0xf]
      %v2918 = vld [vmem:[%s2895 + $0x58] sm:$0xf]
      %v2919 = vld [vmem:[%s2895 + $0x5c] sm:$0xf]
      %v2920 = vld [vmem:[%s2895 + $0x60] sm:$0xf]
      %v2921 = vld [vmem:[%s2895 + $0x64] sm:$0xf]
      %v2922 = vld [vmem:[%s2895 + $0x68] sm:$0xf]
      %v2923 = vld [vmem:[%s2895 + $0x6c] sm:$0xf]
      %v2924 = vld [vmem:[%s2895 + $0x70] sm:$0xf]
      %v2925 = vld [vmem:[%s2895 + $0x74] sm:$0xf]
      %v2926 = vld [vmem:[%s2895 + $0x78] sm:$0xf]
      %v2927 = vld [vmem:[%s2895 + $0x7c] sm:$0xf]
      %v2928 = vld [vmem:[%s2895 + $0x80] sm:$0xf]
      %v2929 = vld [vmem:[%s2895 + $0x84] sm:$0xf]
      %v2930 = vld [vmem:[%s2895 + $0x88] sm:$0xf]
      %v2931 = vld [vmem:[%s2895 + $0x8c] sm:$0xf]
      %v2932 = vld [vmem:[%s2895 + $0x90] sm:$0xf]
      %v2933 = vld [vmem:[%s2895 + $0x94] sm:$0xf]
      %v2934 = vld [vmem:[%s2895 + $0x98] sm:$0xf]
      %v2935 = vld [vmem:[%s2895 + $0x9c] sm:$0xf]
      %v2936 = vld [vmem:[%s2895 + $0xa0] sm:$0xf]
      %v2937 = vld [vmem:[%s2895 + $0xa4] sm:$0xf]
      %v2938 = vld [vmem:[%s2895 + $0xa8] sm:$0xf]
      %v2939 = vld [vmem:[%s2895 + $0xac] sm:$0xf]
      %v2940 = vld [vmem:[%s2895 + $0xb0] sm:$0xf]
      %v2941 = vld [vmem:[%s2895 + $0xb4] sm:$0xf]
      %v2942 = vld [vmem:[%s2895 + $0xb8] sm:$0xf]
      %v2943 = vld [vmem:[%s2895 + $0xbc] sm:$0xf]
      %v2992 = vunpack.c.l.b16 %v2896
      %v2993 = vunpack.c.l.b16 %v2897
      %v2994 = vunpack.c.l.b16 %v2898
      %v2995 = vunpack.c.l.b16 %v2899
      %v2996 = vunpack.c.l.b16 %v2900
      %v2997 = vunpack.c.l.b16 %v2901
      %v2998 = vunpack.c.l.b16 %v2902
      %v2999 = vunpack.c.l.b16 %v2903
      %v3000 = vunpack.c.l.b16 %v2904
      %v3001 = vunpack.c.l.b16 %v2905
      %v3002 = vunpack.c.l.b16 %v2906
      %v3003 = vunpack.c.l.b16 %v2907
      %v3004 = vunpack.c.l.b16 %v2908
      %v3005 = vunpack.c.l.b16 %v2909
      %v3006 = vunpack.c.l.b16 %v2910
      %v3007 = vunpack.c.l.b16 %v2911
      %v3008 = vunpack.c.l.b16 %v2912
      %v3009 = vunpack.c.l.b16 %v2913
      %v3010 = vunpack.c.l.b16 %v2914
      %v3011 = vunpack.c.l.b16 %v2915
      %v3012 = vunpack.c.l.b16 %v2916
      %v3013 = vunpack.c.l.b16 %v2917
      %v3014 = vunpack.c.l.b16 %v2918
      %v3015 = vunpack.c.l.b16 %v2919
      %v3016 = vunpack.c.l.b16 %v2920
      %v3017 = vunpack.c.l.b16 %v2921
      %v3018 = vunpack.c.l.b16 %v2922
      %v3019 = vunpack.c.l.b16 %v2923
      %v3020 = vunpack.c.l.b16 %v2924
      %v3021 = vunpack.c.l.b16 %v2925
      %v3022 = vunpack.c.l.b16 %v2926
      %v3023 = vunpack.c.l.b16 %v2927
      %v3024 = vunpack.c.l.b16 %v2928
      %v3025 = vunpack.c.l.b16 %v2929
      %v3026 = vunpack.c.l.b16 %v2930
      %v3027 = vunpack.c.l.b16 %v2931
      %v3028 = vunpack.c.l.b16 %v2932
      %v3029 = vunpack.c.l.b16 %v2933
      %v3030 = vunpack.c.l.b16 %v2934
      %v3031 = vunpack.c.l.b16 %v2935
      %v3032 = vunpack.c.l.b16 %v2936
      %v3033 = vunpack.c.l.b16 %v2937
      %v3034 = vunpack.c.l.b16 %v2938
      %v3035 = vunpack.c.l.b16 %v2939
      %v3036 = vunpack.c.l.b16 %v2940
      %v3037 = vunpack.c.l.b16 %v2941
      %v3038 = vunpack.c.l.b16 %v2942
      %v3039 = vunpack.c.l.b16 %v2943
      %v3040 = vpack.c.b16 %v2993, %v2992
      %v3041 = vpack.c.b16 %v2995, %v2994
      %v3042 = vpack.c.b16 %v2997, %v2996
      %v3043 = vpack.c.b16 %v2999, %v2998
      %v3044 = vpack.c.b16 %v3001, %v3000
      %v3045 = vpack.c.b16 %v3003, %v3002
      %v3046 = vpack.c.b16 %v3005, %v3004
      %v3047 = vpack.c.b16 %v3007, %v3006
      %v3048 = vpack.c.b16 %v3009, %v3008
      %v3049 = vpack.c.b16 %v3011, %v3010
      %v3050 = vpack.c.b16 %v3013, %v3012
      %v3051 = vpack.c.b16 %v3015, %v3014
      %v3052 = vpack.c.b16 %v3017, %v3016
      %v3053 = vpack.c.b16 %v3019, %v3018
      %v3054 = vpack.c.b16 %v3021, %v3020
      %v3055 = vpack.c.b16 %v3023, %v3022
      %v3056 = vpack.c.b16 %v3025, %v3024
      %v3057 = vpack.c.b16 %v3027, %v3026
      %v3058 = vpack.c.b16 %v3029, %v3028
      %v3059 = vpack.c.b16 %v3031, %v3030
      %v3060 = vpack.c.b16 %v3033, %v3032
      %v3061 = vpack.c.b16 %v3035, %v3034
      %v3062 = vpack.c.b16 %v3037, %v3036
      %v3063 = vpack.c.b16 %v3039, %v3038
      %3088 = vmatprep.subr.bf16.mxu0 0
      %3089 = vmatpush1.bf16.msra.mxu0 %v3040
      %3090 = vmatprep.subr.bf16.mxu0 0
      %3091 = vmatpush1.bf16.msra.mxu0 %v3041
      %3092 = vmatprep.subr.bf16.mxu0 0
      %3093 = vmatpush1.bf16.msra.mxu0 %v3042
      %3094 = vmatprep.subr.bf16.mxu0 0
      %3095 = vmatpush1.bf16.msra.mxu0 %v3043
      %3096 = vmatprep.subr.bf16.mxu0 0
      %3097 = vmatpush1.bf16.msra.mxu0 %v3044
      %3098 = vmatprep.subr.bf16.mxu0 0
      %3099 = vmatpush1.bf16.msra.mxu0 %v3045
      %3100 = vmatprep.subr.bf16.mxu0 0
      %3101 = vmatpush1.bf16.msra.mxu0 %v3046
      %3102 = vmatprep.subr.bf16.mxu0 0
      %3103 = vmatpush1.bf16.msra.mxu0 %v3047
      %3104 = vmatprep.subr.bf16.mxu0 0
      %3105 = vmatpush1.bf16.msra.mxu0 %v3048
      %3106 = vmatprep.subr.bf16.mxu0 0
      %3107 = vmatpush1.bf16.msra.mxu0 %v3049
      %3108 = vmatprep.subr.bf16.mxu0 0
      %3109 = vmatpush1.bf16.msra.mxu0 %v3050
      %3110 = vmatprep.subr.bf16.mxu0 0
      %3111 = vmatpush1.bf16.msra.mxu0 %v3051
      %3112 = vmatprep.subr.bf16.mxu0 0
      %3113 = vmatpush1.bf16.msra.mxu0 %v3052
      %3114 = vmatprep.subr.bf16.mxu0 0
      %3115 = vmatpush1.bf16.msra.mxu0 %v3053
      %3116 = vmatprep.subr.bf16.mxu0 0
      %3117 = vmatpush1.bf16.msra.mxu0 %v3054
      %3118 = vmatprep.subr.bf16.mxu0 0
      %3119 = vmatpush1.bf16.msra.mxu0 %v3055
      %3120 = vmatprep.mubr.bf16.mxu0 %v2848
      %3121 = vmatmul.mubr.bf16.gmra.mrb[0].mxu0 %v2847
      %v3122 = vpop.f32.mrb[0].mxu0
      %v3123 = vadd.f32 0.0, %v3122
      %v3124 = vpop.f32.mrb[0].mxu0
      %v3125 = vpop.f32.mrb[0].mxu0
      %v3126 = vadd.f32 0.0, %v3125
      %v3127 = vpop.f32.mrb[0].mxu0
      %3128 = vmatprep.mubr.bf16.mxu0 %v2851
      %3129 = vmatmul.mubr.bf16.gmra.mrb[0].mxu0 %v2850
      %v3130 = vpop.f32.mrb[0].mxu0
      %v3131 = vadd.f32 0.0, %v3130
      %v3132 = vpop.f32.mrb[0].mxu0
      %v3133 = vpop.f32.mrb[0].mxu0
      %v3134 = vadd.f32 0.0, %v3133
      %v3135 = vpop.f32.mrb[0].mxu0
      %3136 = vmatprep.mubr.bf16.mxu0 %v2854
      %3137 = vmatmul.mubr.bf16.gmra.mrb[0].mxu0 %v2853
      %v3138 = vpop.f32.mrb[0].mxu0
      %v3139 = vadd.f32 0.0, %v3138
      %v3140 = vpop.f32.mrb[0].mxu0
      %v3141 = vpop.f32.mrb[0].mxu0
      %v3142 = vadd.f32 0.0, %v3141
      %v3143 = vpop.f32.mrb[0].mxu0
      %3144 = vmatprep.mubr.bf16.mxu0 %v2857
      %3145 = vmatmul.mubr.bf16.gmra.mrb[0].mxu0 %v2856
      %v3146 = vpop.f32.mrb[0].mxu0
      %v3147 = vadd.f32 0.0, %v3146
      %v3148 = vpop.f32.mrb[0].mxu0
      %v3149 = vpop.f32.mrb[0].mxu0
      %v3150 = vadd.f32 0.0, %v3149
      %v3151 = vpop.f32.mrb[0].mxu0
      %3152 = vmatprep.mubr.bf16.mxu0 %v2860
      %3153 = vmatmul.mubr.bf16.gmra.mrb[0].mxu0 %v2859
      %v3154 = vpop.f32.mrb[0].mxu0
      %v3155 = vadd.f32 0.0, %v3154
      %v3156 = vpop.f32.mrb[0].mxu0
      %v3157 = vpop.f32.mrb[0].mxu0
      %v3158 = vadd.f32 0.0, %v3157
      %v3159 = vpop.f32.mrb[0].mxu0
      %3160 = vmatprep.mubr.bf16.mxu0 %v2863
      %3161 = vmatmul.mubr.bf16.gmra.mrb[0].mxu0 %v2862
      %v3162 = vpop.f32.mrb[0].mxu0
      %v3163 = vadd.f32 0.0, %v3162
      %v3164 = vpop.f32.mrb[0].mxu0
      %v3165 = vpop.f32.mrb[0].mxu0
      %v3166 = vadd.f32 0.0, %v3165
      %v3167 = vpop.f32.mrb[0].mxu0
      %3168 = vmatprep.mubr.bf16.mxu0 %v2866
      %3169 = vmatmul.mubr.bf16.gmra.mrb[0].mxu0 %v2865
      %v3170 = vpop.f32.mrb[0].mxu0
      %v3171 = vadd.f32 0.0, %v3170
      %v3172 = vpop.f32.mrb[0].mxu0
      %v3173 = vpop.f32.mrb[0].mxu0
      %v3174 = vadd.f32 0.0, %v3173
      %v3175 = vpop.f32.mrb[0].mxu0
      %3176 = vmatprep.mubr.bf16.mxu0 %v2869
      %3177 = vmatmul.mubr.bf16.gmra.mrb[0].mxu0 %v2868
      %v3178 = vpop.f32.mrb[0].mxu0
      %v3179 = vadd.f32 0.0, %v3178
      %v3180 = vpop.f32.mrb[0].mxu0
      %v3181 = vpop.f32.mrb[0].mxu0
      %v3182 = vadd.f32 0.0, %v3181
      %v3183 = vpop.f32.mrb[0].mxu0
      %3184 = vmatprep.mubr.bf16.mxu0 %v2872
      %3185 = vmatmul.mubr.bf16.gmra.mrb[0].mxu0 %v2871
      %v3186 = vpop.f32.mrb[0].mxu0
      %v3187 = vadd.f32 0.0, %v3186
      %v3188 = vpop.f32.mrb[0].mxu0
      %v3189 = vpop.f32.mrb[0].mxu0
      %v3190 = vadd.f32 0.0, %v3189
      %v3191 = vpop.f32.mrb[0].mxu0
      %3192 = vmatprep.mubr.bf16.mxu0 %v2875
      %3193 = vmatmul.mubr.bf16.gmra.mrb[0].mxu0 %v2874
      %v3194 = vpop.f32.mrb[0].mxu0
      %v3195 = vadd.f32 0.0, %v3194
      %v3196 = vpop.f32.mrb[0].mxu0
      %v3197 = vpop.f32.mrb[0].mxu0
      %v3198 = vadd.f32 0.0, %v3197
      %v3199 = vpop.f32.mrb[0].mxu0
      %3200 = vmatprep.mubr.bf16.mxu0 %v2878
      %3201 = vmatmul.mubr.bf16.gmra.mrb[0].mxu0 %v2877
      %v3202 = vpop.f32.mrb[0].mxu0
      %v3203 = vadd.f32 0.0, %v3202
      %v3204 = vpop.f32.mrb[0].mxu0
      %v3205 = vpop.f32.mrb[0].mxu0
      %v3206 = vadd.f32 0.0, %v3205
      %v3207 = vpop.f32.mrb[0].mxu0
      %3208 = vmatprep.mubr.bf16.mxu0 %v2881
      %3209 = vmatmul.mubr.bf16.gmra.mrb[0].mxu0 %v2880
      %v3210 = vpop.f32.mrb[0].mxu0
      %v3211 = vadd.f32 0.0, %v3210
      %v3212 = vpop.f32.mrb[0].mxu0
      %v3213 = vpop.f32.mrb[0].mxu0
      %v3214 = vadd.f32 0.0, %v3213
      %v3215 = vpop.f32.mrb[0].mxu0
      %3216 = vmatprep.mubr.bf16.mxu0 %v2884
      %3217 = vmatmul.mubr.bf16.gmra.mrb[0].mxu0 %v2883
      %v3218 = vpop.f32.mrb[0].mxu0
      %v3219 = vadd.f32 0.0, %v3218
      %v3220 = vpop.f32.mrb[0].mxu0
      %v3221 = vpop.f32.mrb[0].mxu0
      %v3222 = vadd.f32 0.0, %v3221
      %v3223 = vpop.f32.mrb[0].mxu0
      %3224 = vmatprep.mubr.bf16.mxu0 %v2887
      %3225 = vmatmul.mubr.bf16.gmra.mrb[0].mxu0 %v2886
      %v3226 = vpop.f32.mrb[0].mxu0
      %v3227 = vadd.f32 0.0, %v3226
      %v3228 = vpop.f32.mrb[0].mxu0
      %v3229 = vpop.f32.mrb[0].mxu0
      %v3230 = vadd.f32 0.0, %v3229
      %v3231 = vpop.f32.mrb[0].mxu0
      %3232 = vmatprep.mubr.bf16.mxu0 %v2890
      %3233 = vmatmul.mubr.bf16.gmra.mrb[0].mxu0 %v2889
      %v3234 = vpop.f32.mrb[0].mxu0
      %v3235 = vadd.f32 0.0, %v3234
      %v3236 = vpop.f32.mrb[0].mxu0
      %v3237 = vpop.f32.mrb[0].mxu0
      %v3238 = vadd.f32 0.0, %v3237
      %v3239 = vpop.f32.mrb[0].mxu0
      %3240 = vmatprep.mubr.bf16.mxu0 %v2893
      %3241 = vmatmul.mubr.bf16.gmra.mrb[0].mxu0 %v2892
      %v3242 = vpop.f32.mrb[0].mxu0
      %v3243 = vadd.f32 0.0, %v3242
      %v3244 = vpop.f32.mrb[0].mxu0
      %v3245 = vpop.f32.mrb[0].mxu0
      %v3246 = vadd.f32 0.0, %v3245
      %v3247 = vpop.f32.mrb[0].mxu0
      %3248 = vdwg.mxu0
      %3249 = vmatprep.subr.bf16.mxu0 0
      %3250 = vmatpush1.bf16.msra.mxu0 %v3056
      %3251 = vmatprep.subr.bf16.mxu0 0
      %3252 = vmatpush1.bf16.msra.mxu0 %v3057
      %3253 = vmatprep.subr.bf16.mxu0 0
      %3254 = vmatpush1.bf16.msra.mxu0 %v3058
      %3255 = vmatprep.subr.bf16.mxu0 0
      %3256 = vmatpush1.bf16.msra.mxu0 %v3059
      %3257 = vmatprep.subr.bf16.mxu0 0
      %3258 = vmatpush1.bf16.msra.mxu0 %v3060
      %3259 = vmatprep.subr.bf16.mxu0 0
      %3260 = vmatpush1.bf16.msra.mxu0 %v3061
      %3261 = vmatprep.subr.bf16.mxu0 0
      %3262 = vmatpush1.bf16.msra.mxu0 %v3062
      %3263 = vmatprep.subr.bf16.mxu0 0
      %3264 = vmatpush1.bf16.msra.mxu0 %v3063
      %3265 = vmatprep.subr.bf16.mxu0 0
      %3266 = vmatpush1.bf16.msra.mxu0 0
      %3267 = vmatprep.subr.bf16.mxu0 0
      %3268 = vmatpush1.bf16.msra.mxu0 0
      %3269 = vmatprep.subr.bf16.mxu0 0
      %3270 = vmatpush1.bf16.msra.mxu0 0
      %3271 = vmatprep.subr.bf16.mxu0 0
      %3272 = vmatpush1.bf16.msra.mxu0 0
      %3273 = vmatprep.subr.bf16.mxu0 0
      %3274 = vmatpush1.bf16.msra.mxu0 0
      %3275 = vmatprep.subr.bf16.mxu0 0
      %3276 = vmatpush1.bf16.msra.mxu0 0
      %3277 = vmatprep.subr.bf16.mxu0 0
      %3278 = vmatpush1.bf16.msra.mxu0 0
      %3279 = vmatprep.subr.bf16.mxu0 0
      %3280 = vmatpush1.bf16.msra.mxu0 0
      %3281 = vmatprep.mubr.bf16.mxu0 0
      %3282 = vmatmul.mubr.bf16.gmra.mrb[0].mxu0 %v2849
      %v3283 = vpop.f32.mrb[0].mxu0
      %v3284 = vadd.f32 %v3123, %v3283
      %v3285 = vpop.f32.mrb[0].mxu0
      %v3286 = vpop.f32.mrb[0].mxu0
      %v3287 = vadd.f32 %v3126, %v3286
      %v3288 = vpop.f32.mrb[0].mxu0
      %3289 = vmatprep.mubr.bf16.mxu0 0
      %3290 = vmatmul.mubr.bf16.gmra.mrb[0].mxu0 %v2852
      %v3291 = vpop.f32.mrb[0].mxu0
      %v3292 = vadd.f32 %v3131, %v3291
      %v3293 = vpop.f32.mrb[0].mxu0
      %v3294 = vpop.f32.mrb[0].mxu0
      %v3295 = vadd.f32 %v3134, %v3294
      %v3296 = vpop.f32.mrb[0].mxu0
      %3297 = vmatprep.mubr.bf16.mxu0 0
      %3298 = vmatmul.mubr.bf16.gmra.mrb[0].mxu0 %v2855
      %v3299 = vpop.f32.mrb[0].mxu0
      %v3300 = vadd.f32 %v3139, %v3299
      %v3301 = vpop.f32.mrb[0].mxu0
      %v3302 = vpop.f32.mrb[0].mxu0
      %v3303 = vadd.f32 %v3142, %v3302
      %v3304 = vpop.f32.mrb[0].mxu0
      %3305 = vmatprep.mubr.bf16.mxu0 0
      %3306 = vmatmul.mubr.bf16.gmra.mrb[0].mxu0 %v2858
      %v3307 = vpop.f32.mrb[0].mxu0
      %v3308 = vadd.f32 %v3147, %v3307
      %v3309 = vpop.f32.mrb[0].mxu0
      %v3310 = vpop.f32.mrb[0].mxu0
      %v3311 = vadd.f32 %v3150, %v3310
      %v3312 = vpop.f32.mrb[0].mxu0
      %3313 = vmatprep.mubr.bf16.mxu0 0
      %3314 = vmatmul.mubr.bf16.gmra.mrb[0].mxu0 %v2861
      %v3315 = vpop.f32.mrb[0].mxu0
      %v3316 = vadd.f32 %v3155, %v3315
      %v3317 = vpop.f32.mrb[0].mxu0
      %v3318 = vpop.f32.mrb[0].mxu0
      %v3319 = vadd.f32 %v3158, %v3318
      %v3320 = vpop.f32.mrb[0].mxu0
      %3321 = vmatprep.mubr.bf16.mxu0 0
      %3322 = vmatmul.mubr.bf16.gmra.mrb[0].mxu0 %v2864
      %v3323 = vpop.f32.mrb[0].mxu0
      %v3324 = vadd.f32 %v3163, %v3323
      %v3325 = vpop.f32.mrb[0].mxu0
      %v3326 = vpop.f32.mrb[0].mxu0
      %v3327 = vadd.f32 %v3166, %v3326
      %v3328 = vpop.f32.mrb[0].mxu0
      %3329 = vmatprep.mubr.bf16.mxu0 0
      %3330 = vmatmul.mubr.bf16.gmra.mrb[0].mxu0 %v2867
      %v3331 = vpop.f32.mrb[0].mxu0
      %v3332 = vadd.f32 %v3171, %v3331
      %v3333 = vpop.f32.mrb[0].mxu0
      %v3334 = vpop.f32.mrb[0].mxu0
      %v3335 = vadd.f32 %v3174, %v3334
      %v3336 = vpop.f32.mrb[0].mxu0
      %3337 = vmatprep.mubr.bf16.mxu0 0
      %3338 = vmatmul.mubr.bf16.gmra.mrb[0].mxu0 %v2870
      %v3339 = vpop.f32.mrb[0].mxu0
      %v3340 = vadd.f32 %v3179, %v3339
      %v3341 = vpop.f32.mrb[0].mxu0
      %v3342 = vpop.f32.mrb[0].mxu0
      %v3343 = vadd.f32 %v3182, %v3342
      %v3344 = vpop.f32.mrb[0].mxu0
      %3345 = vmatprep.mubr.bf16.mxu0 0
      %3346 = vmatmul.mubr.bf16.gmra.mrb[0].mxu0 %v2873
      %v3347 = vpop.f32.mrb[0].mxu0
      %v3348 = vadd.f32 %v3187, %v3347
      %v3349 = vpop.f32.mrb[0].mxu0
      %v3350 = vpop.f32.mrb[0].mxu0
      %v3351 = vadd.f32 %v3190, %v3350
      %v3352 = vpop.f32.mrb[0].mxu0
      %3353 = vmatprep.mubr.bf16.mxu0 0
      %3354 = vmatmul.mubr.bf16.gmra.mrb[0].mxu0 %v2876
      %v3355 = vpop.f32.mrb[0].mxu0
      %v3356 = vadd.f32 %v3195, %v3355
      %v3357 = vpop.f32.mrb[0].mxu0
      %v3358 = vpop.f32.mrb[0].mxu0
      %v3359 = vadd.f32 %v3198, %v3358
      %v3360 = vpop.f32.mrb[0].mxu0
      %3361 = vmatprep.mubr.bf16.mxu0 0
      %3362 = vmatmul.mubr.bf16.gmra.mrb[0].mxu0 %v2879
      %v3363 = vpop.f32.mrb[0].mxu0
      %v3364 = vadd.f32 %v3203, %v3363
      %v3365 = vpop.f32.mrb[0].mxu0
      %v3366 = vpop.f32.mrb[0].mxu0
      %v3367 = vadd.f32 %v3206, %v3366
      %v3368 = vpop.f32.mrb[0].mxu0
      %3369 = vmatprep.mubr.bf16.mxu0 0
      %3370 = vmatmul.mubr.bf16.gmra.mrb[0].mxu0 %v2882
      %v3371 = vpop.f32.mrb[0].mxu0
      %v3372 = vadd.f32 %v3211, %v3371
      %v3373 = vpop.f32.mrb[0].mxu0
      %v3374 = vpop.f32.mrb[0].mxu0
      %v3375 = vadd.f32 %v3214, %v3374
      %v3376 = vpop.f32.mrb[0].mxu0
      %3377 = vmatprep.mubr.bf16.mxu0 0
      %3378 = vmatmul.mubr.bf16.gmra.mrb[0].mxu0 %v2885
      %v3379 = vpop.f32.mrb[0].mxu0
      %v3380 = vadd.f32 %v3219, %v3379
      %v3381 = vpop.f32.mrb[0].mxu0
      %v3382 = vpop.f32.mrb[0].mxu0
      %v3383 = vadd.f32 %v3222, %v3382
      %v3384 = vpop.f32.mrb[0].mxu0
      %3385 = vmatprep.mubr.bf16.mxu0 0
      %3386 = vmatmul.mubr.bf16.gmra.mrb[0].mxu0 %v2888
      %v3387 = vpop.f32.mrb[0].mxu0
      %v3388 = vadd.f32 %v3227, %v3387
      %v3389 = vpop.f32.mrb[0].mxu0
      %v3390 = vpop.f32.mrb[0].mxu0
      %v3391 = vadd.f32 %v3230, %v3390
      %v3392 = vpop.f32.mrb[0].mxu0
      %3393 = vmatprep.mubr.bf16.mxu0 0
      %3394 = vmatmul.mubr.bf16.gmra.mrb[0].mxu0 %v2891
      %v3395 = vpop.f32.mrb[0].mxu0
      %v3396 = vadd.f32 %v3235, %v3395
      %v3397 = vpop.f32.mrb[0].mxu0
      %v3398 = vpop.f32.mrb[0].mxu0
      %v3399 = vadd.f32 %v3238, %v3398
      %v3400 = vpop.f32.mrb[0].mxu0
      %3401 = vmatprep.mubr.bf16.mxu0 0
      %3402 = vmatmul.mubr.bf16.gmra.mrb[0].mxu0 %v2894
      %v3403 = vpop.f32.mrb[0].mxu0
      %v3404 = vadd.f32 %v3243, %v3403
      %v3405 = vpop.f32.mrb[0].mxu0
      %v3406 = vpop.f32.mrb[0].mxu0
      %v3407 = vadd.f32 %v3246, %v3406
      %v3408 = vpop.f32.mrb[0].mxu0
      %3409 = vdwg.mxu0
      %v3458 = vunpack.c.l.b16 %v2798
      %v3459 = vunpack.c.l.b16 %v2799
      %v3460 = vunpack.c.l.b16 %v2800
      %v3461 = vunpack.c.l.b16 %v2801
      %v3462 = vunpack.c.l.b16 %v2802
      %v3463 = vunpack.c.l.b16 %v2803
      %v3464 = vunpack.c.l.b16 %v2804
      %v3465 = vunpack.c.l.b16 %v2805
      %v3466 = vunpack.c.l.b16 %v2806
      %v3467 = vunpack.c.l.b16 %v2807
      %v3468 = vunpack.c.l.b16 %v2808
      %v3469 = vunpack.c.l.b16 %v2809
      %v3470 = vunpack.c.l.b16 %v2810
      %v3471 = vunpack.c.l.b16 %v2811
      %v3472 = vunpack.c.l.b16 %v2812
      %v3473 = vunpack.c.l.b16 %v2813
      %v3474 = vunpack.c.l.b16 %v2814
      %v3475 = vunpack.c.l.b16 %v2815
      %v3476 = vunpack.c.l.b16 %v2816
      %v3477 = vunpack.c.l.b16 %v2817
      %v3478 = vunpack.c.l.b16 %v2818
      %v3479 = vunpack.c.l.b16 %v2819
      %v3480 = vunpack.c.l.b16 %v2820
      %v3481 = vunpack.c.l.b16 %v2821
      %v3482 = vunpack.c.l.b16 %v2822
      %v3483 = vunpack.c.l.b16 %v2823
      %v3484 = vunpack.c.l.b16 %v2824
      %v3485 = vunpack.c.l.b16 %v2825
      %v3486 = vunpack.c.l.b16 %v2826
      %v3487 = vunpack.c.l.b16 %v2827
      %v3488 = vunpack.c.l.b16 %v2828
      %v3489 = vunpack.c.l.b16 %v2829
      %v3490 = vunpack.c.l.b16 %v2830
      %v3491 = vunpack.c.l.b16 %v2831
      %v3492 = vunpack.c.l.b16 %v2832
      %v3493 = vunpack.c.l.b16 %v2833
      %v3494 = vunpack.c.l.b16 %v2834
      %v3495 = vunpack.c.l.b16 %v2835
      %v3496 = vunpack.c.l.b16 %v2836
      %v3497 = vunpack.c.l.b16 %v2837
      %v3498 = vunpack.c.l.b16 %v2838
      %v3499 = vunpack.c.l.b16 %v2839
      %v3500 = vunpack.c.l.b16 %v2840
      %v3501 = vunpack.c.l.b16 %v2841
      %v3502 = vunpack.c.l.b16 %v2842
      %v3503 = vunpack.c.l.b16 %v2843
      %v3504 = vunpack.c.l.b16 %v2844
      %v3505 = vunpack.c.l.b16 %v2845
      %v3506 = vpack.c.b16 %v3459, %v3458
      %v3507 = vpack.c.b16 %v3461, %v3460
      %v3508 = vpack.c.b16 %v3463, %v3462
      %v3509 = vpack.c.b16 %v3465, %v3464
      %v3510 = vpack.c.b16 %v3467, %v3466
      %v3511 = vpack.c.b16 %v3469, %v3468
      %v3512 = vpack.c.b16 %v3471, %v3470
      %v3513 = vpack.c.b16 %v3473, %v3472
      %v3514 = vpack.c.b16 %v3475, %v3474
      %v3515 = vpack.c.b16 %v3477, %v3476
      %v3516 = vpack.c.b16 %v3479, %v3478
      %v3517 = vpack.c.b16 %v3481, %v3480
      %v3518 = vpack.c.b16 %v3483, %v3482
      %v3519 = vpack.c.b16 %v3485, %v3484
      %v3520 = vpack.c.b16 %v3487, %v3486
      %v3521 = vpack.c.b16 %v3489, %v3488
      %v3522 = vpack.c.b16 %v3491, %v3490
      %v3523 = vpack.c.b16 %v3493, %v3492
      %v3524 = vpack.c.b16 %v3495, %v3494
      %v3525 = vpack.c.b16 %v3497, %v3496
      %v3526 = vpack.c.b16 %v3499, %v3498
      %v3527 = vpack.c.b16 %v3501, %v3500
      %v3528 = vpack.c.b16 %v3503, %v3502
      %v3529 = vpack.c.b16 %v3505, %v3504
      %3554 = vmatprep.subr.bf16.mxu0 0
      %3555 = vmatpush1.bf16.msra.mxu0 %v3506
      %3556 = vmatprep.subr.bf16.mxu0 0
      %3557 = vmatpush1.bf16.msra.mxu0 %v3507
      %3558 = vmatprep.subr.bf16.mxu0 0
      %3559 = vmatpush1.bf16.msra.mxu0 %v3508
      %3560 = vmatprep.subr.bf16.mxu0 0
      %3561 = vmatpush1.bf16.msra.mxu0 %v3509
      %3562 = vmatprep.subr.bf16.mxu0 0
      %3563 = vmatpush1.bf16.msra.mxu0 %v3510
      %3564 = vmatprep.subr.bf16.mxu0 0
      %3565 = vmatpush1.bf16.msra.mxu0 %v3511
      %3566 = vmatprep.subr.bf16.mxu0 0
      %3567 = vmatpush1.bf16.msra.mxu0 %v3512
      %3568 = vmatprep.subr.bf16.mxu0 0
      %3569 = vmatpush1.bf16.msra.mxu0 %v3513
      %3570 = vmatprep.subr.bf16.mxu0 0
      %3571 = vmatpush1.bf16.msra.mxu0 %v3514
      %3572 = vmatprep.subr.bf16.mxu0 0
      %3573 = vmatpush1.bf16.msra.mxu0 %v3515
      %3574 = vmatprep.subr.bf16.mxu0 0
      %3575 = vmatpush1.bf16.msra.mxu0 %v3516
      %3576 = vmatprep.subr.bf16.mxu0 0
      %3577 = vmatpush1.bf16.msra.mxu0 %v3517
      %3578 = vmatprep.subr.bf16.mxu0 0
      %3579 = vmatpush1.bf16.msra.mxu0 %v3518
      %3580 = vmatprep.subr.bf16.mxu0 0
      %3581 = vmatpush1.bf16.msra.mxu0 %v3519
      %3582 = vmatprep.subr.bf16.mxu0 0
      %3583 = vmatpush1.bf16.msra.mxu0 %v3520
      %3584 = vmatprep.subr.bf16.mxu0 0
      %3585 = vmatpush1.bf16.msra.mxu0 %v3521
      %3586 = vmatprep.mubr.bf16.mxu0 %v2751
      %3587 = vmatmul.mubr.bf16.gmra.mrb[0].mxu0 %v2750
      %v3588 = vpop.f32.mrb[0].mxu0
      %v3589 = vadd.f32 %v3284, %v3588
      %v3590 = vpop.f32.mrb[0].mxu0
      %v3591 = vpop.f32.mrb[0].mxu0
      %v3592 = vadd.f32 %v3287, %v3591
      %v3593 = vpop.f32.mrb[0].mxu0
      %3594 = vmatprep.mubr.bf16.mxu0 %v2754
      %3595 = vmatmul.mubr.bf16.gmra.mrb[0].mxu0 %v2753
      %v3596 = vpop.f32.mrb[0].mxu0
      %v3597 = vadd.f32 %v3292, %v3596
      %v3598 = vpop.f32.mrb[0].mxu0
      %v3599 = vpop.f32.mrb[0].mxu0
      %v3600 = vadd.f32 %v3295, %v3599
      %v3601 = vpop.f32.mrb[0].mxu0
      %3602 = vmatprep.mubr.bf16.mxu0 %v2757
      %3603 = vmatmul.mubr.bf16.gmra.mrb[0].mxu0 %v2756
      %v3604 = vpop.f32.mrb[0].mxu0
      %v3605 = vadd.f32 %v3300, %v3604
      %v3606 = vpop.f32.mrb[0].mxu0
      %v3607 = vpop.f32.mrb[0].mxu0
      %v3608 = vadd.f32 %v3303, %v3607
      %v3609 = vpop.f32.mrb[0].mxu0
      %3610 = vmatprep.mubr.bf16.mxu0 %v2760
      %3611 = vmatmul.mubr.bf16.gmra.mrb[0].mxu0 %v2759
      %v3612 = vpop.f32.mrb[0].mxu0
      %v3613 = vadd.f32 %v3308, %v3612
      %v3614 = vpop.f32.mrb[0].mxu0
      %v3615 = vpop.f32.mrb[0].mxu0
      %v3616 = vadd.f32 %v3311, %v3615
      %v3617 = vpop.f32.mrb[0].mxu0
      %3618 = vmatprep.mubr.bf16.mxu0 %v2763
      %3619 = vmatmul.mubr.bf16.gmra.mrb[0].mxu0 %v2762
      %v3620 = vpop.f32.mrb[0].mxu0
      %v3621 = vadd.f32 %v3316, %v3620
      %v3622 = vpop.f32.mrb[0].mxu0
      %v3623 = vpop.f32.mrb[0].mxu0
      %v3624 = vadd.f32 %v3319, %v3623
      %v3625 = vpop.f32.mrb[0].mxu0
      %3626 = vmatprep.mubr.bf16.mxu0 %v2766
      %3627 = vmatmul.mubr.bf16.gmra.mrb[0].mxu0 %v2765
      %v3628 = vpop.f32.mrb[0].mxu0
      %v3629 = vadd.f32 %v3324, %v3628
      %v3630 = vpop.f32.mrb[0].mxu0
      %v3631 = vpop.f32.mrb[0].mxu0
      %v3632 = vadd.f32 %v3327, %v3631
      %v3633 = vpop.f32.mrb[0].mxu0
      %3634 = vmatprep.mubr.bf16.mxu0 %v2769
      %3635 = vmatmul.mubr.bf16.gmra.mrb[0].mxu0 %v2768
      %v3636 = vpop.f32.mrb[0].mxu0
      %v3637 = vadd.f32 %v3332, %v3636
      %v3638 = vpop.f32.mrb[0].mxu0
      %v3639 = vpop.f32.mrb[0].mxu0
      %v3640 = vadd.f32 %v3335, %v3639
      %v3641 = vpop.f32.mrb[0].mxu0
      %3642 = vmatprep.mubr.bf16.mxu0 %v2772
      %3643 = vmatmul.mubr.bf16.gmra.mrb[0].mxu0 %v2771
      %v3644 = vpop.f32.mrb[0].mxu0
      %v3645 = vadd.f32 %v3340, %v3644
      %v3646 = vpop.f32.mrb[0].mxu0
      %v3647 = vpop.f32.mrb[0].mxu0
      %v3648 = vadd.f32 %v3343, %v3647
      %v3649 = vpop.f32.mrb[0].mxu0
      %3650 = vmatprep.mubr.bf16.mxu0 %v2775
      %3651 = vmatmul.mubr.bf16.gmra.mrb[0].mxu0 %v2774
      %v3652 = vpop.f32.mrb[0].mxu0
      %v3653 = vadd.f32 %v3348, %v3652
      %v3654 = vpop.f32.mrb[0].mxu0
      %v3655 = vpop.f32.mrb[0].mxu0
      %v3656 = vadd.f32 %v3351, %v3655
      %v3657 = vpop.f32.mrb[0].mxu0
      %3658 = vmatprep.mubr.bf16.mxu0 %v2778
      %3659 = vmatmul.mubr.bf16.gmra.mrb[0].mxu0 %v2777
      %v3660 = vpop.f32.mrb[0].mxu0
      %v3661 = vadd.f32 %v3356, %v3660
      %v3662 = vpop.f32.mrb[0].mxu0
      %v3663 = vpop.f32.mrb[0].mxu0
      %v3664 = vadd.f32 %v3359, %v3663
      %v3665 = vpop.f32.mrb[0].mxu0
      %3666 = vmatprep.mubr.bf16.mxu0 %v2781
      %3667 = vmatmul.mubr.bf16.gmra.mrb[0].mxu0 %v2780
      %v3668 = vpop.f32.mrb[0].mxu0
      %v3669 = vadd.f32 %v3364, %v3668
      %v3670 = vpop.f32.mrb[0].mxu0
      %v3671 = vpop.f32.mrb[0].mxu0
      %v3672 = vadd.f32 %v3367, %v3671
      %v3673 = vpop.f32.mrb[0].mxu0
      %3674 = vmatprep.mubr.bf16.mxu0 %v2784
      %3675 = vmatmul.mubr.bf16.gmra.mrb[0].mxu0 %v2783
      %v3676 = vpop.f32.mrb[0].mxu0
      %v3677 = vadd.f32 %v3372, %v3676
      %v3678 = vpop.f32.mrb[0].mxu0
      %v3679 = vpop.f32.mrb[0].mxu0
      %v3680 = vadd.f32 %v3375, %v3679
      %v3681 = vpop.f32.mrb[0].mxu0
      %3682 = vmatprep.mubr.bf16.mxu0 %v2787
      %3683 = vmatmul.mubr.bf16.gmra.mrb[0].mxu0 %v2786
      %v3684 = vpop.f32.mrb[0].mxu0
      %v3685 = vadd.f32 %v3380, %v3684
      %v3686 = vpop.f32.mrb[0].mxu0
      %v3687 = vpop.f32.mrb[0].mxu0
      %v3688 = vadd.f32 %v3383, %v3687
      %v3689 = vpop.f32.mrb[0].mxu0
      %3690 = vmatprep.mubr.bf16.mxu0 %v2790
      %3691 = vmatmul.mubr.bf16.gmra.mrb[0].mxu0 %v2789
      %v3692 = vpop.f32.mrb[0].mxu0
      %v3693 = vadd.f32 %v3388, %v3692
      %v3694 = vpop.f32.mrb[0].mxu0
      %v3695 = vpop.f32.mrb[0].mxu0
      %v3696 = vadd.f32 %v3391, %v3695
      %v3697 = vpop.f32.mrb[0].mxu0
      %3698 = vmatprep.mubr.bf16.mxu0 %v2793
      %3699 = vmatmul.mubr.bf16.gmra.mrb[0].mxu0 %v2792
      %v3700 = vpop.f32.mrb[0].mxu0
      %v3701 = vadd.f32 %v3396, %v3700
      %v3702 = vpop.f32.mrb[0].mxu0
      %v3703 = vpop.f32.mrb[0].mxu0
      %v3704 = vadd.f32 %v3399, %v3703
      %v3705 = vpop.f32.mrb[0].mxu0
      %3706 = vmatprep.mubr.bf16.mxu0 %v2796
      %3707 = vmatmul.mubr.bf16.gmra.mrb[0].mxu0 %v2795
      %v3708 = vpop.f32.mrb[0].mxu0
      %v3709 = vadd.f32 %v3404, %v3708
      %v3710 = vpop.f32.mrb[0].mxu0
      %v3711 = vpop.f32.mrb[0].mxu0
      %v3712 = vadd.f32 %v3407, %v3711
      %v3713 = vpop.f32.mrb[0].mxu0
      %3714 = vdwg.mxu0
      %3715 = vmatprep.subr.bf16.mxu0 0
      %3716 = vmatpush1.bf16.msra.mxu0 %v3522
      %3717 = vmatprep.subr.bf16.mxu0 0
      %3718 = vmatpush1.bf16.msra.mxu0 %v3523
      %3719 = vmatprep.subr.bf16.mxu0 0
      %3720 = vmatpush1.bf16.msra.mxu0 %v3524
      %3721 = vmatprep.subr.bf16.mxu0 0
      %3722 = vmatpush1.bf16.msra.mxu0 %v3525
      %3723 = vmatprep.subr.bf16.mxu0 0
      %3724 = vmatpush1.bf16.msra.mxu0 %v3526
      %3725 = vmatprep.subr.bf16.mxu0 0
      %3726 = vmatpush1.bf16.msra.mxu0 %v3527
      %3727 = vmatprep.subr.bf16.mxu0 0
      %3728 = vmatpush1.bf16.msra.mxu0 %v3528
      %3729 = vmatprep.subr.bf16.mxu0 0
      %3730 = vmatpush1.bf16.msra.mxu0 %v3529
      %3731 = vmatprep.subr.bf16.mxu0 0
      %3732 = vmatpush1.bf16.msra.mxu0 0
      %3733 = vmatprep.subr.bf16.mxu0 0
      %3734 = vmatpush1.bf16.msra.mxu0 0
      %3735 = vmatprep.subr.bf16.mxu0 0
      %3736 = vmatpush1.bf16.msra.mxu0 0
      %3737 = vmatprep.subr.bf16.mxu0 0
      %3738 = vmatpush1.bf16.msra.mxu0 0
      %3739 = vmatprep.subr.bf16.mxu0 0
      %3740 = vmatpush1.bf16.msra.mxu0 0
      %3741 = vmatprep.subr.bf16.mxu0 0
      %3742 = vmatpush1.bf16.msra.mxu0 0
      %3743 = vmatprep.subr.bf16.mxu0 0
      %3744 = vmatpush1.bf16.msra.mxu0 0
      %3745 = vmatprep.subr.bf16.mxu0 0
      %3746 = vmatpush1.bf16.msra.mxu0 0
      %3747 = vmatprep.mubr.bf16.mxu0 0
      %3748 = vmatmul.mubr.bf16.gmra.mrb[0].mxu0 %v2752
      %v3749 = vpop.f32.mrb[0].mxu0
      %v3750 = vadd.f32 %v3589, %v3749
      %v3751 = vpop.f32.mrb[0].mxu0
      %v3752 = vpop.f32.mrb[0].mxu0
      %v3753 = vadd.f32 %v3592, %v3752
      %v3754 = vpop.f32.mrb[0].mxu0
      %3755 = vmatprep.mubr.bf16.mxu0 0
      %3756 = vmatmul.mubr.bf16.gmra.mrb[0].mxu0 %v2755
      %v3757 = vpop.f32.mrb[0].mxu0
      %v3758 = vadd.f32 %v3597, %v3757
      %v3759 = vpop.f32.mrb[0].mxu0
      %v3760 = vpop.f32.mrb[0].mxu0
      %v3761 = vadd.f32 %v3600, %v3760
      %v3762 = vpop.f32.mrb[0].mxu0
      %3763 = vmatprep.mubr.bf16.mxu0 0
      %3764 = vmatmul.mubr.bf16.gmra.mrb[0].mxu0 %v2758
      %v3765 = vpop.f32.mrb[0].mxu0
      %v3766 = vadd.f32 %v3605, %v3765
      %v3767 = vpop.f32.mrb[0].mxu0
      %v3768 = vpop.f32.mrb[0].mxu0
      %v3769 = vadd.f32 %v3608, %v3768
      %v3770 = vpop.f32.mrb[0].mxu0
      %3771 = vmatprep.mubr.bf16.mxu0 0
      %3772 = vmatmul.mubr.bf16.gmra.mrb[0].mxu0 %v2761
      %v3773 = vpop.f32.mrb[0].mxu0
      %v3774 = vadd.f32 %v3613, %v3773
      %v3775 = vpop.f32.mrb[0].mxu0
      %v3776 = vpop.f32.mrb[0].mxu0
      %v3777 = vadd.f32 %v3616, %v3776
      %v3778 = vpop.f32.mrb[0].mxu0
      %3779 = vmatprep.mubr.bf16.mxu0 0
      %3780 = vmatmul.mubr.bf16.gmra.mrb[0].mxu0 %v2764
      %v3781 = vpop.f32.mrb[0].mxu0
      %v3782 = vadd.f32 %v3621, %v3781
      %v3783 = vpop.f32.mrb[0].mxu0
      %v3784 = vpop.f32.mrb[0].mxu0
      %v3785 = vadd.f32 %v3624, %v3784
      %v3786 = vpop.f32.mrb[0].mxu0
      %3787 = vmatprep.mubr.bf16.mxu0 0
      %3788 = vmatmul.mubr.bf16.gmra.mrb[0].mxu0 %v2767
      %v3789 = vpop.f32.mrb[0].mxu0
      %v3790 = vadd.f32 %v3629, %v3789
      %v3791 = vpop.f32.mrb[0].mxu0
      %v3792 = vpop.f32.mrb[0].mxu0
      %v3793 = vadd.f32 %v3632, %v3792
      %v3794 = vpop.f32.mrb[0].mxu0
      %3795 = vmatprep.mubr.bf16.mxu0 0
      %3796 = vmatmul.mubr.bf16.gmra.mrb[0].mxu0 %v2770
      %v3797 = vpop.f32.mrb[0].mxu0
      %v3798 = vadd.f32 %v3637, %v3797
      %v3799 = vpop.f32.mrb[0].mxu0
      %v3800 = vpop.f32.mrb[0].mxu0
      %v3801 = vadd.f32 %v3640, %v3800
      %v3802 = vpop.f32.mrb[0].mxu0
      %3803 = vmatprep.mubr.bf16.mxu0 0
      %3804 = vmatmul.mubr.bf16.gmra.mrb[0].mxu0 %v2773
      %v3805 = vpop.f32.mrb[0].mxu0
      %v3806 = vadd.f32 %v3645, %v3805
      %v3807 = vpop.f32.mrb[0].mxu0
      %v3808 = vpop.f32.mrb[0].mxu0
      %v3809 = vadd.f32 %v3648, %v3808
      %v3810 = vpop.f32.mrb[0].mxu0
      %3811 = vmatprep.mubr.bf16.mxu0 0
      %3812 = vmatmul.mubr.bf16.gmra.mrb[0].mxu0 %v2776
      %v3813 = vpop.f32.mrb[0].mxu0
      %v3814 = vadd.f32 %v3653, %v3813
      %v3815 = vpop.f32.mrb[0].mxu0
      %v3816 = vpop.f32.mrb[0].mxu0
      %v3817 = vadd.f32 %v3656, %v3816
      %v3818 = vpop.f32.mrb[0].mxu0
      %3819 = vmatprep.mubr.bf16.mxu0 0
      %3820 = vmatmul.mubr.bf16.gmra.mrb[0].mxu0 %v2779
      %v3821 = vpop.f32.mrb[0].mxu0
      %v3822 = vadd.f32 %v3661, %v3821
      %v3823 = vpop.f32.mrb[0].mxu0
      %v3824 = vpop.f32.mrb[0].mxu0
      %v3825 = vadd.f32 %v3664, %v3824
      %v3826 = vpop.f32.mrb[0].mxu0
      %3827 = vmatprep.mubr.bf16.mxu0 0
      %3828 = vmatmul.mubr.bf16.gmra.mrb[0].mxu0 %v2782
      %v3829 = vpop.f32.mrb[0].mxu0
      %v3830 = vadd.f32 %v3669, %v3829
      %v3831 = vpop.f32.mrb[0].mxu0
      %v3832 = vpop.f32.mrb[0].mxu0
      %v3833 = vadd.f32 %v3672, %v3832
      %v3834 = vpop.f32.mrb[0].mxu0
      %3835 = vmatprep.mubr.bf16.mxu0 0
      %3836 = vmatmul.mubr.bf16.gmra.mrb[0].mxu0 %v2785
      %v3837 = vpop.f32.mrb[0].mxu0
      %v3838 = vadd.f32 %v3677, %v3837
      %v3839 = vpop.f32.mrb[0].mxu0
      %v3840 = vpop.f32.mrb[0].mxu0
      %v3841 = vadd.f32 %v3680, %v3840
      %v3842 = vpop.f32.mrb[0].mxu0
      %3843 = vmatprep.mubr.bf16.mxu0 0
      %3844 = vmatmul.mubr.bf16.gmra.mrb[0].mxu0 %v2788
      %v3845 = vpop.f32.mrb[0].mxu0
      %v3846 = vadd.f32 %v3685, %v3845
      %v3847 = vpop.f32.mrb[0].mxu0
      %v3848 = vpop.f32.mrb[0].mxu0
      %v3849 = vadd.f32 %v3688, %v3848
      %v3850 = vpop.f32.mrb[0].mxu0
      %3851 = vmatprep.mubr.bf16.mxu0 0
      %3852 = vmatmul.mubr.bf16.gmra.mrb[0].mxu0 %v2791
      %v3853 = vpop.f32.mrb[0].mxu0
      %v3854 = vadd.f32 %v3693, %v3853
      %v3855 = vpop.f32.mrb[0].mxu0
      %v3856 = vpop.f32.mrb[0].mxu0
      %v3857 = vadd.f32 %v3696, %v3856
      %v3858 = vpop.f32.mrb[0].mxu0
      %3859 = vmatprep.mubr.bf16.mxu0 0
      %3860 = vmatmul.mubr.bf16.gmra.mrb[0].mxu0 %v2794
      %v3861 = vpop.f32.mrb[0].mxu0
      %v3862 = vadd.f32 %v3701, %v3861
      %v3863 = vpop.f32.mrb[0].mxu0
      %v3864 = vpop.f32.mrb[0].mxu0
      %v3865 = vadd.f32 %v3704, %v3864
      %v3866 = vpop.f32.mrb[0].mxu0
      %3867 = vmatprep.mubr.bf16.mxu0 0
      %3868 = vmatmul.mubr.bf16.gmra.mrb[0].mxu0 %v2797
      %v3869 = vpop.f32.mrb[0].mxu0
      %v3870 = vadd.f32 %v3709, %v3869
      %v3871 = vpop.f32.mrb[0].mxu0
      %v3872 = vpop.f32.mrb[0].mxu0
      %v3873 = vadd.f32 %v3712, %v3872
      %v3874 = vpop.f32.mrb[0].mxu0
      %3875 = vdwg.mxu0
      %s3876 = scalar_lea.vmem [#allocation3], 48
      %v3877 = vld [vmem:[%s3876] sm:$0xff]
      %v3878 = vld [vmem:[%s3876 + $0x8] sm:$0xff]
      %v3879 = vld [vmem:[%s3876 + $0x10] sm:$0xff]
      %v3880 = vld [vmem:[%s3876 + $0x18] sm:$0xff]
      %v3881 = vld [vmem:[%s3876 + $0x20] sm:$0xff]
      %v3882 = vld [vmem:[%s3876 + $0x28] sm:$0xff]
      %v3883 = vld [vmem:[%s3876 + $0x30] sm:$0xff]
      %v3884 = vld [vmem:[%s3876 + $0x38] sm:$0xff]
      %v3885 = vld [vmem:[%s3876 + $0x40] sm:$0xff]
      %v3886 = vld [vmem:[%s3876 + $0x48] sm:$0xff]
      %v3887 = vld [vmem:[%s3876 + $0x50] sm:$0xff]
      %v3888 = vld [vmem:[%s3876 + $0x58] sm:$0xff]
      %v3889 = vld [vmem:[%s3876 + $0x60] sm:$0xff]
      %v3890 = vld [vmem:[%s3876 + $0x68] sm:$0xff]
      %v3891 = vld [vmem:[%s3876 + $0x70] sm:$0xff]
      %v3892 = vld [vmem:[%s3876 + $0x78] sm:$0xff]
      %v3893 = vld [vmem:[%s3876 + $0x80] sm:$0xff]
      %v3894 = vld [vmem:[%s3876 + $0x88] sm:$0xff]
      %v3895 = vld [vmem:[%s3876 + $0x90] sm:$0xff]
      %v3896 = vld [vmem:[%s3876 + $0x98] sm:$0xff]
      %v3897 = vld [vmem:[%s3876 + $0xa0] sm:$0xff]
      %v3898 = vld [vmem:[%s3876 + $0xa8] sm:$0xff]
      %v3899 = vld [vmem:[%s3876 + $0xb0] sm:$0xff]
      %v3900 = vld [vmem:[%s3876 + $0xb8] sm:$0xff]
      %v3901 = vld [vmem:[%s3876 + $0xc0] sm:$0xff]
      %v3902 = vld [vmem:[%s3876 + $0xc8] sm:$0xff]
      %v3903 = vld [vmem:[%s3876 + $0xd0] sm:$0xff]
      %v3904 = vld [vmem:[%s3876 + $0xd8] sm:$0xff]
      %v3905 = vld [vmem:[%s3876 + $0xe0] sm:$0xff]
      %v3906 = vld [vmem:[%s3876 + $0xe8] sm:$0xff]
      %v3907 = vld [vmem:[%s3876 + $0xf0] sm:$0xff]
      %v3908 = vld [vmem:[%s3876 + $0xf8] sm:$0xff]
      %v3909 = vld [vmem:[%s3876 + $0x100] sm:$0xff]
      %v3910 = vld [vmem:[%s3876 + $0x108] sm:$0xff]
      %v3911 = vld [vmem:[%s3876 + $0x110] sm:$0xff]
      %v3912 = vld [vmem:[%s3876 + $0x118] sm:$0xff]
      %v3913 = vld [vmem:[%s3876 + $0x120] sm:$0xff]
      %v3914 = vld [vmem:[%s3876 + $0x128] sm:$0xff]
      %v3915 = vld [vmem:[%s3876 + $0x130] sm:$0xff]
      %v3916 = vld [vmem:[%s3876 + $0x138] sm:$0xff]
      %v3917 = vld [vmem:[%s3876 + $0x140] sm:$0xff]
      %v3918 = vld [vmem:[%s3876 + $0x148] sm:$0xff]
      %v3919 = vld [vmem:[%s3876 + $0x150] sm:$0xff]
      %v3920 = vld [vmem:[%s3876 + $0x158] sm:$0xff]
      %v3921 = vld [vmem:[%s3876 + $0x160] sm:$0xff]
      %v3922 = vld [vmem:[%s3876 + $0x168] sm:$0xff]
      %v3923 = vld [vmem:[%s3876 + $0x170] sm:$0xff]
      %v3924 = vld [vmem:[%s3876 + $0x178] sm:$0xff]
      %s3925 = scalar_lea.vmem %s4, 384
      %v3926 = vld [vmem:[%s3925] sm:$0xf]
      %v3927 = vld [vmem:[%s3925 + $0x4] sm:$0xf]
      %v3928 = vld [vmem:[%s3925 + $0x8] sm:$0xf]
      %v3929 = vld [vmem:[%s3925 + $0xc] sm:$0xf]
      %v3930 = vld [vmem:[%s3925 + $0x10] sm:$0xf]
      %v3931 = vld [vmem:[%s3925 + $0x14] sm:$0xf]
      %v3932 = vld [vmem:[%s3925 + $0x18] sm:$0xf]
      %v3933 = vld [vmem:[%s3925 + $0x1c] sm:$0xf]
      %v3934 = vld [vmem:[%s3925 + $0x20] sm:$0xf]
      %v3935 = vld [vmem:[%s3925 + $0x24] sm:$0xf]
      %v3936 = vld [vmem:[%s3925 + $0x28] sm:$0xf]
      %v3937 = vld [vmem:[%s3925 + $0x2c] sm:$0xf]
      %v3938 = vld [vmem:[%s3925 + $0x30] sm:$0xf]
      %v3939 = vld [vmem:[%s3925 + $0x34] sm:$0xf]
      %v3940 = vld [vmem:[%s3925 + $0x38] sm:$0xf]
      %v3941 = vld [vmem:[%s3925 + $0x3c] sm:$0xf]
      %v3942 = vld [vmem:[%s3925 + $0x40] sm:$0xf]
      %v3943 = vld [vmem:[%s3925 + $0x44] sm:$0xf]
      %v3944 = vld [vmem:[%s3925 + $0x48] sm:$0xf]
      %v3945 = vld [vmem:[%s3925 + $0x4c] sm:$0xf]
      %v3946 = vld [vmem:[%s3925 + $0x50] sm:$0xf]
      %v3947 = vld [vmem:[%s3925 + $0x54] sm:$0xf]
      %v3948 = vld [vmem:[%s3925 + $0x58] sm:$0xf]
      %v3949 = vld [vmem:[%s3925 + $0x5c] sm:$0xf]
      %v3950 = vld [vmem:[%s3925 + $0x60] sm:$0xf]
      %v3951 = vld [vmem:[%s3925 + $0x64] sm:$0xf]
      %v3952 = vld [vmem:[%s3925 + $0x68] sm:$0xf]
      %v3953 = vld [vmem:[%s3925 + $0x6c] sm:$0xf]
      %v3954 = vld [vmem:[%s3925 + $0x70] sm:$0xf]
      %v3955 = vld [vmem:[%s3925 + $0x74] sm:$0xf]
      %v3956 = vld [vmem:[%s3925 + $0x78] sm:$0xf]
      %v3957 = vld [vmem:[%s3925 + $0x7c] sm:$0xf]
      %v3958 = vld [vmem:[%s3925 + $0x80] sm:$0xf]
      %v3959 = vld [vmem:[%s3925 + $0x84] sm:$0xf]
      %v3960 = vld [vmem:[%s3925 + $0x88] sm:$0xf]
      %v3961 = vld [vmem:[%s3925 + $0x8c] sm:$0xf]
      %v3962 = vld [vmem:[%s3925 + $0x90] sm:$0xf]
      %v3963 = vld [vmem:[%s3925 + $0x94] sm:$0xf]
      %v3964 = vld [vmem:[%s3925 + $0x98] sm:$0xf]
      %v3965 = vld [vmem:[%s3925 + $0x9c] sm:$0xf]
      %v3966 = vld [vmem:[%s3925 + $0xa0] sm:$0xf]
      %v3967 = vld [vmem:[%s3925 + $0xa4] sm:$0xf]
      %v3968 = vld [vmem:[%s3925 + $0xa8] sm:$0xf]
      %v3969 = vld [vmem:[%s3925 + $0xac] sm:$0xf]
      %v3970 = vld [vmem:[%s3925 + $0xb0] sm:$0xf]
      %v3971 = vld [vmem:[%s3925 + $0xb4] sm:$0xf]
      %v3972 = vld [vmem:[%s3925 + $0xb8] sm:$0xf]
      %v3973 = vld [vmem:[%s3925 + $0xbc] sm:$0xf]
      %v4022 = vunpack.c.l.b16 %v3926
      %v4023 = vunpack.c.l.b16 %v3927
      %v4024 = vunpack.c.l.b16 %v3928
      %v4025 = vunpack.c.l.b16 %v3929
      %v4026 = vunpack.c.l.b16 %v3930
      %v4027 = vunpack.c.l.b16 %v3931
      %v4028 = vunpack.c.l.b16 %v3932
      %v4029 = vunpack.c.l.b16 %v3933
      %v4030 = vunpack.c.l.b16 %v3934
      %v4031 = vunpack.c.l.b16 %v3935
      %v4032 = vunpack.c.l.b16 %v3936
      %v4033 = vunpack.c.l.b16 %v3937
      %v4034 = vunpack.c.l.b16 %v3938
      %v4035 = vunpack.c.l.b16 %v3939
      %v4036 = vunpack.c.l.b16 %v3940
      %v4037 = vunpack.c.l.b16 %v3941
      %v4038 = vunpack.c.l.b16 %v3942
      %v4039 = vunpack.c.l.b16 %v3943
      %v4040 = vunpack.c.l.b16 %v3944
      %v4041 = vunpack.c.l.b16 %v3945
      %v4042 = vunpack.c.l.b16 %v3946
      %v4043 = vunpack.c.l.b16 %v3947
      %v4044 = vunpack.c.l.b16 %v3948
      %v4045 = vunpack.c.l.b16 %v3949
      %v4046 = vunpack.c.l.b16 %v3950
      %v4047 = vunpack.c.l.b16 %v3951
      %v4048 = vunpack.c.l.b16 %v3952
      %v4049 = vunpack.c.l.b16 %v3953
      %v4050 = vunpack.c.l.b16 %v3954
      %v4051 = vunpack.c.l.b16 %v3955
      %v4052 = vunpack.c.l.b16 %v3956
      %v4053 = vunpack.c.l.b16 %v3957
      %v4054 = vunpack.c.l.b16 %v3958
      %v4055 = vunpack.c.l.b16 %v3959
      %v4056 = vunpack.c.l.b16 %v3960
      %v4057 = vunpack.c.l.b16 %v3961
      %v4058 = vunpack.c.l.b16 %v3962
      %v4059 = vunpack.c.l.b16 %v3963
      %v4060 = vunpack.c.l.b16 %v3964
      %v4061 = vunpack.c.l.b16 %v3965
      %v4062 = vunpack.c.l.b16 %v3966
      %v4063 = vunpack.c.l.b16 %v3967
      %v4064 = vunpack.c.l.b16 %v3968
      %v4065 = vunpack.c.l.b16 %v3969
      %v4066 = vunpack.c.l.b16 %v3970
      %v4067 = vunpack.c.l.b16 %v3971
      %v4068 = vunpack.c.l.b16 %v3972
      %v4069 = vunpack.c.l.b16 %v3973
      %v4070 = vpack.c.b16 %v4023, %v4022
      %v4071 = vpack.c.b16 %v4025, %v4024
      %v4072 = vpack.c.b16 %v4027, %v4026
      %v4073 = vpack.c.b16 %v4029, %v4028
      %v4074 = vpack.c.b16 %v4031, %v4030
      %v4075 = vpack.c.b16 %v4033, %v4032
      %v4076 = vpack.c.b16 %v4035, %v4034
      %v4077 = vpack.c.b16 %v4037, %v4036
      %v4078 = vpack.c.b16 %v4039, %v4038
      %v4079 = vpack.c.b16 %v4041, %v4040
      %v4080 = vpack.c.b16 %v4043, %v4042
      %v4081 = vpack.c.b16 %v4045, %v4044
      %v4082 = vpack.c.b16 %v4047, %v4046
      %v4083 = vpack.c.b16 %v4049, %v4048
      %v4084 = vpack.c.b16 %v4051, %v4050
      %v4085 = vpack.c.b16 %v4053, %v4052
      %v4086 = vpack.c.b16 %v4055, %v4054
      %v4087 = vpack.c.b16 %v4057, %v4056
      %v4088 = vpack.c.b16 %v4059, %v4058
      %v4089 = vpack.c.b16 %v4061, %v4060
      %v4090 = vpack.c.b16 %v4063, %v4062
      %v4091 = vpack.c.b16 %v4065, %v4064
      %v4092 = vpack.c.b16 %v4067, %v4066
      %v4093 = vpack.c.b16 %v4069, %v4068
      %4118 = vmatprep.subr.bf16.mxu0 0
      %4119 = vmatpush1.bf16.msra.mxu0 %v4070
      %4120 = vmatprep.subr.bf16.mxu0 0
      %4121 = vmatpush1.bf16.msra.mxu0 %v4071
      %4122 = vmatprep.subr.bf16.mxu0 0
      %4123 = vmatpush1.bf16.msra.mxu0 %v4072
      %4124 = vmatprep.subr.bf16.mxu0 0
      %4125 = vmatpush1.bf16.msra.mxu0 %v4073
      %4126 = vmatprep.subr.bf16.mxu0 0
      %4127 = vmatpush1.bf16.msra.mxu0 %v4074
      %4128 = vmatprep.subr.bf16.mxu0 0
      %4129 = vmatpush1.bf16.msra.mxu0 %v4075
      %4130 = vmatprep.subr.bf16.mxu0 0
      %4131 = vmatpush1.bf16.msra.mxu0 %v4076
      %4132 = vmatprep.subr.bf16.mxu0 0
      %4133 = vmatpush1.bf16.msra.mxu0 %v4077
      %4134 = vmatprep.subr.bf16.mxu0 0
      %4135 = vmatpush1.bf16.msra.mxu0 %v4078
      %4136 = vmatprep.subr.bf16.mxu0 0
      %4137 = vmatpush1.bf16.msra.mxu0 %v4079
      %4138 = vmatprep.subr.bf16.mxu0 0
      %4139 = vmatpush1.bf16.msra.mxu0 %v4080
      %4140 = vmatprep.subr.bf16.mxu0 0
      %4141 = vmatpush1.bf16.msra.mxu0 %v4081
      %4142 = vmatprep.subr.bf16.mxu0 0
      %4143 = vmatpush1.bf16.msra.mxu0 %v4082
      %4144 = vmatprep.subr.bf16.mxu0 0
      %4145 = vmatpush1.bf16.msra.mxu0 %v4083
      %4146 = vmatprep.subr.bf16.mxu0 0
      %4147 = vmatpush1.bf16.msra.mxu0 %v4084
      %4148 = vmatprep.subr.bf16.mxu0 0
      %4149 = vmatpush1.bf16.msra.mxu0 %v4085
      %4150 = vmatprep.mubr.bf16.mxu0 %v3878
      %4151 = vmatmul.mubr.bf16.gmra.mrb[0].mxu0 %v3877
      %v4152 = vpop.f32.mrb[0].mxu0
      %v4153 = vadd.f32 0.0, %v4152
      %v4154 = vpop.f32.mrb[0].mxu0
      %v4155 = vpop.f32.mrb[0].mxu0
      %v4156 = vadd.f32 0.0, %v4155
      %v4157 = vpop.f32.mrb[0].mxu0
      %4158 = vmatprep.mubr.bf16.mxu0 %v3881
      %4159 = vmatmul.mubr.bf16.gmra.mrb[0].mxu0 %v3880
      %v4160 = vpop.f32.mrb[0].mxu0
      %v4161 = vadd.f32 0.0, %v4160
      %v4162 = vpop.f32.mrb[0].mxu0
      %v4163 = vpop.f32.mrb[0].mxu0
      %v4164 = vadd.f32 0.0, %v4163
      %v4165 = vpop.f32.mrb[0].mxu0
      %4166 = vmatprep.mubr.bf16.mxu0 %v3884
      %4167 = vmatmul.mubr.bf16.gmra.mrb[0].mxu0 %v3883
      %v4168 = vpop.f32.mrb[0].mxu0
      %v4169 = vadd.f32 0.0, %v4168
      %v4170 = vpop.f32.mrb[0].mxu0
      %v4171 = vpop.f32.mrb[0].mxu0
      %v4172 = vadd.f32 0.0, %v4171
      %v4173 = vpop.f32.mrb[0].mxu0
      %4174 = vmatprep.mubr.bf16.mxu0 %v3887
      %4175 = vmatmul.mubr.bf16.gmra.mrb[0].mxu0 %v3886
      %v4176 = vpop.f32.mrb[0].mxu0
      %v4177 = vadd.f32 0.0, %v4176
      %v4178 = vpop.f32.mrb[0].mxu0
      %v4179 = vpop.f32.mrb[0].mxu0
      %v4180 = vadd.f32 0.0, %v4179
      %v4181 = vpop.f32.mrb[0].mxu0
      %4182 = vmatprep.mubr.bf16.mxu0 %v3890
      %4183 = vmatmul.mubr.bf16.gmra.mrb[0].mxu0 %v3889
      %v4184 = vpop.f32.mrb[0].mxu0
      %v4185 = vadd.f32 0.0, %v4184
      %v4186 = vpop.f32.mrb[0].mxu0
      %v4187 = vpop.f32.mrb[0].mxu0
      %v4188 = vadd.f32 0.0, %v4187
      %v4189 = vpop.f32.mrb[0].mxu0
      %4190 = vmatprep.mubr.bf16.mxu0 %v3893
      %4191 = vmatmul.mubr.bf16.gmra.mrb[0].mxu0 %v3892
      %v4192 = vpop.f32.mrb[0].mxu0
      %v4193 = vadd.f32 0.0, %v4192
      %v4194 = vpop.f32.mrb[0].mxu0
      %v4195 = vpop.f32.mrb[0].mxu0
      %v4196 = vadd.f32 0.0, %v4195
      %v4197 = vpop.f32.mrb[0].mxu0
      %4198 = vmatprep.mubr.bf16.mxu0 %v3896
      %4199 = vmatmul.mubr.bf16.gmra.mrb[0].mxu0 %v3895
      %v4200 = vpop.f32.mrb[0].mxu0
      %v4201 = vadd.f32 0.0, %v4200
      %v4202 = vpop.f32.mrb[0].mxu0
      %v4203 = vpop.f32.mrb[0].mxu0
      %v4204 = vadd.f32 0.0, %v4203
      %v4205 = vpop.f32.mrb[0].mxu0
      %4206 = vmatprep.mubr.bf16.mxu0 %v3899
      %4207 = vmatmul.mubr.bf16.gmra.mrb[0].mxu0 %v3898
      %v4208 = vpop.f32.mrb[0].mxu0
      %v4209 = vadd.f32 0.0, %v4208
      %v4210 = vpop.f32.mrb[0].mxu0
      %v4211 = vpop.f32.mrb[0].mxu0
      %v4212 = vadd.f32 0.0, %v4211
      %v4213 = vpop.f32.mrb[0].mxu0
      %4214 = vmatprep.mubr.bf16.mxu0 %v3902
      %4215 = vmatmul.mubr.bf16.gmra.mrb[0].mxu0 %v3901
      %v4216 = vpop.f32.mrb[0].mxu0
      %v4217 = vadd.f32 0.0, %v4216
      %v4218 = vpop.f32.mrb[0].mxu0
      %v4219 = vpop.f32.mrb[0].mxu0
      %v4220 = vadd.f32 0.0, %v4219
      %v4221 = vpop.f32.mrb[0].mxu0
      %4222 = vmatprep.mubr.bf16.mxu0 %v3905
      %4223 = vmatmul.mubr.bf16.gmra.mrb[0].mxu0 %v3904
      %v4224 = vpop.f32.mrb[0].mxu0
      %v4225 = vadd.f32 0.0, %v4224
      %v4226 = vpop.f32.mrb[0].mxu0
      %v4227 = vpop.f32.mrb[0].mxu0
      %v4228 = vadd.f32 0.0, %v4227
      %v4229 = vpop.f32.mrb[0].mxu0
      %4230 = vmatprep.mubr.bf16.mxu0 %v3908
      %4231 = vmatmul.mubr.bf16.gmra.mrb[0].mxu0 %v3907
      %v4232 = vpop.f32.mrb[0].mxu0
      %v4233 = vadd.f32 0.0, %v4232
      %v4234 = vpop.f32.mrb[0].mxu0
      %v4235 = vpop.f32.mrb[0].mxu0
      %v4236 = vadd.f32 0.0, %v4235
      %v4237 = vpop.f32.mrb[0].mxu0
      %4238 = vmatprep.mubr.bf16.mxu0 %v3911
      %4239 = vmatmul.mubr.bf16.gmra.mrb[0].mxu0 %v3910
      %v4240 = vpop.f32.mrb[0].mxu0
      %v4241 = vadd.f32 0.0, %v4240
      %v4242 = vpop.f32.mrb[0].mxu0
      %v4243 = vpop.f32.mrb[0].mxu0
      %v4244 = vadd.f32 0.0, %v4243
      %v4245 = vpop.f32.mrb[0].mxu0
      %4246 = vmatprep.mubr.bf16.mxu0 %v3914
      %4247 = vmatmul.mubr.bf16.gmra.mrb[0].mxu0 %v3913
      %v4248 = vpop.f32.mrb[0].mxu0
      %v4249 = vadd.f32 0.0, %v4248
      %v4250 = vpop.f32.mrb[0].mxu0
      %v4251 = vpop.f32.mrb[0].mxu0
      %v4252 = vadd.f32 0.0, %v4251
      %v4253 = vpop.f32.mrb[0].mxu0
      %4254 = vmatprep.mubr.bf16.mxu0 %v3917
      %4255 = vmatmul.mubr.bf16.gmra.mrb[0].mxu0 %v3916
      %v4256 = vpop.f32.mrb[0].mxu0
      %v4257 = vadd.f32 0.0, %v4256
      %v4258 = vpop.f32.mrb[0].mxu0
      %v4259 = vpop.f32.mrb[0].mxu0
      %v4260 = vadd.f32 0.0, %v4259
      %v4261 = vpop.f32.mrb[0].mxu0
      %4262 = vmatprep.mubr.bf16.mxu0 %v3920
      %4263 = vmatmul.mubr.bf16.gmra.mrb[0].mxu0 %v3919
      %v4264 = vpop.f32.mrb[0].mxu0
      %v4265 = vadd.f32 0.0, %v4264
      %v4266 = vpop.f32.mrb[0].mxu0
      %v4267 = vpop.f32.mrb[0].mxu0
      %v4268 = vadd.f32 0.0, %v4267
      %v4269 = vpop.f32.mrb[0].mxu0
      %4270 = vmatprep.mubr.bf16.mxu0 %v3923
      %4271 = vmatmul.mubr.bf16.gmra.mrb[0].mxu0 %v3922
      %v4272 = vpop.f32.mrb[0].mxu0
      %v4273 = vadd.f32 0.0, %v4272
      %v4274 = vpop.f32.mrb[0].mxu0
      %v4275 = vpop.f32.mrb[0].mxu0
      %v4276 = vadd.f32 0.0, %v4275
      %v4277 = vpop.f32.mrb[0].mxu0
      %4278 = vdwg.mxu0
      %4279 = vmatprep.subr.bf16.mxu0 0
      %4280 = vmatpush1.bf16.msra.mxu0 %v4086
      %4281 = vmatprep.subr.bf16.mxu0 0
      %4282 = vmatpush1.bf16.msra.mxu0 %v4087
      %4283 = vmatprep.subr.bf16.mxu0 0
      %4284 = vmatpush1.bf16.msra.mxu0 %v4088
      %4285 = vmatprep.subr.bf16.mxu0 0
      %4286 = vmatpush1.bf16.msra.mxu0 %v4089
      %4287 = vmatprep.subr.bf16.mxu0 0
      %4288 = vmatpush1.bf16.msra.mxu0 %v4090
      %4289 = vmatprep.subr.bf16.mxu0 0
      %4290 = vmatpush1.bf16.msra.mxu0 %v4091
      %4291 = vmatprep.subr.bf16.mxu0 0
      %4292 = vmatpush1.bf16.msra.mxu0 %v4092
      %4293 = vmatprep.subr.bf16.mxu0 0
      %4294 = vmatpush1.bf16.msra.mxu0 %v4093
      %4295 = vmatprep.subr.bf16.mxu0 0
      %4296 = vmatpush1.bf16.msra.mxu0 0
      %4297 = vmatprep.subr.bf16.mxu0 0
      %4298 = vmatpush1.bf16.msra.mxu0 0
      %4299 = vmatprep.subr.bf16.mxu0 0
      %4300 = vmatpush1.bf16.msra.mxu0 0
      %4301 = vmatprep.subr.bf16.mxu0 0
      %4302 = vmatpush1.bf16.msra.mxu0 0
      %4303 = vmatprep.subr.bf16.mxu0 0
      %4304 = vmatpush1.bf16.msra.mxu0 0
      %4305 = vmatprep.subr.bf16.mxu0 0
      %4306 = vmatpush1.bf16.msra.mxu0 0
      %4307 = vmatprep.subr.bf16.mxu0 0
      %4308 = vmatpush1.bf16.msra.mxu0 0
      %4309 = vmatprep.subr.bf16.mxu0 0
      %4310 = vmatpush1.bf16.msra.mxu0 0
      %4311 = vmatprep.mubr.bf16.mxu0 0
      %4312 = vmatmul.mubr.bf16.gmra.mrb[0].mxu0 %v3879
      %v4313 = vpop.f32.mrb[0].mxu0
      %v4314 = vadd.f32 %v4153, %v4313
      %v4315 = vpop.f32.mrb[0].mxu0
      %v4316 = vpop.f32.mrb[0].mxu0
      %v4317 = vadd.f32 %v4156, %v4316
      %v4318 = vpop.f32.mrb[0].mxu0
      %4319 = vmatprep.mubr.bf16.mxu0 0
      %4320 = vmatmul.mubr.bf16.gmra.mrb[0].mxu0 %v3882
      %v4321 = vpop.f32.mrb[0].mxu0
      %v4322 = vadd.f32 %v4161, %v4321
      %v4323 = vpop.f32.mrb[0].mxu0
      %v4324 = vpop.f32.mrb[0].mxu0
      %v4325 = vadd.f32 %v4164, %v4324
      %v4326 = vpop.f32.mrb[0].mxu0
      %4327 = vmatprep.mubr.bf16.mxu0 0
      %4328 = vmatmul.mubr.bf16.gmra.mrb[0].mxu0 %v3885
      %v4329 = vpop.f32.mrb[0].mxu0
      %v4330 = vadd.f32 %v4169, %v4329
      %v4331 = vpop.f32.mrb[0].mxu0
      %v4332 = vpop.f32.mrb[0].mxu0
      %v4333 = vadd.f32 %v4172, %v4332
      %v4334 = vpop.f32.mrb[0].mxu0
      %4335 = vmatprep.mubr.bf16.mxu0 0
      %4336 = vmatmul.mubr.bf16.gmra.mrb[0].mxu0 %v3888
      %v4337 = vpop.f32.mrb[0].mxu0
      %v4338 = vadd.f32 %v4177, %v4337
      %v4339 = vpop.f32.mrb[0].mxu0
      %v4340 = vpop.f32.mrb[0].mxu0
      %v4341 = vadd.f32 %v4180, %v4340
      %v4342 = vpop.f32.mrb[0].mxu0
      %4343 = vmatprep.mubr.bf16.mxu0 0
      %4344 = vmatmul.mubr.bf16.gmra.mrb[0].mxu0 %v3891
      %v4345 = vpop.f32.mrb[0].mxu0
      %v4346 = vadd.f32 %v4185, %v4345
      %v4347 = vpop.f32.mrb[0].mxu0
      %v4348 = vpop.f32.mrb[0].mxu0
      %v4349 = vadd.f32 %v4188, %v4348
      %v4350 = vpop.f32.mrb[0].mxu0
      %4351 = vmatprep.mubr.bf16.mxu0 0
      %4352 = vmatmul.mubr.bf16.gmra.mrb[0].mxu0 %v3894
      %v4353 = vpop.f32.mrb[0].mxu0
      %v4354 = vadd.f32 %v4193, %v4353
      %v4355 = vpop.f32.mrb[0].mxu0
      %v4356 = vpop.f32.mrb[0].mxu0
      %v4357 = vadd.f32 %v4196, %v4356
      %v4358 = vpop.f32.mrb[0].mxu0
      %4359 = vmatprep.mubr.bf16.mxu0 0
      %4360 = vmatmul.mubr.bf16.gmra.mrb[0].mxu0 %v3897
      %v4361 = vpop.f32.mrb[0].mxu0
      %v4362 = vadd.f32 %v4201, %v4361
      %v4363 = vpop.f32.mrb[0].mxu0
      %v4364 = vpop.f32.mrb[0].mxu0
      %v4365 = vadd.f32 %v4204, %v4364
      %v4366 = vpop.f32.mrb[0].mxu0
      %4367 = vmatprep.mubr.bf16.mxu0 0
      %4368 = vmatmul.mubr.bf16.gmra.mrb[0].mxu0 %v3900
      %v4369 = vpop.f32.mrb[0].mxu0
      %v4370 = vadd.f32 %v4209, %v4369
      %v4371 = vpop.f32.mrb[0].mxu0
      %v4372 = vpop.f32.mrb[0].mxu0
      %v4373 = vadd.f32 %v4212, %v4372
      %v4374 = vpop.f32.mrb[0].mxu0
      %4375 = vmatprep.mubr.bf16.mxu0 0
      %4376 = vmatmul.mubr.bf16.gmra.mrb[0].mxu0 %v3903
      %v4377 = vpop.f32.mrb[0].mxu0
      %v4378 = vadd.f32 %v4217, %v4377
      %v4379 = vpop.f32.mrb[0].mxu0
      %v4380 = vpop.f32.mrb[0].mxu0
      %v4381 = vadd.f32 %v4220, %v4380
      %v4382 = vpop.f32.mrb[0].mxu0
      %4383 = vmatprep.mubr.bf16.mxu0 0
      %4384 = vmatmul.mubr.bf16.gmra.mrb[0].mxu0 %v3906
      %v4385 = vpop.f32.mrb[0].mxu0
      %v4386 = vadd.f32 %v4225, %v4385
      %v4387 = vpop.f32.mrb[0].mxu0
      %v4388 = vpop.f32.mrb[0].mxu0
      %v4389 = vadd.f32 %v4228, %v4388
      %v4390 = vpop.f32.mrb[0].mxu0
      %4391 = vmatprep.mubr.bf16.mxu0 0
      %4392 = vmatmul.mubr.bf16.gmra.mrb[0].mxu0 %v3909
      %v4393 = vpop.f32.mrb[0].mxu0
      %v4394 = vadd.f32 %v4233, %v4393
      %v4395 = vpop.f32.mrb[0].mxu0
      %v4396 = vpop.f32.mrb[0].mxu0
      %v4397 = vadd.f32 %v4236, %v4396
      %v4398 = vpop.f32.mrb[0].mxu0
      %4399 = vmatprep.mubr.bf16.mxu0 0
      %4400 = vmatmul.mubr.bf16.gmra.mrb[0].mxu0 %v3912
      %v4401 = vpop.f32.mrb[0].mxu0
      %v4402 = vadd.f32 %v4241, %v4401
      %v4403 = vpop.f32.mrb[0].mxu0
      %v4404 = vpop.f32.mrb[0].mxu0
      %v4405 = vadd.f32 %v4244, %v4404
      %v4406 = vpop.f32.mrb[0].mxu0
      %4407 = vmatprep.mubr.bf16.mxu0 0
      %4408 = vmatmul.mubr.bf16.gmra.mrb[0].mxu0 %v3915
      %v4409 = vpop.f32.mrb[0].mxu0
      %v4410 = vadd.f32 %v4249, %v4409
      %v4411 = vpop.f32.mrb[0].mxu0
      %v4412 = vpop.f32.mrb[0].mxu0
      %v4413 = vadd.f32 %v4252, %v4412
      %v4414 = vpop.f32.mrb[0].mxu0
      %4415 = vmatprep.mubr.bf16.mxu0 0
      %4416 = vmatmul.mubr.bf16.gmra.mrb[0].mxu0 %v3918
      %v4417 = vpop.f32.mrb[0].mxu0
      %v4418 = vadd.f32 %v4257, %v4417
      %v4419 = vpop.f32.mrb[0].mxu0
      %v4420 = vpop.f32.mrb[0].mxu0
      %v4421 = vadd.f32 %v4260, %v4420
      %v4422 = vpop.f32.mrb[0].mxu0
      %4423 = vmatprep.mubr.bf16.mxu0 0
      %4424 = vmatmul.mubr.bf16.gmra.mrb[0].mxu0 %v3921
      %v4425 = vpop.f32.mrb[0].mxu0
      %v4426 = vadd.f32 %v4265, %v4425
      %v4427 = vpop.f32.mrb[0].mxu0
      %v4428 = vpop.f32.mrb[0].mxu0
      %v4429 = vadd.f32 %v4268, %v4428
      %v4430 = vpop.f32.mrb[0].mxu0
      %4431 = vmatprep.mubr.bf16.mxu0 0
      %4432 = vmatmul.mubr.bf16.gmra.mrb[0].mxu0 %v3924
      %v4433 = vpop.f32.mrb[0].mxu0
      %v4434 = vadd.f32 %v4273, %v4433
      %v4435 = vpop.f32.mrb[0].mxu0
      %v4436 = vpop.f32.mrb[0].mxu0
      %v4437 = vadd.f32 %v4276, %v4436
      %v4438 = vpop.f32.mrb[0].mxu0
      %4439 = vdwg.mxu0
      %v4440 = vadd.f32 %v3750, %v4314
      %v4441 = vadd.f32 %v3753, %v4317
      %v4442 = vadd.f32 %v3758, %v4322
      %v4443 = vadd.f32 %v3761, %v4325
      %v4444 = vadd.f32 %v3766, %v4330
      %v4445 = vadd.f32 %v3769, %v4333
      %v4446 = vadd.f32 %v3774, %v4338
      %v4447 = vadd.f32 %v3777, %v4341
      %v4448 = vadd.f32 %v3782, %v4346
      %v4449 = vadd.f32 %v3785, %v4349
      %v4450 = vadd.f32 %v3790, %v4354
      %v4451 = vadd.f32 %v3793, %v4357
      %v4452 = vadd.f32 %v3798, %v4362
      %v4453 = vadd.f32 %v3801, %v4365
      %v4454 = vadd.f32 %v3806, %v4370
      %v4455 = vadd.f32 %v3809, %v4373
      %v4456 = vadd.f32 %v3814, %v4378
      %v4457 = vadd.f32 %v3817, %v4381
      %v4458 = vadd.f32 %v3822, %v4386
      %v4459 = vadd.f32 %v3825, %v4389
      %v4460 = vadd.f32 %v3830, %v4394
      %v4461 = vadd.f32 %v3833, %v4397
      %v4462 = vadd.f32 %v3838, %v4402
      %v4463 = vadd.f32 %v3841, %v4405
      %v4464 = vadd.f32 %v3846, %v4410
      %v4465 = vadd.f32 %v3849, %v4413
      %v4466 = vadd.f32 %v3854, %v4418
      %v4467 = vadd.f32 %v3857, %v4421
      %v4468 = vadd.f32 %v3862, %v4426
      %v4469 = vadd.f32 %v3865, %v4429
      %v4470 = vadd.f32 %v3870, %v4434
      %v4471 = vadd.f32 %v3873, %v4437
      %v4472 = vld [vmem:[%s5] sm:$0x1]
      %v4474 = vlaneseq
      %v4475 = vshrl.u32 %v4474, 7
      %v4476 = vsub.s32 0, %v4475
      %v4477 = vrot.slane %v4472, %v4476
      %v4479 = vadd.f32 %v4440, %v4477
      %v4480 = vadd.f32 %v4441, %v4477
      %v4481 = vadd.f32 %v4442, %v4477
      %v4482 = vadd.f32 %v4443, %v4477
      %v4483 = vadd.f32 %v4444, %v4477
      %v4484 = vadd.f32 %v4445, %v4477
      %v4485 = vadd.f32 %v4446, %v4477
      %v4486 = vadd.f32 %v4447, %v4477
      %v4487 = vadd.f32 %v4448, %v4477
      %v4488 = vadd.f32 %v4449, %v4477
      %v4489 = vadd.f32 %v4450, %v4477
      %v4490 = vadd.f32 %v4451, %v4477
      %v4491 = vadd.f32 %v4452, %v4477
      %v4492 = vadd.f32 %v4453, %v4477
      %v4493 = vadd.f32 %v4454, %v4477
      %v4494 = vadd.f32 %v4455, %v4477
      %v4495 = vadd.f32 %v4456, %v4477
      %v4496 = vadd.f32 %v4457, %v4477
      %v4497 = vadd.f32 %v4458, %v4477
      %v4498 = vadd.f32 %v4459, %v4477
      %v4499 = vadd.f32 %v4460, %v4477
      %v4500 = vadd.f32 %v4461, %v4477
      %v4501 = vadd.f32 %v4462, %v4477
      %v4502 = vadd.f32 %v4463, %v4477
      %v4503 = vadd.f32 %v4464, %v4477
      %v4504 = vadd.f32 %v4465, %v4477
      %v4505 = vadd.f32 %v4466, %v4477
      %v4506 = vadd.f32 %v4467, %v4477
      %v4507 = vadd.f32 %v4468, %v4477
      %v4508 = vadd.f32 %v4469, %v4477
      %v4509 = vadd.f32 %v4470, %v4477
      %v4510 = vadd.f32 %v4471, %v4477
      %v4511 = vmax.f32 %v4479, 0.0
      %v4512 = vmax.f32 %v4480, 0.0
      %v4513 = vmax.f32 %v4481, 0.0
      %v4514 = vmax.f32 %v4482, 0.0
      %v4515 = vmax.f32 %v4483, 0.0
      %v4516 = vmax.f32 %v4484, 0.0
      %v4517 = vmax.f32 %v4485, 0.0
      %v4518 = vmax.f32 %v4486, 0.0
      %v4519 = vmax.f32 %v4487, 0.0
      %v4520 = vmax.f32 %v4488, 0.0
      %v4521 = vmax.f32 %v4489, 0.0
      %v4522 = vmax.f32 %v4490, 0.0
      %v4523 = vmax.f32 %v4491, 0.0
      %v4524 = vmax.f32 %v4492, 0.0
      %v4525 = vmax.f32 %v4493, 0.0
      %v4526 = vmax.f32 %v4494, 0.0
      %v4527 = vmax.f32 %v4495, 0.0
      %v4528 = vmax.f32 %v4496, 0.0
      %v4529 = vmax.f32 %v4497, 0.0
      %v4530 = vmax.f32 %v4498, 0.0
      %v4531 = vmax.f32 %v4499, 0.0
      %v4532 = vmax.f32 %v4500, 0.0
      %v4533 = vmax.f32 %v4501, 0.0
      %v4534 = vmax.f32 %v4502, 0.0
      %v4535 = vmax.f32 %v4503, 0.0
      %v4536 = vmax.f32 %v4504, 0.0
      %v4537 = vmax.f32 %v4505, 0.0
      %v4538 = vmax.f32 %v4506, 0.0
      %v4539 = vmax.f32 %v4507, 0.0
      %v4540 = vmax.f32 %v4508, 0.0
      %v4541 = vmax.f32 %v4509, 0.0
      %v4542 = vmax.f32 %v4510, 0.0
      %4543 = vst [vmem:[%s372] sm:$0xff] %v4511
      %4544 = vst [vmem:[%s372 + $0x8] sm:$0xff] %v4512
      %4545 = vst [vmem:[%s372 + $0x10] sm:$0xff] %v4513
      %4546 = vst [vmem:[%s372 + $0x18] sm:$0xff] %v4514
      %4547 = vst [vmem:[%s372 + $0x20] sm:$0xff] %v4515
      %4548 = vst [vmem:[%s372 + $0x28] sm:$0xff] %v4516
      %4549 = vst [vmem:[%s372 + $0x30] sm:$0xff] %v4517
      %4550 = vst [vmem:[%s372 + $0x38] sm:$0xff] %v4518
      %4551 = vst [vmem:[%s372 + $0x40] sm:$0xff] %v4519
      %4552 = vst [vmem:[%s372 + $0x48] sm:$0xff] %v4520
      %4553 = vst [vmem:[%s372 + $0x50] sm:$0xff] %v4521
      %4554 = vst [vmem:[%s372 + $0x58] sm:$0xff] %v4522
      %4555 = vst [vmem:[%s372 + $0x60] sm:$0xff] %v4523
      %4556 = vst [vmem:[%s372 + $0x68] sm:$0xff] %v4524
      %4557 = vst [vmem:[%s372 + $0x70] sm:$0xff] %v4525
      %4558 = vst [vmem:[%s372 + $0x78] sm:$0xff] %v4526
      %4559 = vst [vmem:[%s372 + $0x80] sm:$0xff] %v4527
      %4560 = vst [vmem:[%s372 + $0x88] sm:$0xff] %v4528
      %4561 = vst [vmem:[%s372 + $0x90] sm:$0xff] %v4529
      %4562 = vst [vmem:[%s372 + $0x98] sm:$0xff] %v4530
      %4563 = vst [vmem:[%s372 + $0xa0] sm:$0xff] %v4531
      %4564 = vst [vmem:[%s372 + $0xa8] sm:$0xff] %v4532
      %4565 = vst [vmem:[%s372 + $0xb0] sm:$0xff] %v4533
      %4566 = vst [vmem:[%s372 + $0xb8] sm:$0xff] %v4534
      %4567 = vst [vmem:[%s372 + $0xc0] sm:$0xff] %v4535
      %4568 = vst [vmem:[%s372 + $0xc8] sm:$0xff] %v4536
      %4569 = vst [vmem:[%s372 + $0xd0] sm:$0xff] %v4537
      %4570 = vst [vmem:[%s372 + $0xd8] sm:$0xff] %v4538
      %4571 = vst [vmem:[%s372 + $0xe0] sm:$0xff] %v4539
      %4572 = vst [vmem:[%s372 + $0xe8] sm:$0xff] %v4540
      %4573 = vst [vmem:[%s372 + $0xf0] sm:$0xff] %v4541
      %4574 = vst [vmem:[%s372 + $0xf8] sm:$0xff] %v4542
      %s4575 = smul.u32 16, %s22
      %p4576 = scmp.lt.s32.totalorder %s21, 1
      %s4577 = scalar_select %p4576, %s21, 1
      %p4578 = scmp.lt.s32.totalorder %s4575, 15
      %s4579 = scalar_select %p4578, %s4575, 15
      %s4580 = smul.addr %s4579, 2
      %s4581 = smul.addr %s4577, 32
      %s4582 = sadd.s32 %s4580, %s4581
      %s4583 = smul.addr %s4582, 8
      %s4584 = scalar_lea.vmem %s6, %s4583
      // Predicated region
      $region45: #{in_conv_forward.1} parent=43 // pred_check
        %p4585 = pneg %p193
      $region46: #{in_conv_forward.1} parent=43 // pred_check_branch
        %4587 = sbr.rel (%p4585) target = $region48
      $region47: #{in_conv_forward.1} parent=43 // pred_region
        %s4588 = smul.u32 16, %s22
      $region48: #{in_conv_forward.1} parent=43 // pred_fallthru
        _
    $region44: #{in_conv_forward.1} parent=5 // pred_fallthru
      _
    %p4589 = scmp.le.s32.totalorder 2, %s12
    // Predicated region
    $region49: #{in_conv_forward.1} parent=5 // pred_check
      %p4590 = pneg %p4589
    $region50: #{in_conv_forward.1} parent=5 // pred_check_branch
      %4592 = sbr.rel (%p4590) target = $region52
    $region51: #{in_conv_forward.1} parent=5 // pred_region
      %s4593 = ssub.s32 %s12, 2
      // Predicated region
      $region53: #{in_conv_forward.1} parent=51 // pred_check
        %p4594 = pneg %p199
      $region54: #{in_conv_forward.1} parent=51 // pred_check_branch
        %4596 = sbr.rel (%p4594) target = $region56
      $region55: #{in_conv_forward.1} parent=51 // pred_region
        %s4597 = smul.u32 16, %s24
        %p4598 = scmp.lt.s32.totalorder %s23, 1
        %s4599 = scalar_select %p4598, %s23, 1
        %p4600 = scmp.lt.s32.totalorder %s4597, 15
        %s4601 = scalar_select %p4600, %s4597, 15
        %s4602 = smul.addr %s4601, 2
        %s4603 = smul.addr %s4599, 32
        %s4604 = sadd.s32 %s4602, %s4603
        %s4605 = smul.addr %s4604, 8
        %s4606 = scalar_lea.vmem %s6, %s4605
      $region56: #{in_conv_forward.1} parent=51 // pred_fallthru
        _
    $region52: #{in_conv_forward.1} parent=5 // pred_fallthru
      _
  $region6: #{in_conv_forward.1} parent=0 // loop_footer
    %s16 = sadd.s32 1, %s12
  $region7: #{in_conv_forward.1} parent=0 // loop_footer_branch
    %11 = sbr.rel target = $region3
  $region8: #{in_conv_forward.1} parent=0 // loop_exit
    _

</llo_original>
